<compile_context>
chip_gen: v7x
topology: tpu7x:2x2x1
jax: 0.10.0
libtpu: 0.0.40
codegen_flags: <defaults>
</compile_context>

<pallas_src>
import jax
import jax.numpy as jnp
from jax.experimental import pallas as pl
from jax.experimental.pallas import tpu as pltpu

EPS = 1e-5
LANE = 128
AGG_VPU_MAX_N = 16
# bf16 operands for MXU matmuls / HBM activations (f32 accumulation).  Set to
# jnp.float32 for exact PyTorch-f32 numerics.
COMPUTE_DTYPE = jnp.bfloat16


# ----------------------------- chip-aware sizing ----------------------------
def _vmem_capacity_bytes():
    try:
        return int(pltpu.get_tpu_info().vmem_capacity_bytes)
    except Exception:
        return 64 << 20          # conservative fallback (v7x-sized VMEM)


def _vmem_limit_bytes():
    # ~48 MiB on v7x (64 MiB physical), ~96 MiB on v5e/v6e (128 MiB physical).
    return min(96 << 20, int(_vmem_capacity_bytes() * 3 // 4))


def _choose_bt(B, N):
    """Batches per grid step for the fused conv-stack kernel."""
    vmem = _vmem_capacity_bytes()
    # Live bytes per packed row: double-buffered h-in/A/feats-out/conf-out
    # blocks plus the in-kernel f32/bf16 temporaries at the widest (256-lane)
    # layer (h, agg, cat, y, conf hidden, ...).
    per_row = (2 * (LANE * 2)        # h in  (bf16, double-buffered)
               + 2 * (N * 2)         # A     (bf16, double-buffered)
               + 2 * (256 * 4)       # feats out (f32, double-buffered)
               + 2 * (LANE * 4)      # conf  out (f32, double-buffered)
               + 12 * 256 * 4)       # body temporaries (f32, widest layer)
    budget = max(8 << 20, int(vmem * 0.55) - (2 << 20))   # weights + slack
    bt = max(1, min(B, budget // (per_row * N)))
    # v7x (64 MiB VMEM, 2 TensorCores): split into >=2 "parallel" grid steps
    # only when each chunk still keeps >= 256 MXU rows.  Single-TC v5e/v6e
    # keep the largest chunk VMEM allows (per-step overhead amortization).
    if vmem <= (80 << 20) and B >= 2 and (B // 2) * N >= 256:
        bt = min(bt, pl.cdiv(B, 2))
    while B % bt:                    # keep the grid exact
        bt -= 1
    return bt


# --------------------------- fused node_mlp + bn0 ----------------------------
def _node_mlp_kernel(x_ref, w1, b1, g1, be1, w2, b2, g2, be2, w3, b3, g0, be0,
                     o_ref):
    def bn(h, g, be):
        mean = jnp.mean(h, axis=0, keepdims=True)
        var = jnp.mean((h - mean) ** 2, axis=0, keepdims=True)   # biased var
        return (h - mean) * jax.lax.rsqrt(var + EPS) * g[...] + be[...]

    x = x_ref[...]                                                 # (M, 128)
    h = jnp.dot(x, w1[...], preferred_element_type=jnp.float32) + b1[...]
    h = jnp.maximum(bn(h, g1, be1), 0.0)                           # real 32
    h = jnp.dot(h, w2[...], preferred_element_type=jnp.float32) + b2[...]
    h = jnp.maximum(bn(h, g2, be2), 0.0)                           # real 64
    h = jnp.dot(h, w3[...], preferred_element_type=jnp.float32) + b3[...]
    o_ref[...] = bn(h, g0, be0).astype(o_ref.dtype)                # real 32


def node_mlp(x2d, p):
    M = x2d.shape[0]
    args = (x2d,
            p["nm_w1"], p["nm_b1"], p["nm_g1"], p["nm_be1"],
            p["nm_w2"], p["nm_b2"], p["nm_g2"], p["nm_be2"],
            p["nm_w3"], p["nm_b3"], p["bn0_g"], p["bn0_b"])
    in_specs = [pl.BlockSpec(a.shape, lambda i: (0, 0)) for a in args]
    return pl.pallas_call(
        _node_mlp_kernel,
        out_shape=jax.ShapeDtypeStruct((M, LANE), COMPUTE_DTYPE),
        grid=(1,),
        in_specs=in_specs,
        out_specs=pl.BlockSpec((M, LANE), lambda i: (0, 0)),
        compiler_params=pltpu.CompilerParams(
            vmem_limit_bytes=_vmem_limit_bytes()),
    )(*args)


# ----------------- fused GraphConv x4 + conf_mlp epilogue --------------------
def _gcn_stack_kernel(h_ref, a_ref, w1, b1, w2, b2, w3, b3, w4, b4,
                      cw1, cb1, cw2, cb2, feats_ref, conf_ref):
    bt, n, _ = h_ref.shape
    h = h_ref[...].astype(jnp.float32)                 # (bt, n, 128)

    if n <= AGG_VPU_MAX_N:
        # Mean aggregation on the VPU: n broadcast-MACs per layer.  Avoids bt
        # tiny K=n MXU matmuls (fill/drain dominated) for small graphs.
        a32 = a_ref[...].astype(jnp.float32)           # (bt, n, n)

        def aggregate(hx):
            acc = a32[:, :, 0:1] * hx[:, 0:1, :]
            for j in range(1, n):
                acc = acc + a32[:, :, j:j + 1] * hx[:, j:j + 1, :]
            return acc
    else:
        a_mxu = a_ref[...]                             # bf16 (or f32)

        def aggregate(hx):
            return jnp.einsum("bij,bjd->bid", a_mxu, hx.astype(a_mxu.dtype),
                              preferred_element_type=jnp.float32)

    def conv(hx, w_ref, b_ref):
        d = hx.shape[-1]
        f = w_ref.shape[1]
        agg = aggregate(hx)                                        # (bt,n,d)
        # Single concat-K matmul: [h | A@h] (bt*n, 2d) @ W (2d, f).
        cat = jnp.concatenate([hx, agg], axis=-1).reshape(bt * n, 2 * d)
        y = jnp.dot(cat.astype(w_ref.dtype), w_ref[...],
                    preferred_element_type=jnp.float32) + b_ref[...]
        return jnp.maximum(y, 0.0).reshape(bt, n, f)

    h = conv(h, w1, b1)        # (bt, n, 128)  real 64
    h = conv(h, w2, b2)        # (bt, n, 128)  real 128
    h = conv(h, w3, b3)        # (bt, n, 256)
    h = conv(h, w4, b4)        # (bt, n, 256)
    feats_ref[...] = h

    # conf_mlp epilogue: Linear(256,256) -> ReLU -> Linear(256,1) (lane-padded
    # to 128 output columns so the store is a full-lane vst; col 0 is real).
    hf = h.reshape(bt * n, h.shape[-1])
    c = jnp.dot(hf.astype(cw1.dtype), cw1[...],
                preferred_element_type=jnp.float32) + cb1[...]
    c = jnp.maximum(c, 0.0)
    c = jnp.dot(c.astype(cw2.dtype), cw2[...],
                preferred_element_type=jnp.float32) + cb2[...]
    conf_ref[...] = c.reshape(bt, n, cw2.shape[1])


def gcn_conv_stack(h, A, p):
    B, N, DP = h.shape
    bt = _choose_bt(B, N)
    weight_args = (p["c1_w"], p["c1_b"], p["c2_w"], p["c2_b"],
                   p["c3_w"], p["c3_b"], p["c4_w"], p["c4_b"],
                   p["cm_w1"], p["cm_b1"], p["cm_w2"], p["cm_b2"])
    F_OUT = p["c4_w"].shape[1]
    CP = p["cm_w2"].shape[1]
    return pl.pallas_call(
        _gcn_stack_kernel,
        out_shape=(jax.ShapeDtypeStruct((B, N, F_OUT), jnp.float32),
                   jax.ShapeDtypeStruct((B, N, CP), jnp.float32)),
        grid=(B // bt,),
        in_specs=[pl.BlockSpec((bt, N, DP), lambda i: (i, 0, 0)),
                  pl.BlockSpec((bt, N, N), lambda i: (i, 0, 0))]
                 + [pl.BlockSpec(w.shape, lambda i: (0, 0))
                    for w in weight_args],
        out_specs=[pl.BlockSpec((bt, N, F_OUT), lambda i: (i, 0, 0)),
                   pl.BlockSpec((bt, N, CP), lambda i: (i, 0, 0))],
        compiler_params=pltpu.CompilerParams(
            dimension_semantics=("parallel",),
            vmem_limit_bytes=_vmem_limit_bytes()),
    )(h, A, *weight_args)


# ------------------------------ parameter init -------------------------------
def _pad2d(w, rows, cols):
    return jnp.pad(w, ((0, rows - w.shape[0]), (0, cols - w.shape[1])))


def _xavier(key, shape):
    fan_in, fan_out = shape
    bound = (6.0 / (fan_in + fan_out)) ** 0.5
    return jax.random.uniform(key, shape, jnp.float32, -bound, bound)


def _lin_init(key, in_dim, out_dim):
    kw, kb = jax.random.split(key)
    bound = 1.0 / (in_dim ** 0.5)
    w = jax.random.uniform(kw, (in_dim, out_dim), jnp.float32, -bound, bound)
    b = jax.random.uniform(kb, (1, out_dim), jnp.float32, -bound, bound)
    return w, b


def _graphconv_weight(key, din, dout, din_p, dout_p):
    """Original (2*din, dout) xavier weight, stacked [W_self; W_agg] with
    zero-padding so  cat([h_pad, agg_pad]) @ W_pad == cat([h, agg]) @ W."""
    w = _xavier(key, (2 * din, dout))
    wp = jnp.zeros((2 * din_p, dout_p), jnp.float32)
    wp = wp.at[:din, :dout].set(w[:din])
    wp = wp.at[din_p:din_p + din, :dout].set(w[din:])
    return wp.astype(COMPUTE_DTYPE)


def init_params(key):
    keys = jax.random.split(key, 16)
    p = {}
    ones = lambda c: jnp.ones((1, c), jnp.float32)
    zeros = lambda c: jnp.zeros((1, c), jnp.float32)

    # node_mlp: Linear(13,32) BN(32) ReLU Linear(32,64) BN(64) ReLU Linear(64,32)
    # Every weight is zero-padded to 128x128 so all intermediates are 128-lane.
    w1, b1 = _lin_init(keys[0], 13, 32)
    p["nm_w1"], p["nm_b1"] = _pad2d(w1, LANE, LANE), _pad2d(b1, 1, LANE)
    p["nm_g1"], p["nm_be1"] = ones(LANE), zeros(LANE)
    w2, b2 = _lin_init(keys[1], 32, 64)
    p["nm_w2"], p["nm_b2"] = _pad2d(w2, LANE, LANE), _pad2d(b2, 1, LANE)
    p["nm_g2"], p["nm_be2"] = ones(LANE), zeros(LANE)
    w3, b3 = _lin_init(keys[2], 64, 32)
    p["nm_w3"], p["nm_b3"] = _pad2d(w3, LANE, LANE), _pad2d(b3, 1, LANE)
    # bn0(32): padded columns are exactly zero and stay zero through BN.
    p["bn0_g"], p["bn0_b"] = ones(LANE), zeros(LANE)

    # GraphConv layers: (in_real, out_real, in_padded, out_padded)
    conv_dims = [(32, 64, 128, 128),
                 (64, 128, 128, 128),
                 (128, 256, 128, 256),
                 (256, 256, 256, 256)]
    for i, (din, dout, dinp, doutp) in enumerate(conv_dims, 1):
        p[f"c{i}_w"] = _graphconv_weight(keys[2 + i], din, dout, dinp, doutp)
        p[f"c{i}_b"] = zeros(doutp)                    # init.constant_(bias, 0)

    # conf_mlp: Linear(256,256) ReLU Linear(256,1); last layer lane-padded.
    cw1, cb1 = _lin_init(keys[8], 256, 256)
    p["cm_w1"], p["cm_b1"] = cw1.astype(COMPUTE_DTYPE), cb1
    cw2, cb2 = _lin_init(keys[9], 256, 1)
    p["cm_w2"] = _pad2d(cw2, 256, LANE).astype(COMPUTE_DTYPE)
    p["cm_b2"] = _pad2d(cb2, 1, LANE)
    return p


# --------------------------------- forward -----------------------------------
def gcn_forward(p, x, A):
    B, N, D = x.shape
    # Pad node features to 128 lanes so every kernel op is full-lane.
    x2d = jnp.pad(x.reshape(B * N, D), ((0, 0), (0, LANE - D)))
    h = node_mlp(x2d, p).reshape(B, N, LANE)           # (B, N, 128) bf16
    A_c = A.astype(COMPUTE_DTYPE)                      # pre-cast once
    feats, conf_pad = gcn_conv_stack(h, A_c, p)        # (B,N,256), (B,N,128)
    conf = conf_pad[:, :, :1]                          # real conf = column 0
    return feats, conf


if __name__ == "__main__":
    key = jax.random.PRNGKey(0)
    k_param, k_x, k_a = jax.random.split(key, 3)

    B, N, D_in = 2, 8, 13
    params = init_params(k_param)
    x = jax.random.normal(k_x, (B, N, D_in), jnp.float32)
    # row-normalized adjacency (mean-aggregation style), deterministic
    a_raw = jax.random.uniform(k_a, (B, N, N), jnp.float32)
    A = a_raw / jnp.sum(a_raw, axis=-1, keepdims=True)

    feats, conf = jax.jit(gcn_forward)(params, x, A)
    jax.block_until_ready((feats, conf))
    assert feats.shape == (B, N, 256) and conf.shape == (B, N, 1)
    assert bool(jnp.all(jnp.isfinite(feats))) and bool(jnp.all(jnp.isfinite(conf)))
    print("KERNEL_OK")
</pallas_src>

<mosaic_0001>
module attributes {stable_mosaic.version = 11 : i64} {
  func.func @_node_mlp_kernel(%arg0: i32, %arg1: memref<16x128xf32, #tpu.memory_space<vmem>>, %arg2: memref<128x128xf32, #tpu.memory_space<vmem>>, %arg3: memref<1x128xf32, #tpu.memory_space<vmem>>, %arg4: memref<1x128xf32, #tpu.memory_space<vmem>>, %arg5: memref<1x128xf32, #tpu.memory_space<vmem>>, %arg6: memref<128x128xf32, #tpu.memory_space<vmem>>, %arg7: memref<1x128xf32, #tpu.memory_space<vmem>>, %arg8: memref<1x128xf32, #tpu.memory_space<vmem>>, %arg9: memref<1x128xf32, #tpu.memory_space<vmem>>, %arg10: memref<128x128xf32, #tpu.memory_space<vmem>>, %arg11: memref<1x128xf32, #tpu.memory_space<vmem>>, %arg12: memref<1x128xf32, #tpu.memory_space<vmem>>, %arg13: memref<1x128xf32, #tpu.memory_space<vmem>>, %arg14: memref<16x128xbf16, #tpu.memory_space<vmem>>) attributes {dimension_semantics = [#tpu.dimension_semantics<arbitrary>], iteration_bounds = array<i64: 1>, scalar_prefetch = 0 : i64, scratch_operands = 0 : i64, tpu.core_type = #tpu.core_type<tc>, window_params = [{pipeline_mode = #tpu.pipeline_mode<synchronous>, transform_indices = @transform_0, window_bounds = array<i64: 16, 128>}, {pipeline_mode = #tpu.pipeline_mode<synchronous>, transform_indices = @transform_1, window_bounds = array<i64: 128, 128>}, {pipeline_mode = #tpu.pipeline_mode<synchronous>, transform_indices = @transform_2, window_bounds = array<i64: 1, 128>}, {pipeline_mode = #tpu.pipeline_mode<synchronous>, transform_indices = @transform_3, window_bounds = array<i64: 1, 128>}, {pipeline_mode = #tpu.pipeline_mode<synchronous>, transform_indices = @transform_4, window_bounds = array<i64: 1, 128>}, {pipeline_mode = #tpu.pipeline_mode<synchronous>, transform_indices = @transform_5, window_bounds = array<i64: 128, 128>}, {pipeline_mode = #tpu.pipeline_mode<synchronous>, transform_indices = @transform_6, window_bounds = array<i64: 1, 128>}, {pipeline_mode = #tpu.pipeline_mode<synchronous>, transform_indices = @transform_7, window_bounds = array<i64: 1, 128>}, {pipeline_mode = #tpu.pipeline_mode<synchronous>, transform_indices = @transform_8, window_bounds = array<i64: 1, 128>}, {pipeline_mode = #tpu.pipeline_mode<synchronous>, transform_indices = @transform_9, window_bounds = array<i64: 128, 128>}, {pipeline_mode = #tpu.pipeline_mode<synchronous>, transform_indices = @transform_10, window_bounds = array<i64: 1, 128>}, {pipeline_mode = #tpu.pipeline_mode<synchronous>, transform_indices = @transform_11, window_bounds = array<i64: 1, 128>}, {pipeline_mode = #tpu.pipeline_mode<synchronous>, transform_indices = @transform_12, window_bounds = array<i64: 1, 128>}, {pipeline_mode = #tpu.pipeline_mode<synchronous>, transform_indices = @transform_13, window_bounds = array<i64: 16, 128>}]} {
    %c0 = arith.constant 0 : index
    %c0_0 = arith.constant 0 : index
    %0 = vector.load %arg1[%c0, %c0_0] : memref<16x128xf32, #tpu.memory_space<vmem>>, vector<16x128xf32>
    %c0_1 = arith.constant 0 : index
    %c0_2 = arith.constant 0 : index
    %1 = vector.load %arg2[%c0_1, %c0_2] : memref<128x128xf32, #tpu.memory_space<vmem>>, vector<128x128xf32>
    %cst = arith.constant dense<0.000000e+00> : vector<16x128xf32>
    %2 = tpu.matmul %0, %1, %cst {dimension_numbers = #tpu.dot_dimension_numbers<[1], [0], [0], [1], [0, 0, 1, 1], [], []>} : vector<16x128xf32>, vector<128x128xf32>, vector<16x128xf32> -> vector<16x128xf32>
    %c0_3 = arith.constant 0 : index
    %c0_4 = arith.constant 0 : index
    %3 = vector.load %arg3[%c0_3, %c0_4] : memref<1x128xf32, #tpu.memory_space<vmem>>, vector<1x128xf32>
    %4 = vector.broadcast %3 : vector<1x128xf32> to vector<16x128xf32>
    %5 = arith.addf %2, %4 : vector<16x128xf32>
    %cst_5 = arith.constant dense<0.000000e+00> : vector<128xf32>
    %6 = vector.multi_reduction <add>, %5, %cst_5 [0] : vector<16x128xf32> to vector<128xf32>
    %7 = vector.shape_cast %6 : vector<128xf32> to vector<1x128xf32>
    %cst_6 = arith.constant 1.600000e+01 : f32
    %8 = vector.broadcast %cst_6 : f32 to vector<1x128xf32>
    %9 = arith.divf %7, %8 : vector<1x128xf32>
    %10 = vector.broadcast %9 : vector<1x128xf32> to vector<16x128xf32>
    %11 = arith.subf %5, %10 : vector<16x128xf32>
    %12 = arith.mulf %11, %11 : vector<16x128xf32>
    %cst_7 = arith.constant dense<0.000000e+00> : vector<128xf32>
    %13 = vector.multi_reduction <add>, %12, %cst_7 [0] : vector<16x128xf32> to vector<128xf32>
    %14 = vector.shape_cast %13 : vector<128xf32> to vector<1x128xf32>
    %cst_8 = arith.constant 1.600000e+01 : f32
    %15 = vector.broadcast %cst_8 : f32 to vector<1x128xf32>
    %16 = arith.divf %14, %15 : vector<1x128xf32>
    %17 = vector.broadcast %9 : vector<1x128xf32> to vector<16x128xf32>
    %18 = arith.subf %5, %17 : vector<16x128xf32>
    %cst_9 = arith.constant 9.99999974E-6 : f32
    %19 = vector.broadcast %cst_9 : f32 to vector<1x128xf32>
    %20 = arith.addf %16, %19 : vector<1x128xf32>
    %21 = math.rsqrt %20 : vector<1x128xf32>
    %22 = vector.broadcast %21 : vector<1x128xf32> to vector<16x128xf32>
    %23 = arith.mulf %18, %22 : vector<16x128xf32>
    %c0_10 = arith.constant 0 : index
    %c0_11 = arith.constant 0 : index
    %24 = vector.load %arg4[%c0_10, %c0_11] : memref<1x128xf32, #tpu.memory_space<vmem>>, vector<1x128xf32>
    %25 = vector.broadcast %24 : vector<1x128xf32> to vector<16x128xf32>
    %26 = arith.mulf %23, %25 : vector<16x128xf32>
    %c0_12 = arith.constant 0 : index
    %c0_13 = arith.constant 0 : index
    %27 = vector.load %arg5[%c0_12, %c0_13] : memref<1x128xf32, #tpu.memory_space<vmem>>, vector<1x128xf32>
    %28 = vector.broadcast %27 : vector<1x128xf32> to vector<16x128xf32>
    %29 = arith.addf %26, %28 : vector<16x128xf32>
    %cst_14 = arith.constant 0.000000e+00 : f32
    %30 = vector.broadcast %cst_14 : f32 to vector<16x128xf32>
    %31 = arith.maximumf %29, %30 : vector<16x128xf32>
    %c0_15 = arith.constant 0 : index
    %c0_16 = arith.constant 0 : index
    %32 = vector.load %arg6[%c0_15, %c0_16] : memref<128x128xf32, #tpu.memory_space<vmem>>, vector<128x128xf32>
    %cst_17 = arith.constant dense<0.000000e+00> : vector<16x128xf32>
    %33 = tpu.matmul %31, %32, %cst_17 {dimension_numbers = #tpu.dot_dimension_numbers<[1], [0], [0], [1], [0, 0, 1, 1], [], []>} : vector<16x128xf32>, vector<128x128xf32>, vector<16x128xf32> -> vector<16x128xf32>
    %c0_18 = arith.constant 0 : index
    %c0_19 = arith.constant 0 : index
    %34 = vector.load %arg7[%c0_18, %c0_19] : memref<1x128xf32, #tpu.memory_space<vmem>>, vector<1x128xf32>
    %35 = vector.broadcast %34 : vector<1x128xf32> to vector<16x128xf32>
    %36 = arith.addf %33, %35 : vector<16x128xf32>
    %cst_20 = arith.constant dense<0.000000e+00> : vector<128xf32>
    %37 = vector.multi_reduction <add>, %36, %cst_20 [0] : vector<16x128xf32> to vector<128xf32>
    %38 = vector.shape_cast %37 : vector<128xf32> to vector<1x128xf32>
    %cst_21 = arith.constant 1.600000e+01 : f32
    %39 = vector.broadcast %cst_21 : f32 to vector<1x128xf32>
    %40 = arith.divf %38, %39 : vector<1x128xf32>
    %41 = vector.broadcast %40 : vector<1x128xf32> to vector<16x128xf32>
    %42 = arith.subf %36, %41 : vector<16x128xf32>
    %43 = arith.mulf %42, %42 : vector<16x128xf32>
    %cst_22 = arith.constant dense<0.000000e+00> : vector<128xf32>
    %44 = vector.multi_reduction <add>, %43, %cst_22 [0] : vector<16x128xf32> to vector<128xf32>
    %45 = vector.shape_cast %44 : vector<128xf32> to vector<1x128xf32>
    %cst_23 = arith.constant 1.600000e+01 : f32
    %46 = vector.broadcast %cst_23 : f32 to vector<1x128xf32>
    %47 = arith.divf %45, %46 : vector<1x128xf32>
    %48 = vector.broadcast %40 : vector<1x128xf32> to vector<16x128xf32>
    %49 = arith.subf %36, %48 : vector<16x128xf32>
    %cst_24 = arith.constant 9.99999974E-6 : f32
    %50 = vector.broadcast %cst_24 : f32 to vector<1x128xf32>
    %51 = arith.addf %47, %50 : vector<1x128xf32>
    %52 = math.rsqrt %51 : vector<1x128xf32>
    %53 = vector.broadcast %52 : vector<1x128xf32> to vector<16x128xf32>
    %54 = arith.mulf %49, %53 : vector<16x128xf32>
    %c0_25 = arith.constant 0 : index
    %c0_26 = arith.constant 0 : index
    %55 = vector.load %arg8[%c0_25, %c0_26] : memref<1x128xf32, #tpu.memory_space<vmem>>, vector<1x128xf32>
    %56 = vector.broadcast %55 : vector<1x128xf32> to vector<16x128xf32>
    %57 = arith.mulf %54, %56 : vector<16x128xf32>
    %c0_27 = arith.constant 0 : index
    %c0_28 = arith.constant 0 : index
    %58 = vector.load %arg9[%c0_27, %c0_28] : memref<1x128xf32, #tpu.memory_space<vmem>>, vector<1x128xf32>
    %59 = vector.broadcast %58 : vector<1x128xf32> to vector<16x128xf32>
    %60 = arith.addf %57, %59 : vector<16x128xf32>
    %cst_29 = arith.constant 0.000000e+00 : f32
    %61 = vector.broadcast %cst_29 : f32 to vector<16x128xf32>
    %62 = arith.maximumf %60, %61 : vector<16x128xf32>
    %c0_30 = arith.constant 0 : index
    %c0_31 = arith.constant 0 : index
    %63 = vector.load %arg10[%c0_30, %c0_31] : memref<128x128xf32, #tpu.memory_space<vmem>>, vector<128x128xf32>
    %cst_32 = arith.constant dense<0.000000e+00> : vector<16x128xf32>
    %64 = tpu.matmul %62, %63, %cst_32 {dimension_numbers = #tpu.dot_dimension_numbers<[1], [0], [0], [1], [0, 0, 1, 1], [], []>} : vector<16x128xf32>, vector<128x128xf32>, vector<16x128xf32> -> vector<16x128xf32>
    %c0_33 = arith.constant 0 : index
    %c0_34 = arith.constant 0 : index
    %65 = vector.load %arg11[%c0_33, %c0_34] : memref<1x128xf32, #tpu.memory_space<vmem>>, vector<1x128xf32>
    %66 = vector.broadcast %65 : vector<1x128xf32> to vector<16x128xf32>
    %67 = arith.addf %64, %66 : vector<16x128xf32>
    %cst_35 = arith.constant dense<0.000000e+00> : vector<128xf32>
    %68 = vector.multi_reduction <add>, %67, %cst_35 [0] : vector<16x128xf32> to vector<128xf32>
    %69 = vector.shape_cast %68 : vector<128xf32> to vector<1x128xf32>
    %cst_36 = arith.constant 1.600000e+01 : f32
    %70 = vector.broadcast %cst_36 : f32 to vector<1x128xf32>
    %71 = arith.divf %69, %70 : vector<1x128xf32>
    %72 = vector.broadcast %71 : vector<1x128xf32> to vector<16x128xf32>
    %73 = arith.subf %67, %72 : vector<16x128xf32>
    %74 = arith.mulf %73, %73 : vector<16x128xf32>
    %cst_37 = arith.constant dense<0.000000e+00> : vector<128xf32>
    %75 = vector.multi_reduction <add>, %74, %cst_37 [0] : vector<16x128xf32> to vector<128xf32>
    %76 = vector.shape_cast %75 : vector<128xf32> to vector<1x128xf32>
    %cst_38 = arith.constant 1.600000e+01 : f32
    %77 = vector.broadcast %cst_38 : f32 to vector<1x128xf32>
    %78 = arith.divf %76, %77 : vector<1x128xf32>
    %79 = vector.broadcast %71 : vector<1x128xf32> to vector<16x128xf32>
    %80 = arith.subf %67, %79 : vector<16x128xf32>
    %cst_39 = arith.constant 9.99999974E-6 : f32
    %81 = vector.broadcast %cst_39 : f32 to vector<1x128xf32>
    %82 = arith.addf %78, %81 : vector<1x128xf32>
    %83 = math.rsqrt %82 : vector<1x128xf32>
    %84 = vector.broadcast %83 : vector<1x128xf32> to vector<16x128xf32>
    %85 = arith.mulf %80, %84 : vector<16x128xf32>
    %c0_40 = arith.constant 0 : index
    %c0_41 = arith.constant 0 : index
    %86 = vector.load %arg12[%c0_40, %c0_41] : memref<1x128xf32, #tpu.memory_space<vmem>>, vector<1x128xf32>
    %87 = vector.broadcast %86 : vector<1x128xf32> to vector<16x128xf32>
    %88 = arith.mulf %85, %87 : vector<16x128xf32>
    %c0_42 = arith.constant 0 : index
    %c0_43 = arith.constant 0 : index
    %89 = vector.load %arg13[%c0_42, %c0_43] : memref<1x128xf32, #tpu.memory_space<vmem>>, vector<1x128xf32>
    %90 = vector.broadcast %89 : vector<1x128xf32> to vector<16x128xf32>
    %91 = arith.addf %88, %90 : vector<16x128xf32>
    %92 = arith.truncf %91 : vector<16x128xf32> to vector<16x128xbf16>
    %c0_44 = arith.constant 0 : index
    %c0_45 = arith.constant 0 : index
    %93 = vector.load %arg14[%c0_44, %c0_45] : memref<16x128xbf16, #tpu.memory_space<vmem>>, vector<16x128xbf16>
    tpu.vector_store %arg14[%c0_44, %c0_45], %92 {strides = array<i32>} : memref<16x128xbf16, #tpu.memory_space<vmem>>, vector<16x128xbf16>,
    return
  }
  func.func @transform_0(%arg0: i32) -> (i32, i32) {
    %c0_i32 = arith.constant 0 : i32
    %c0_i32_0 = arith.constant 0 : i32
    %c0_i32_1 = arith.constant 0 : i32
    return %c0_i32, %c0_i32_0 : i32, i32
  }
  func.func @transform_1(%arg0: i32) -> (i32, i32) {
    %c0_i32 = arith.constant 0 : i32
    %c0_i32_0 = arith.constant 0 : i32
    %c0_i32_1 = arith.constant 0 : i32
    return %c0_i32, %c0_i32_0 : i32, i32
  }
  func.func @transform_2(%arg0: i32) -> (i32, i32) {
    %c0_i32 = arith.constant 0 : i32
    %c0_i32_0 = arith.constant 0 : i32
    %c0_i32_1 = arith.constant 0 : i32
    return %c0_i32, %c0_i32_0 : i32, i32
  }
  func.func @transform_3(%arg0: i32) -> (i32, i32) {
    %c0_i32 = arith.constant 0 : i32
    %c0_i32_0 = arith.constant 0 : i32
    %c0_i32_1 = arith.constant 0 : i32
    return %c0_i32, %c0_i32_0 : i32, i32
  }
  func.func @transform_4(%arg0: i32) -> (i32, i32) {
    %c0_i32 = arith.constant 0 : i32
    %c0_i32_0 = arith.constant 0 : i32
    %c0_i32_1 = arith.constant 0 : i32
    return %c0_i32, %c0_i32_0 : i32, i32
  }
  func.func @transform_5(%arg0: i32) -> (i32, i32) {
    %c0_i32 = arith.constant 0 : i32
    %c0_i32_0 = arith.constant 0 : i32
    %c0_i32_1 = arith.constant 0 : i32
    return %c0_i32, %c0_i32_0 : i32, i32
  }
  func.func @transform_6(%arg0: i32) -> (i32, i32) {
    %c0_i32 = arith.constant 0 : i32
    %c0_i32_0 = arith.constant 0 : i32
    %c0_i32_1 = arith.constant 0 : i32
    return %c0_i32, %c0_i32_0 : i32, i32
  }
  func.func @transform_7(%arg0: i32) -> (i32, i32) {
    %c0_i32 = arith.constant 0 : i32
    %c0_i32_0 = arith.constant 0 : i32
    %c0_i32_1 = arith.constant 0 : i32
    return %c0_i32, %c0_i32_0 : i32, i32
  }
  func.func @transform_8(%arg0: i32) -> (i32, i32) {
    %c0_i32 = arith.constant 0 : i32
    %c0_i32_0 = arith.constant 0 : i32
    %c0_i32_1 = arith.constant 0 : i32
    return %c0_i32, %c0_i32_0 : i32, i32
  }
  func.func @transform_9(%arg0: i32) -> (i32, i32) {
    %c0_i32 = arith.constant 0 : i32
    %c0_i32_0 = arith.constant 0 : i32
    %c0_i32_1 = arith.constant 0 : i32
    return %c0_i32, %c0_i32_0 : i32, i32
  }
  func.func @transform_10(%arg0: i32) -> (i32, i32) {
    %c0_i32 = arith.constant 0 : i32
    %c0_i32_0 = arith.constant 0 : i32
    %c0_i32_1 = arith.constant 0 : i32
    return %c0_i32, %c0_i32_0 : i32, i32
  }
  func.func @transform_11(%arg0: i32) -> (i32, i32) {
    %c0_i32 = arith.constant 0 : i32
    %c0_i32_0 = arith.constant 0 : i32
    %c0_i32_1 = arith.constant 0 : i32
    return %c0_i32, %c0_i32_0 : i32, i32
  }
  func.func @transform_12(%arg0: i32) -> (i32, i32) {
    %c0_i32 = arith.constant 0 : i32
    %c0_i32_0 = arith.constant 0 : i32
    %c0_i32_1 = arith.constant 0 : i32
    return %c0_i32, %c0_i32_0 : i32, i32
  }
  func.func @transform_13(%arg0: i32) -> (i32, i32) {
    %c0_i32 = arith.constant 0 : i32
    %c0_i32_0 = arith.constant 0 : i32
    %c0_i32_1 = arith.constant 0 : i32
    return %c0_i32, %c0_i32_0 : i32, i32
  }
}

module attributes {stable_mosaic.version = 11 : i64} {
  func.func @_gcn_stack_kernel(%arg0: i32, %arg1: memref<2x8x128xbf16, #tpu.memory_space<vmem>>, %arg2: memref<2x8x8xbf16, #tpu.memory_space<vmem>>, %arg3: memref<256x128xbf16, #tpu.memory_space<vmem>>, %arg4: memref<1x128xf32, #tpu.memory_space<vmem>>, %arg5: memref<256x128xbf16, #tpu.memory_space<vmem>>, %arg6: memref<1x128xf32, #tpu.memory_space<vmem>>, %arg7: memref<256x256xbf16, #tpu.memory_space<vmem>>, %arg8: memref<1x256xf32, #tpu.memory_space<vmem>>, %arg9: memref<512x256xbf16, #tpu.memory_space<vmem>>, %arg10: memref<1x256xf32, #tpu.memory_space<vmem>>, %arg11: memref<256x256xbf16, #tpu.memory_space<vmem>>, %arg12: memref<1x256xf32, #tpu.memory_space<vmem>>, %arg13: memref<256x128xbf16, #tpu.memory_space<vmem>>, %arg14: memref<1x128xf32, #tpu.memory_space<vmem>>, %arg15: memref<2x8x256xf32, #tpu.memory_space<vmem>>, %arg16: memref<2x8x128xf32, #tpu.memory_space<vmem>>) attributes {dimension_semantics = [#tpu.dimension_semantics<parallel>], iteration_bounds = array<i64: 1>, scalar_prefetch = 0 : i64, scratch_operands = 0 : i64, tpu.core_type = #tpu.core_type<tc>, window_params = [{transform_indices = @transform_0, window_bounds = array<i64: 2, 8, 128>}, {transform_indices = @transform_1, window_bounds = array<i64: 2, 8, 8>}, {pipeline_mode = #tpu.pipeline_mode<synchronous>, transform_indices = @transform_2, window_bounds = array<i64: 256, 128>}, {pipeline_mode = #tpu.pipeline_mode<synchronous>, transform_indices = @transform_3, window_bounds = array<i64: 1, 128>}, {pipeline_mode = #tpu.pipeline_mode<synchronous>, transform_indices = @transform_4, window_bounds = array<i64: 256, 128>}, {pipeline_mode = #tpu.pipeline_mode<synchronous>, transform_indices = @transform_5, window_bounds = array<i64: 1, 128>}, {pipeline_mode = #tpu.pipeline_mode<synchronous>, transform_indices = @transform_6, window_bounds = array<i64: 256, 256>}, {pipeline_mode = #tpu.pipeline_mode<synchronous>, transform_indices = @transform_7, window_bounds = array<i64: 1, 256>}, {pipeline_mode = #tpu.pipeline_mode<synchronous>, transform_indices = @transform_8, window_bounds = array<i64: 512, 256>}, {pipeline_mode = #tpu.pipeline_mode<synchronous>, transform_indices = @transform_9, window_bounds = array<i64: 1, 256>}, {pipeline_mode = #tpu.pipeline_mode<synchronous>, transform_indices = @transform_10, window_bounds = array<i64: 256, 256>}, {pipeline_mode = #tpu.pipeline_mode<synchronous>, transform_indices = @transform_11, window_bounds = array<i64: 1, 256>}, {pipeline_mode = #tpu.pipeline_mode<synchronous>, transform_indices = @transform_12, window_bounds = array<i64: 256, 128>}, {pipeline_mode = #tpu.pipeline_mode<synchronous>, transform_indices = @transform_13, window_bounds = array<i64: 1, 128>}, {transform_indices = @transform_14, window_bounds = array<i64: 2, 8, 256>}, {transform_indices = @transform_15, window_bounds = array<i64: 2, 8, 128>}]} {
    %c0 = arith.constant 0 : index
    %c0_0 = arith.constant 0 : index
    %c0_1 = arith.constant 0 : index
    %0 = vector.load %arg1[%c0, %c0_0, %c0_1] : memref<2x8x128xbf16, #tpu.memory_space<vmem>>, vector<2x8x128xbf16>
    %1 = arith.extf %0 : vector<2x8x128xbf16> to vector<2x8x128xf32>
    %c0_2 = arith.constant 0 : index
    %c0_3 = arith.constant 0 : index
    %c0_4 = arith.constant 0 : index
    %2 = vector.load %arg2[%c0_2, %c0_3, %c0_4] : memref<2x8x8xbf16, #tpu.memory_space<vmem>>, vector<2x8x8xbf16>
    %3 = arith.extf %2 : vector<2x8x8xbf16> to vector<2x8x8xf32>
    %4 = vector.extract_strided_slice %3 {offsets = [0, 0, 0], sizes = [2, 8, 1], strides = [1, 1, 1]} : vector<2x8x8xf32> to vector<2x8x1xf32>
    %5 = vector.extract_strided_slice %1 {offsets = [0, 0, 0], sizes = [2, 1, 128], strides = [1, 1, 1]} : vector<2x8x128xf32> to vector<2x1x128xf32>
    %6 = vector.broadcast %4 : vector<2x8x1xf32> to vector<2x8x128xf32>
    %7 = vector.broadcast %5 : vector<2x1x128xf32> to vector<2x8x128xf32>
    %8 = arith.mulf %6, %7 : vector<2x8x128xf32>
    %9 = vector.extract_strided_slice %3 {offsets = [0, 0, 1], sizes = [2, 8, 1], strides = [1, 1, 1]} : vector<2x8x8xf32> to vector<2x8x1xf32>
    %10 = vector.extract_strided_slice %1 {offsets = [0, 1, 0], sizes = [2, 1, 128], strides = [1, 1, 1]} : vector<2x8x128xf32> to vector<2x1x128xf32>
    %11 = vector.broadcast %9 : vector<2x8x1xf32> to vector<2x8x128xf32>
    %12 = vector.broadcast %10 : vector<2x1x128xf32> to vector<2x8x128xf32>
    %13 = arith.mulf %11, %12 : vector<2x8x128xf32>
    %14 = arith.addf %8, %13 : vector<2x8x128xf32>
    %15 = vector.extract_strided_slice %3 {offsets = [0, 0, 2], sizes = [2, 8, 1], strides = [1, 1, 1]} : vector<2x8x8xf32> to vector<2x8x1xf32>
    %16 = vector.extract_strided_slice %1 {offsets = [0, 2, 0], sizes = [2, 1, 128], strides = [1, 1, 1]} : vector<2x8x128xf32> to vector<2x1x128xf32>
    %17 = vector.broadcast %15 : vector<2x8x1xf32> to vector<2x8x128xf32>
    %18 = vector.broadcast %16 : vector<2x1x128xf32> to vector<2x8x128xf32>
    %19 = arith.mulf %17, %18 : vector<2x8x128xf32>
    %20 = arith.addf %14, %19 : vector<2x8x128xf32>
    %21 = vector.extract_strided_slice %3 {offsets = [0, 0, 3], sizes = [2, 8, 1], strides = [1, 1, 1]} : vector<2x8x8xf32> to vector<2x8x1xf32>
    %22 = vector.extract_strided_slice %1 {offsets = [0, 3, 0], sizes = [2, 1, 128], strides = [1, 1, 1]} : vector<2x8x128xf32> to vector<2x1x128xf32>
    %23 = vector.broadcast %21 : vector<2x8x1xf32> to vector<2x8x128xf32>
    %24 = vector.broadcast %22 : vector<2x1x128xf32> to vector<2x8x128xf32>
    %25 = arith.mulf %23, %24 : vector<2x8x128xf32>
    %26 = arith.addf %20, %25 : vector<2x8x128xf32>
    %27 = vector.extract_strided_slice %3 {offsets = [0, 0, 4], sizes = [2, 8, 1], strides = [1, 1, 1]} : vector<2x8x8xf32> to vector<2x8x1xf32>
    %28 = vector.extract_strided_slice %1 {offsets = [0, 4, 0], sizes = [2, 1, 128], strides = [1, 1, 1]} : vector<2x8x128xf32> to vector<2x1x128xf32>
    %29 = vector.broadcast %27 : vector<2x8x1xf32> to vector<2x8x128xf32>
    %30 = vector.broadcast %28 : vector<2x1x128xf32> to vector<2x8x128xf32>
    %31 = arith.mulf %29, %30 : vector<2x8x128xf32>
    %32 = arith.addf %26, %31 : vector<2x8x128xf32>
    %33 = vector.extract_strided_slice %3 {offsets = [0, 0, 5], sizes = [2, 8, 1], strides = [1, 1, 1]} : vector<2x8x8xf32> to vector<2x8x1xf32>
    %34 = vector.extract_strided_slice %1 {offsets = [0, 5, 0], sizes = [2, 1, 128], strides = [1, 1, 1]} : vector<2x8x128xf32> to vector<2x1x128xf32>
    %35 = vector.broadcast %33 : vector<2x8x1xf32> to vector<2x8x128xf32>
    %36 = vector.broadcast %34 : vector<2x1x128xf32> to vector<2x8x128xf32>
    %37 = arith.mulf %35, %36 : vector<2x8x128xf32>
    %38 = arith.addf %32, %37 : vector<2x8x128xf32>
    %39 = vector.extract_strided_slice %3 {offsets = [0, 0, 6], sizes = [2, 8, 1], strides = [1, 1, 1]} : vector<2x8x8xf32> to vector<2x8x1xf32>
    %40 = vector.extract_strided_slice %1 {offsets = [0, 6, 0], sizes = [2, 1, 128], strides = [1, 1, 1]} : vector<2x8x128xf32> to vector<2x1x128xf32>
    %41 = vector.broadcast %39 : vector<2x8x1xf32> to vector<2x8x128xf32>
    %42 = vector.broadcast %40 : vector<2x1x128xf32> to vector<2x8x128xf32>
    %43 = arith.mulf %41, %42 : vector<2x8x128xf32>
    %44 = arith.addf %38, %43 : vector<2x8x128xf32>
    %45 = vector.extract_strided_slice %3 {offsets = [0, 0, 7], sizes = [2, 8, 1], strides = [1, 1, 1]} : vector<2x8x8xf32> to vector<2x8x1xf32>
    %46 = vector.extract_strided_slice %1 {offsets = [0, 7, 0], sizes = [2, 1, 128], strides = [1, 1, 1]} : vector<2x8x128xf32> to vector<2x1x128xf32>
    %47 = vector.broadcast %45 : vector<2x8x1xf32> to vector<2x8x128xf32>
    %48 = vector.broadcast %46 : vector<2x1x128xf32> to vector<2x8x128xf32>
    %49 = arith.mulf %47, %48 : vector<2x8x128xf32>
    %50 = arith.addf %44, %49 : vector<2x8x128xf32>
    %51 = tpu.concatenate %1, %50 in 2 : vector<2x8x128xf32>, vector<2x8x128xf32> -> vector<2x8x256xf32>
    %52 = vector.shape_cast %51 : vector<2x8x256xf32> to vector<16x256xf32>
    %53 = arith.truncf %52 : vector<16x256xf32> to vector<16x256xbf16>
    %c0_5 = arith.constant 0 : index
    %c0_6 = arith.constant 0 : index
    %54 = vector.load %arg3[%c0_5, %c0_6] : memref<256x128xbf16, #tpu.memory_space<vmem>>, vector<256x128xbf16>
    %cst = arith.constant dense<0.000000e+00> : vector<16x128xf32>
    %55 = tpu.matmul %53, %54, %cst {dimension_numbers = #tpu.dot_dimension_numbers<[1], [0], [0], [1], [0, 0, 1, 1], [], []>} : vector<16x256xbf16>, vector<256x128xbf16>, vector<16x128xf32> -> vector<16x128xf32>
    %c0_7 = arith.constant 0 : index
    %c0_8 = arith.constant 0 : index
    %56 = vector.load %arg4[%c0_7, %c0_8] : memref<1x128xf32, #tpu.memory_space<vmem>>, vector<1x128xf32>
    %57 = vector.broadcast %56 : vector<1x128xf32> to vector<16x128xf32>
    %58 = arith.addf %55, %57 : vector<16x128xf32>
    %cst_9 = arith.constant 0.000000e+00 : f32
    %59 = vector.broadcast %cst_9 : f32 to vector<16x128xf32>
    %60 = arith.maximumf %58, %59 : vector<16x128xf32>
    %61 = vector.shape_cast %60 : vector<16x128xf32> to vector<2x8x128xf32>
    %62 = vector.extract_strided_slice %3 {offsets = [0, 0, 0], sizes = [2, 8, 1], strides = [1, 1, 1]} : vector<2x8x8xf32> to vector<2x8x1xf32>
    %63 = vector.extract_strided_slice %61 {offsets = [0, 0, 0], sizes = [2, 1, 128], strides = [1, 1, 1]} : vector<2x8x128xf32> to vector<2x1x128xf32>
    %64 = vector.broadcast %62 : vector<2x8x1xf32> to vector<2x8x128xf32>
    %65 = vector.broadcast %63 : vector<2x1x128xf32> to vector<2x8x128xf32>
    %66 = arith.mulf %64, %65 : vector<2x8x128xf32>
    %67 = vector.extract_strided_slice %3 {offsets = [0, 0, 1], sizes = [2, 8, 1], strides = [1, 1, 1]} : vector<2x8x8xf32> to vector<2x8x1xf32>
    %68 = vector.extract_strided_slice %61 {offsets = [0, 1, 0], sizes = [2, 1, 128], strides = [1, 1, 1]} : vector<2x8x128xf32> to vector<2x1x128xf32>
    %69 = vector.broadcast %67 : vector<2x8x1xf32> to vector<2x8x128xf32>
    %70 = vector.broadcast %68 : vector<2x1x128xf32> to vector<2x8x128xf32>
    %71 = arith.mulf %69, %70 : vector<2x8x128xf32>
    %72 = arith.addf %66, %71 : vector<2x8x128xf32>
    %73 = vector.extract_strided_slice %3 {offsets = [0, 0, 2], sizes = [2, 8, 1], strides = [1, 1, 1]} : vector<2x8x8xf32> to vector<2x8x1xf32>
    %74 = vector.extract_strided_slice %61 {offsets = [0, 2, 0], sizes = [2, 1, 128], strides = [1, 1, 1]} : vector<2x8x128xf32> to vector<2x1x128xf32>
    %75 = vector.broadcast %73 : vector<2x8x1xf32> to vector<2x8x128xf32>
    %76 = vector.broadcast %74 : vector<2x1x128xf32> to vector<2x8x128xf32>
    %77 = arith.mulf %75, %76 : vector<2x8x128xf32>
    %78 = arith.addf %72, %77 : vector<2x8x128xf32>
    %79 = vector.extract_strided_slice %3 {offsets = [0, 0, 3], sizes = [2, 8, 1], strides = [1, 1, 1]} : vector<2x8x8xf32> to vector<2x8x1xf32>
    %80 = vector.extract_strided_slice %61 {offsets = [0, 3, 0], sizes = [2, 1, 128], strides = [1, 1, 1]} : vector<2x8x128xf32> to vector<2x1x128xf32>
    %81 = vector.broadcast %79 : vector<2x8x1xf32> to vector<2x8x128xf32>
    %82 = vector.broadcast %80 : vector<2x1x128xf32> to vector<2x8x128xf32>
    %83 = arith.mulf %81, %82 : vector<2x8x128xf32>
    %84 = arith.addf %78, %83 : vector<2x8x128xf32>
    %85 = vector.extract_strided_slice %3 {offsets = [0, 0, 4], sizes = [2, 8, 1], strides = [1, 1, 1]} : vector<2x8x8xf32> to vector<2x8x1xf32>
    %86 = vector.extract_strided_slice %61 {offsets = [0, 4, 0], sizes = [2, 1, 128], strides = [1, 1, 1]} : vector<2x8x128xf32> to vector<2x1x128xf32>
    %87 = vector.broadcast %85 : vector<2x8x1xf32> to vector<2x8x128xf32>
    %88 = vector.broadcast %86 : vector<2x1x128xf32> to vector<2x8x128xf32>
    %89 = arith.mulf %87, %88 : vector<2x8x128xf32>
    %90 = arith.addf %84, %89 : vector<2x8x128xf32>
    %91 = vector.extract_strided_slice %3 {offsets = [0, 0, 5], sizes = [2, 8, 1], strides = [1, 1, 1]} : vector<2x8x8xf32> to vector<2x8x1xf32>
    %92 = vector.extract_strided_slice %61 {offsets = [0, 5, 0], sizes = [2, 1, 128], strides = [1, 1, 1]} : vector<2x8x128xf32> to vector<2x1x128xf32>
    %93 = vector.broadcast %91 : vector<2x8x1xf32> to vector<2x8x128xf32>
    %94 = vector.broadcast %92 : vector<2x1x128xf32> to vector<2x8x128xf32>
    %95 = arith.mulf %93, %94 : vector<2x8x128xf32>
    %96 = arith.addf %90, %95 : vector<2x8x128xf32>
    %97 = vector.extract_strided_slice %3 {offsets = [0, 0, 6], sizes = [2, 8, 1], strides = [1, 1, 1]} : vector<2x8x8xf32> to vector<2x8x1xf32>
    %98 = vector.extract_strided_slice %61 {offsets = [0, 6, 0], sizes = [2, 1, 128], strides = [1, 1, 1]} : vector<2x8x128xf32> to vector<2x1x128xf32>
    %99 = vector.broadcast %97 : vector<2x8x1xf32> to vector<2x8x128xf32>
    %100 = vector.broadcast %98 : vector<2x1x128xf32> to vector<2x8x128xf32>
    %101 = arith.mulf %99, %100 : vector<2x8x128xf32>
    %102 = arith.addf %96, %101 : vector<2x8x128xf32>
    %103 = vector.extract_strided_slice %3 {offsets = [0, 0, 7], sizes = [2, 8, 1], strides = [1, 1, 1]} : vector<2x8x8xf32> to vector<2x8x1xf32>
    %104 = vector.extract_strided_slice %61 {offsets = [0, 7, 0], sizes = [2, 1, 128], strides = [1, 1, 1]} : vector<2x8x128xf32> to vector<2x1x128xf32>
    %105 = vector.broadcast %103 : vector<2x8x1xf32> to vector<2x8x128xf32>
    %106 = vector.broadcast %104 : vector<2x1x128xf32> to vector<2x8x128xf32>
    %107 = arith.mulf %105, %106 : vector<2x8x128xf32>
    %108 = arith.addf %102, %107 : vector<2x8x128xf32>
    %109 = tpu.concatenate %61, %108 in 2 : vector<2x8x128xf32>, vector<2x8x128xf32> -> vector<2x8x256xf32>
    %110 = vector.shape_cast %109 : vector<2x8x256xf32> to vector<16x256xf32>
    %111 = arith.truncf %110 : vector<16x256xf32> to vector<16x256xbf16>
    %c0_10 = arith.constant 0 : index
    %c0_11 = arith.constant 0 : index
    %112 = vector.load %arg5[%c0_10, %c0_11] : memref<256x128xbf16, #tpu.memory_space<vmem>>, vector<256x128xbf16>
    %cst_12 = arith.constant dense<0.000000e+00> : vector<16x128xf32>
    %113 = tpu.matmul %111, %112, %cst_12 {dimension_numbers = #tpu.dot_dimension_numbers<[1], [0], [0], [1], [0, 0, 1, 1], [], []>} : vector<16x256xbf16>, vector<256x128xbf16>, vector<16x128xf32> -> vector<16x128xf32>
    %c0_13 = arith.constant 0 : index
    %c0_14 = arith.constant 0 : index
    %114 = vector.load %arg6[%c0_13, %c0_14] : memref<1x128xf32, #tpu.memory_space<vmem>>, vector<1x128xf32>
    %115 = vector.broadcast %114 : vector<1x128xf32> to vector<16x128xf32>
    %116 = arith.addf %113, %115 : vector<16x128xf32>
    %cst_15 = arith.constant 0.000000e+00 : f32
    %117 = vector.broadcast %cst_15 : f32 to vector<16x128xf32>
    %118 = arith.maximumf %116, %117 : vector<16x128xf32>
    %119 = vector.shape_cast %118 : vector<16x128xf32> to vector<2x8x128xf32>
    %120 = vector.extract_strided_slice %3 {offsets = [0, 0, 0], sizes = [2, 8, 1], strides = [1, 1, 1]} : vector<2x8x8xf32> to vector<2x8x1xf32>
    %121 = vector.extract_strided_slice %119 {offsets = [0, 0, 0], sizes = [2, 1, 128], strides = [1, 1, 1]} : vector<2x8x128xf32> to vector<2x1x128xf32>
    %122 = vector.broadcast %120 : vector<2x8x1xf32> to vector<2x8x128xf32>
    %123 = vector.broadcast %121 : vector<2x1x128xf32> to vector<2x8x128xf32>
    %124 = arith.mulf %122, %123 : vector<2x8x128xf32>
    %125 = vector.extract_strided_slice %3 {offsets = [0, 0, 1], sizes = [2, 8, 1], strides = [1, 1, 1]} : vector<2x8x8xf32> to vector<2x8x1xf32>
    %126 = vector.extract_strided_slice %119 {offsets = [0, 1, 0], sizes = [2, 1, 128], strides = [1, 1, 1]} : vector<2x8x128xf32> to vector<2x1x128xf32>
    %127 = vector.broadcast %125 : vector<2x8x1xf32> to vector<2x8x128xf32>
    %128 = vector.broadcast %126 : vector<2x1x128xf32> to vector<2x8x128xf32>
    %129 = arith.mulf %127, %128 : vector<2x8x128xf32>
    %130 = arith.addf %124, %129 : vector<2x8x128xf32>
    %131 = vector.extract_strided_slice %3 {offsets = [0, 0, 2], sizes = [2, 8, 1], strides = [1, 1, 1]} : vector<2x8x8xf32> to vector<2x8x1xf32>
    %132 = vector.extract_strided_slice %119 {offsets = [0, 2, 0], sizes = [2, 1, 128], strides = [1, 1, 1]} : vector<2x8x128xf32> to vector<2x1x128xf32>
    %133 = vector.broadcast %131 : vector<2x8x1xf32> to vector<2x8x128xf32>
    %134 = vector.broadcast %132 : vector<2x1x128xf32> to vector<2x8x128xf32>
    %135 = arith.mulf %133, %134 : vector<2x8x128xf32>
    %136 = arith.addf %130, %135 : vector<2x8x128xf32>
    %137 = vector.extract_strided_slice %3 {offsets = [0, 0, 3], sizes = [2, 8, 1], strides = [1, 1, 1]} : vector<2x8x8xf32> to vector<2x8x1xf32>
    %138 = vector.extract_strided_slice %119 {offsets = [0, 3, 0], sizes = [2, 1, 128], strides = [1, 1, 1]} : vector<2x8x128xf32> to vector<2x1x128xf32>
    %139 = vector.broadcast %137 : vector<2x8x1xf32> to vector<2x8x128xf32>
    %140 = vector.broadcast %138 : vector<2x1x128xf32> to vector<2x8x128xf32>
    %141 = arith.mulf %139, %140 : vector<2x8x128xf32>
    %142 = arith.addf %136, %141 : vector<2x8x128xf32>
    %143 = vector.extract_strided_slice %3 {offsets = [0, 0, 4], sizes = [2, 8, 1], strides = [1, 1, 1]} : vector<2x8x8xf32> to vector<2x8x1xf32>
    %144 = vector.extract_strided_slice %119 {offsets = [0, 4, 0], sizes = [2, 1, 128], strides = [1, 1, 1]} : vector<2x8x128xf32> to vector<2x1x128xf32>
    %145 = vector.broadcast %143 : vector<2x8x1xf32> to vector<2x8x128xf32>
    %146 = vector.broadcast %144 : vector<2x1x128xf32> to vector<2x8x128xf32>
    %147 = arith.mulf %145, %146 : vector<2x8x128xf32>
    %148 = arith.addf %142, %147 : vector<2x8x128xf32>
    %149 = vector.extract_strided_slice %3 {offsets = [0, 0, 5], sizes = [2, 8, 1], strides = [1, 1, 1]} : vector<2x8x8xf32> to vector<2x8x1xf32>
    %150 = vector.extract_strided_slice %119 {offsets = [0, 5, 0], sizes = [2, 1, 128], strides = [1, 1, 1]} : vector<2x8x128xf32> to vector<2x1x128xf32>
    %151 = vector.broadcast %149 : vector<2x8x1xf32> to vector<2x8x128xf32>
    %152 = vector.broadcast %150 : vector<2x1x128xf32> to vector<2x8x128xf32>
    %153 = arith.mulf %151, %152 : vector<2x8x128xf32>
    %154 = arith.addf %148, %153 : vector<2x8x128xf32>
    %155 = vector.extract_strided_slice %3 {offsets = [0, 0, 6], sizes = [2, 8, 1], strides = [1, 1, 1]} : vector<2x8x8xf32> to vector<2x8x1xf32>
    %156 = vector.extract_strided_slice %119 {offsets = [0, 6, 0], sizes = [2, 1, 128], strides = [1, 1, 1]} : vector<2x8x128xf32> to vector<2x1x128xf32>
    %157 = vector.broadcast %155 : vector<2x8x1xf32> to vector<2x8x128xf32>
    %158 = vector.broadcast %156 : vector<2x1x128xf32> to vector<2x8x128xf32>
    %159 = arith.mulf %157, %158 : vector<2x8x128xf32>
    %160 = arith.addf %154, %159 : vector<2x8x128xf32>
    %161 = vector.extract_strided_slice %3 {offsets = [0, 0, 7], sizes = [2, 8, 1], strides = [1, 1, 1]} : vector<2x8x8xf32> to vector<2x8x1xf32>
    %162 = vector.extract_strided_slice %119 {offsets = [0, 7, 0], sizes = [2, 1, 128], strides = [1, 1, 1]} : vector<2x8x128xf32> to vector<2x1x128xf32>
    %163 = vector.broadcast %161 : vector<2x8x1xf32> to vector<2x8x128xf32>
    %164 = vector.broadcast %162 : vector<2x1x128xf32> to vector<2x8x128xf32>
    %165 = arith.mulf %163, %164 : vector<2x8x128xf32>
    %166 = arith.addf %160, %165 : vector<2x8x128xf32>
    %167 = tpu.concatenate %119, %166 in 2 : vector<2x8x128xf32>, vector<2x8x128xf32> -> vector<2x8x256xf32>
    %168 = vector.shape_cast %167 : vector<2x8x256xf32> to vector<16x256xf32>
    %169 = arith.truncf %168 : vector<16x256xf32> to vector<16x256xbf16>
    %c0_16 = arith.constant 0 : index
    %c0_17 = arith.constant 0 : index
    %170 = vector.load %arg7[%c0_16, %c0_17] : memref<256x256xbf16, #tpu.memory_space<vmem>>, vector<256x256xbf16>
    %cst_18 = arith.constant dense<0.000000e+00> : vector<16x256xf32>
    %171 = tpu.matmul %169, %170, %cst_18 {dimension_numbers = #tpu.dot_dimension_numbers<[1], [0], [0], [1], [0, 0, 1, 1], [], []>} : vector<16x256xbf16>, vector<256x256xbf16>, vector<16x256xf32> -> vector<16x256xf32>
    %c0_19 = arith.constant 0 : index
    %c0_20 = arith.constant 0 : index
    %172 = vector.load %arg8[%c0_19, %c0_20] : memref<1x256xf32, #tpu.memory_space<vmem>>, vector<1x256xf32>
    %173 = vector.broadcast %172 : vector<1x256xf32> to vector<16x256xf32>
    %174 = arith.addf %171, %173 : vector<16x256xf32>
    %cst_21 = arith.constant 0.000000e+00 : f32
    %175 = vector.broadcast %cst_21 : f32 to vector<16x256xf32>
    %176 = arith.maximumf %174, %175 : vector<16x256xf32>
    %177 = vector.shape_cast %176 : vector<16x256xf32> to vector<2x8x256xf32>
    %178 = vector.extract_strided_slice %3 {offsets = [0, 0, 0], sizes = [2, 8, 1], strides = [1, 1, 1]} : vector<2x8x8xf32> to vector<2x8x1xf32>
    %179 = vector.extract_strided_slice %177 {offsets = [0, 0, 0], sizes = [2, 1, 256], strides = [1, 1, 1]} : vector<2x8x256xf32> to vector<2x1x256xf32>
    %180 = vector.broadcast %178 : vector<2x8x1xf32> to vector<2x8x256xf32>
    %181 = vector.broadcast %179 : vector<2x1x256xf32> to vector<2x8x256xf32>
    %182 = arith.mulf %180, %181 : vector<2x8x256xf32>
    %183 = vector.extract_strided_slice %3 {offsets = [0, 0, 1], sizes = [2, 8, 1], strides = [1, 1, 1]} : vector<2x8x8xf32> to vector<2x8x1xf32>
    %184 = vector.extract_strided_slice %177 {offsets = [0, 1, 0], sizes = [2, 1, 256], strides = [1, 1, 1]} : vector<2x8x256xf32> to vector<2x1x256xf32>
    %185 = vector.broadcast %183 : vector<2x8x1xf32> to vector<2x8x256xf32>
    %186 = vector.broadcast %184 : vector<2x1x256xf32> to vector<2x8x256xf32>
    %187 = arith.mulf %185, %186 : vector<2x8x256xf32>
    %188 = arith.addf %182, %187 : vector<2x8x256xf32>
    %189 = vector.extract_strided_slice %3 {offsets = [0, 0, 2], sizes = [2, 8, 1], strides = [1, 1, 1]} : vector<2x8x8xf32> to vector<2x8x1xf32>
    %190 = vector.extract_strided_slice %177 {offsets = [0, 2, 0], sizes = [2, 1, 256], strides = [1, 1, 1]} : vector<2x8x256xf32> to vector<2x1x256xf32>
    %191 = vector.broadcast %189 : vector<2x8x1xf32> to vector<2x8x256xf32>
    %192 = vector.broadcast %190 : vector<2x1x256xf32> to vector<2x8x256xf32>
    %193 = arith.mulf %191, %192 : vector<2x8x256xf32>
    %194 = arith.addf %188, %193 : vector<2x8x256xf32>
    %195 = vector.extract_strided_slice %3 {offsets = [0, 0, 3], sizes = [2, 8, 1], strides = [1, 1, 1]} : vector<2x8x8xf32> to vector<2x8x1xf32>
    %196 = vector.extract_strided_slice %177 {offsets = [0, 3, 0], sizes = [2, 1, 256], strides = [1, 1, 1]} : vector<2x8x256xf32> to vector<2x1x256xf32>
    %197 = vector.broadcast %195 : vector<2x8x1xf32> to vector<2x8x256xf32>
    %198 = vector.broadcast %196 : vector<2x1x256xf32> to vector<2x8x256xf32>
    %199 = arith.mulf %197, %198 : vector<2x8x256xf32>
    %200 = arith.addf %194, %199 : vector<2x8x256xf32>
    %201 = vector.extract_strided_slice %3 {offsets = [0, 0, 4], sizes = [2, 8, 1], strides = [1, 1, 1]} : vector<2x8x8xf32> to vector<2x8x1xf32>
    %202 = vector.extract_strided_slice %177 {offsets = [0, 4, 0], sizes = [2, 1, 256], strides = [1, 1, 1]} : vector<2x8x256xf32> to vector<2x1x256xf32>
    %203 = vector.broadcast %201 : vector<2x8x1xf32> to vector<2x8x256xf32>
    %204 = vector.broadcast %202 : vector<2x1x256xf32> to vector<2x8x256xf32>
    %205 = arith.mulf %203, %204 : vector<2x8x256xf32>
    %206 = arith.addf %200, %205 : vector<2x8x256xf32>
    %207 = vector.extract_strided_slice %3 {offsets = [0, 0, 5], sizes = [2, 8, 1], strides = [1, 1, 1]} : vector<2x8x8xf32> to vector<2x8x1xf32>
    %208 = vector.extract_strided_slice %177 {offsets = [0, 5, 0], sizes = [2, 1, 256], strides = [1, 1, 1]} : vector<2x8x256xf32> to vector<2x1x256xf32>
    %209 = vector.broadcast %207 : vector<2x8x1xf32> to vector<2x8x256xf32>
    %210 = vector.broadcast %208 : vector<2x1x256xf32> to vector<2x8x256xf32>
    %211 = arith.mulf %209, %210 : vector<2x8x256xf32>
    %212 = arith.addf %206, %211 : vector<2x8x256xf32>
    %213 = vector.extract_strided_slice %3 {offsets = [0, 0, 6], sizes = [2, 8, 1], strides = [1, 1, 1]} : vector<2x8x8xf32> to vector<2x8x1xf32>
    %214 = vector.extract_strided_slice %177 {offsets = [0, 6, 0], sizes = [2, 1, 256], strides = [1, 1, 1]} : vector<2x8x256xf32> to vector<2x1x256xf32>
    %215 = vector.broadcast %213 : vector<2x8x1xf32> to vector<2x8x256xf32>
    %216 = vector.broadcast %214 : vector<2x1x256xf32> to vector<2x8x256xf32>
    %217 = arith.mulf %215, %216 : vector<2x8x256xf32>
    %218 = arith.addf %212, %217 : vector<2x8x256xf32>
    %219 = vector.extract_strided_slice %3 {offsets = [0, 0, 7], sizes = [2, 8, 1], strides = [1, 1, 1]} : vector<2x8x8xf32> to vector<2x8x1xf32>
    %220 = vector.extract_strided_slice %177 {offsets = [0, 7, 0], sizes = [2, 1, 256], strides = [1, 1, 1]} : vector<2x8x256xf32> to vector<2x1x256xf32>
    %221 = vector.broadcast %219 : vector<2x8x1xf32> to vector<2x8x256xf32>
    %222 = vector.broadcast %220 : vector<2x1x256xf32> to vector<2x8x256xf32>
    %223 = arith.mulf %221, %222 : vector<2x8x256xf32>
    %224 = arith.addf %218, %223 : vector<2x8x256xf32>
    %225 = tpu.concatenate %177, %224 in 2 : vector<2x8x256xf32>, vector<2x8x256xf32> -> vector<2x8x512xf32>
    %226 = vector.shape_cast %225 : vector<2x8x512xf32> to vector<16x512xf32>
    %227 = arith.truncf %226 : vector<16x512xf32> to vector<16x512xbf16>
    %c0_22 = arith.constant 0 : index
    %c0_23 = arith.constant 0 : index
    %228 = vector.load %arg9[%c0_22, %c0_23] : memref<512x256xbf16, #tpu.memory_space<vmem>>, vector<512x256xbf16>
    %cst_24 = arith.constant dense<0.000000e+00> : vector<16x256xf32>
    %229 = tpu.matmul %227, %228, %cst_24 {dimension_numbers = #tpu.dot_dimension_numbers<[1], [0], [0], [1], [0, 0, 1, 1], [], []>} : vector<16x512xbf16>, vector<512x256xbf16>, vector<16x256xf32> -> vector<16x256xf32>
    %c0_25 = arith.constant 0 : index
    %c0_26 = arith.constant 0 : index
    %230 = vector.load %arg10[%c0_25, %c0_26] : memref<1x256xf32, #tpu.memory_space<vmem>>, vector<1x256xf32>
    %231 = vector.broadcast %230 : vector<1x256xf32> to vector<16x256xf32>
    %232 = arith.addf %229, %231 : vector<16x256xf32>
    %cst_27 = arith.constant 0.000000e+00 : f32
    %233 = vector.broadcast %cst_27 : f32 to vector<16x256xf32>
    %234 = arith.maximumf %232, %233 : vector<16x256xf32>
    %235 = vector.shape_cast %234 : vector<16x256xf32> to vector<2x8x256xf32>
    %c0_28 = arith.constant 0 : index
    %c0_29 = arith.constant 0 : index
    %c0_30 = arith.constant 0 : index
    %236 = vector.load %arg15[%c0_28, %c0_29, %c0_30] : memref<2x8x256xf32, #tpu.memory_space<vmem>>, vector<2x8x256xf32>
    tpu.vector_store %arg15[%c0_28, %c0_29, %c0_30], %235 {strides = array<i32>} : memref<2x8x256xf32, #tpu.memory_space<vmem>>, vector<2x8x256xf32>,
    %237 = vector.shape_cast %235 : vector<2x8x256xf32> to vector<16x256xf32>
    %238 = arith.truncf %237 : vector<16x256xf32> to vector<16x256xbf16>
    %c0_31 = arith.constant 0 : index
    %c0_32 = arith.constant 0 : index
    %239 = vector.load %arg11[%c0_31, %c0_32] : memref<256x256xbf16, #tpu.memory_space<vmem>>, vector<256x256xbf16>
    %cst_33 = arith.constant dense<0.000000e+00> : vector<16x256xf32>
    %240 = tpu.matmul %238, %239, %cst_33 {dimension_numbers = #tpu.dot_dimension_numbers<[1], [0], [0], [1], [0, 0, 1, 1], [], []>} : vector<16x256xbf16>, vector<256x256xbf16>, vector<16x256xf32> -> vector<16x256xf32>
    %c0_34 = arith.constant 0 : index
    %c0_35 = arith.constant 0 : index
    %241 = vector.load %arg12[%c0_34, %c0_35] : memref<1x256xf32, #tpu.memory_space<vmem>>, vector<1x256xf32>
    %242 = vector.broadcast %241 : vector<1x256xf32> to vector<16x256xf32>
    %243 = arith.addf %240, %242 : vector<16x256xf32>
    %cst_36 = arith.constant 0.000000e+00 : f32
    %244 = vector.broadcast %cst_36 : f32 to vector<16x256xf32>
    %245 = arith.maximumf %243, %244 : vector<16x256xf32>
    %246 = arith.truncf %245 : vector<16x256xf32> to vector<16x256xbf16>
    %c0_37 = arith.constant 0 : index
    %c0_38 = arith.constant 0 : index
    %247 = vector.load %arg13[%c0_37, %c0_38] : memref<256x128xbf16, #tpu.memory_space<vmem>>, vector<256x128xbf16>
    %cst_39 = arith.constant dense<0.000000e+00> : vector<16x128xf32>
    %248 = tpu.matmul %246, %247, %cst_39 {dimension_numbers = #tpu.dot_dimension_numbers<[1], [0], [0], [1], [0, 0, 1, 1], [], []>} : vector<16x256xbf16>, vector<256x128xbf16>, vector<16x128xf32> -> vector<16x128xf32>
    %c0_40 = arith.constant 0 : index
    %c0_41 = arith.constant 0 : index
    %249 = vector.load %arg14[%c0_40, %c0_41] : memref<1x128xf32, #tpu.memory_space<vmem>>, vector<1x128xf32>
    %250 = vector.broadcast %249 : vector<1x128xf32> to vector<16x128xf32>
    %251 = arith.addf %248, %250 : vector<16x128xf32>
    %252 = vector.shape_cast %251 : vector<16x128xf32> to vector<2x8x128xf32>
    %c0_42 = arith.constant 0 : index
    %c0_43 = arith.constant 0 : index
    %c0_44 = arith.constant 0 : index
    %253 = vector.load %arg16[%c0_42, %c0_43, %c0_44] : memref<2x8x128xf32, #tpu.memory_space<vmem>>, vector<2x8x128xf32>
    tpu.vector_store %arg16[%c0_42, %c0_43, %c0_44], %252 {strides = array<i32>} : memref<2x8x128xf32, #tpu.memory_space<vmem>>, vector<2x8x128xf32>,
    return
  }
  func.func @transform_0(%arg0: i32) -> (i32, i32, i32) {
    %c0_i32 = arith.constant 0 : i32
    %c0_i32_0 = arith.constant 0 : i32
    %c0_i32_1 = arith.constant 0 : i32
    return %arg0, %c0_i32, %c0_i32_0 : i32, i32, i32
  }
  func.func @transform_1(%arg0: i32) -> (i32, i32, i32) {
    %c0_i32 = arith.constant 0 : i32
    %c0_i32_0 = arith.constant 0 : i32
    %c0_i32_1 = arith.constant 0 : i32
    return %arg0, %c0_i32, %c0_i32_0 : i32, i32, i32
  }
  func.func @transform_2(%arg0: i32) -> (i32, i32) {
    %c0_i32 = arith.constant 0 : i32
    %c0_i32_0 = arith.constant 0 : i32
    %c0_i32_1 = arith.constant 0 : i32
    return %c0_i32, %c0_i32_0 : i32, i32
  }
  func.func @transform_3(%arg0: i32) -> (i32, i32) {
    %c0_i32 = arith.constant 0 : i32
    %c0_i32_0 = arith.constant 0 : i32
    %c0_i32_1 = arith.constant 0 : i32
    return %c0_i32, %c0_i32_0 : i32, i32
  }
  func.func @transform_4(%arg0: i32) -> (i32, i32) {
    %c0_i32 = arith.constant 0 : i32
    %c0_i32_0 = arith.constant 0 : i32
    %c0_i32_1 = arith.constant 0 : i32
    return %c0_i32, %c0_i32_0 : i32, i32
  }
  func.func @transform_5(%arg0: i32) -> (i32, i32) {
    %c0_i32 = arith.constant 0 : i32
    %c0_i32_0 = arith.constant 0 : i32
    %c0_i32_1 = arith.constant 0 : i32
    return %c0_i32, %c0_i32_0 : i32, i32
  }
  func.func @transform_6(%arg0: i32) -> (i32, i32) {
    %c0_i32 = arith.constant 0 : i32
    %c0_i32_0 = arith.constant 0 : i32
    %c0_i32_1 = arith.constant 0 : i32
    return %c0_i32, %c0_i32_0 : i32, i32
  }
  func.func @transform_7(%arg0: i32) -> (i32, i32) {
    %c0_i32 = arith.constant 0 : i32
    %c0_i32_0 = arith.constant 0 : i32
    %c0_i32_1 = arith.constant 0 : i32
    return %c0_i32, %c0_i32_0 : i32, i32
  }
  func.func @transform_8(%arg0: i32) -> (i32, i32) {
    %c0_i32 = arith.constant 0 : i32
    %c0_i32_0 = arith.constant 0 : i32
    %c0_i32_1 = arith.constant 0 : i32
    return %c0_i32, %c0_i32_0 : i32, i32
  }
  func.func @transform_9(%arg0: i32) -> (i32, i32) {
    %c0_i32 = arith.constant 0 : i32
    %c0_i32_0 = arith.constant 0 : i32
    %c0_i32_1 = arith.constant 0 : i32
    return %c0_i32, %c0_i32_0 : i32, i32
  }
  func.func @transform_10(%arg0: i32) -> (i32, i32) {
    %c0_i32 = arith.constant 0 : i32
    %c0_i32_0 = arith.constant 0 : i32
    %c0_i32_1 = arith.constant 0 : i32
    return %c0_i32, %c0_i32_0 : i32, i32
  }
  func.func @transform_11(%arg0: i32) -> (i32, i32) {
    %c0_i32 = arith.constant 0 : i32
    %c0_i32_0 = arith.constant 0 : i32
    %c0_i32_1 = arith.constant 0 : i32
    return %c0_i32, %c0_i32_0 : i32, i32
  }
  func.func @transform_12(%arg0: i32) -> (i32, i32) {
    %c0_i32 = arith.constant 0 : i32
    %c0_i32_0 = arith.constant 0 : i32
    %c0_i32_1 = arith.constant 0 : i32
    return %c0_i32, %c0_i32_0 : i32, i32
  }
  func.func @transform_13(%arg0: i32) -> (i32, i32) {
    %c0_i32 = arith.constant 0 : i32
    %c0_i32_0 = arith.constant 0 : i32
    %c0_i32_1 = arith.constant 0 : i32
    return %c0_i32, %c0_i32_0 : i32, i32
  }
  func.func @transform_14(%arg0: i32) -> (i32, i32, i32) {
    %c0_i32 = arith.constant 0 : i32
    %c0_i32_0 = arith.constant 0 : i32
    %c0_i32_1 = arith.constant 0 : i32
    return %arg0, %c0_i32, %c0_i32_0 : i32, i32, i32
  }
  func.func @transform_15(%arg0: i32) -> (i32, i32, i32) {
    %c0_i32 = arith.constant 0 : i32
    %c0_i32_0 = arith.constant 0 : i32
    %c0_i32_1 = arith.constant 0 : i32
    return %arg0, %c0_i32, %c0_i32_0 : i32, i32, i32
  }
}

</mosaic_0001>

<llo_original>
// kernel: gcn_forward.2
$region0: #{gcn_forward.2}
  #allocation0 [shape = 'u32[]', space=smem, size = 0x4, offset = 0x4, fixed_abs, tag = 'smem constant byte address 0x4 - core index']
  #allocation1 [shape = 'u32[144,128]{1,0:T(1,128)}', space=vmem, size = 0x12000, scoped, tag = 'internal scratch']
  %s0 = inlined_call_operand.vmem [shape: f32[16,128], index: 0, kind: input, shape index: {}]
  %s1 = inlined_call_operand.hbm [shape: f32[128,128], index: 1, kind: input, shape index: {}]
  %s2 = inlined_call_operand.vmem [shape: f32[1,128], index: 2, kind: input, shape index: {}]
  %s3 = inlined_call_operand.vmem [shape: f32[1,128], index: 3, kind: input, shape index: {}]
  %s4 = inlined_call_operand.hbm [shape: f32[1,128], index: 4, kind: input, shape index: {}]
  %s5 = inlined_call_operand.hbm [shape: f32[128,128], index: 5, kind: input, shape index: {}]
  %s6 = inlined_call_operand.hbm [shape: f32[1,128], index: 6, kind: input, shape index: {}]
  %s7 = inlined_call_operand.vmem [shape: f32[1,128], index: 7, kind: input, shape index: {}]
  %s8 = inlined_call_operand.vmem [shape: f32[1,128], index: 8, kind: input, shape index: {}]
  %s9 = inlined_call_operand.hbm [shape: f32[128,128], index: 9, kind: input, shape index: {}]
  %s10 = inlined_call_operand.hbm [shape: f32[1,128], index: 10, kind: input, shape index: {}]
  %s11 = inlined_call_operand.hbm [shape: f32[1,128], index: 11, kind: input, shape index: {}]
  %s12 = inlined_call_operand.hbm [shape: f32[1,128], index: 12, kind: input, shape index: {}]
  %s13 = inlined_call_operand.vmem [shape: bf16[16,128], index: 13, kind: output, shape index: {}]
  %s14 = sld [smem:[#allocation0]]
  $region94: #{gcn_forward.2} parent=0
    _
  %s16 = ssub.s32 1, %s14
  %s17 = scalar_select 0, %s16, %s14
  $region1: #{gcn_forward.2} parent=0
    #allocation2 [shape = 'u8[65536]{0}', space=vmem, size = 0x10000, scoped, tag = 'input window, operand 1, single buffered']
    #allocation3 [shape = 's32[1]{0}', space=sflag, size = 0x4, scoped, tag = 'scoped memory for gcn_forward.2']
    #allocation4 [shape = 'u8[512]{0}', space=vmem, size = 0x400, scoped, tag = 'input window, operand 4, single buffered']
    #allocation5 [shape = 's32[1]{0}', space=sflag, size = 0x4, scoped, tag = 'scoped memory for gcn_forward.2']
    #allocation6 [shape = 'u8[65536]{0}', space=vmem, size = 0x10000, scoped, tag = 'input window, operand 5, single buffered']
    #allocation7 [shape = 'u8[512]{0}', space=vmem, size = 0x400, scoped, tag = 'input window, operand 6, single buffered']
    #allocation8 [shape = 's32[1]{0}', space=sflag, size = 0x4, scoped, tag = 'scoped memory for gcn_forward.2']
    #allocation9 [shape = 'u8[65536]{0}', space=vmem, size = 0x10000, scoped, tag = 'input window, operand 9, single buffered']
    #allocation10 [shape = 'u8[512]{0}', space=vmem, size = 0x400, scoped, tag = 'input window, operand 10, single buffered']
    #allocation11 [shape = 's32[1]{0}', space=sflag, size = 0x4, scoped, tag = 'scoped memory for gcn_forward.2']
    #allocation12 [shape = 'u8[512]{0}', space=vmem, size = 0x400, scoped, tag = 'input window, operand 11, single buffered']
    #allocation13 [shape = 'u8[512]{0}', space=vmem, size = 0x400, scoped, tag = 'input window, operand 12, single buffered']
    #allocation14 [shape = 's32[1]{0}', space=sflag, size = 0x4, scoped, tag = 'scoped memory for gcn_forward.2']
    %18 = vsyncpa [#allocation3], 0
    %19 = vsyncpa [#allocation5], 0
    %20 = vsyncpa [#allocation8], 0
    %21 = vsyncpa [#allocation11], 0
    %22 = vsyncpa [#allocation14], 0
    // Predicated region
    $region2: #{gcn_forward.2} parent=1 // pred_check
      _
    $region3: #{gcn_forward.2} parent=1 // pred_check_branch
      %24 = sbr.rel (0) target = $region5
    $region4: #{gcn_forward.2} parent=1 // pred_region
      _
    $region5: #{gcn_forward.2} parent=1 // pred_fallthru
      _
    // Predicated region
    $region6: #{gcn_forward.2} parent=1 // pred_check
      _
    $region7: #{gcn_forward.2} parent=1 // pred_check_branch
      %26 = sbr.rel (0) target = $region9
    $region8: #{gcn_forward.2} parent=1 // pred_region
      %s28 = ssub.s32 2048, 2048
      %29 = vsyncadd [#allocation3], %s28
      %s30 = sshll.u32 [#allocation2], 4
      %s31 = int_to_ptr.vmem [resolvable:$true] %s30
      %36 = dma.hbm_to_vmem [thread:$0]  %s1, 2048, %s31, [#allocation3], 128, 128, 8
    $region9: #{gcn_forward.2} parent=1 // pred_fallthru
      _
    // Predicated region
    $region10: #{gcn_forward.2} parent=1 // pred_check
      _
    $region11: #{gcn_forward.2} parent=1 // pred_check_branch
      %38 = sbr.rel (0) target = $region13
    $region12: #{gcn_forward.2} parent=1 // pred_region
      _
    $region13: #{gcn_forward.2} parent=1 // pred_fallthru
      _
    // Predicated region
    $region14: #{gcn_forward.2} parent=1 // pred_check
      _
    $region15: #{gcn_forward.2} parent=1 // pred_check_branch
      %40 = sbr.rel (0) target = $region17
    $region16: #{gcn_forward.2} parent=1 // pred_region
      _
    $region17: #{gcn_forward.2} parent=1 // pred_fallthru
      _
    // Predicated region
    $region18: #{gcn_forward.2} parent=1 // pred_check
      _
    $region19: #{gcn_forward.2} parent=1 // pred_check_branch
      %42 = sbr.rel (0) target = $region21
    $region20: #{gcn_forward.2} parent=1 // pred_region
      %s44 = ssub.s32 16, 16
      %45 = vsyncadd [#allocation5], %s44
      %s47 = sshll.u32 [#allocation4], 4
      %s48 = int_to_ptr.vmem [resolvable:$true] %s47
      %50 = dma.hbm_to_vmem [thread:$0]  %s4, 16, %s48, [#allocation5]
    $region21: #{gcn_forward.2} parent=1 // pred_fallthru
      _
    // Predicated region
    $region22: #{gcn_forward.2} parent=1 // pred_check
      _
    $region23: #{gcn_forward.2} parent=1 // pred_check_branch
      %52 = sbr.rel (0) target = $region25
    $region24: #{gcn_forward.2} parent=1 // pred_region
      %s54 = ssub.s32 2048, 2048
      %55 = vsyncadd [#allocation5], %s54
      %s56 = sshll.u32 [#allocation6], 4
      %s57 = int_to_ptr.vmem [resolvable:$true] %s56
      %62 = dma.hbm_to_vmem [thread:$0]  %s5, 2048, %s57, [#allocation5], 128, 128, 8
    $region25: #{gcn_forward.2} parent=1 // pred_fallthru
      _
    // Predicated region
    $region26: #{gcn_forward.2} parent=1 // pred_check
      _
    $region27: #{gcn_forward.2} parent=1 // pred_check_branch
      %64 = sbr.rel (0) target = $region29
    $region28: #{gcn_forward.2} parent=1 // pred_region
      %s66 = ssub.s32 16, 16
      %67 = vsyncadd [#allocation8], %s66
      %s69 = sshll.u32 [#allocation7], 4
      %s70 = int_to_ptr.vmem [resolvable:$true] %s69
      %72 = dma.hbm_to_vmem [thread:$0]  %s6, 16, %s70, [#allocation8]
    $region29: #{gcn_forward.2} parent=1 // pred_fallthru
      _
    // Predicated region
    $region30: #{gcn_forward.2} parent=1 // pred_check
      _
    $region31: #{gcn_forward.2} parent=1 // pred_check_branch
      %74 = sbr.rel (0) target = $region33
    $region32: #{gcn_forward.2} parent=1 // pred_region
      _
    $region33: #{gcn_forward.2} parent=1 // pred_fallthru
      _
    // Predicated region
    $region34: #{gcn_forward.2} parent=1 // pred_check
      _
    $region35: #{gcn_forward.2} parent=1 // pred_check_branch
      %76 = sbr.rel (0) target = $region37
    $region36: #{gcn_forward.2} parent=1 // pred_region
      _
    $region37: #{gcn_forward.2} parent=1 // pred_fallthru
      _
    // Predicated region
    $region38: #{gcn_forward.2} parent=1 // pred_check
      _
    $region39: #{gcn_forward.2} parent=1 // pred_check_branch
      %78 = sbr.rel (0) target = $region41
    $region40: #{gcn_forward.2} parent=1 // pred_region
      %s80 = ssub.s32 2048, 2048
      %81 = vsyncadd [#allocation8], %s80
      %s82 = sshll.u32 [#allocation9], 4
      %s83 = int_to_ptr.vmem [resolvable:$true] %s82
      %88 = dma.hbm_to_vmem [thread:$0]  %s9, 2048, %s83, [#allocation8], 128, 128, 8
    $region41: #{gcn_forward.2} parent=1 // pred_fallthru
      _
    // Predicated region
    $region42: #{gcn_forward.2} parent=1 // pred_check
      _
    $region43: #{gcn_forward.2} parent=1 // pred_check_branch
      %90 = sbr.rel (0) target = $region45
    $region44: #{gcn_forward.2} parent=1 // pred_region
      %s92 = ssub.s32 16, 16
      %93 = vsyncadd [#allocation11], %s92
      %s95 = sshll.u32 [#allocation10], 4
      %s96 = int_to_ptr.vmem [resolvable:$true] %s95
      %98 = dma.hbm_to_vmem [thread:$0]  %s10, 16, %s96, [#allocation11]
    $region45: #{gcn_forward.2} parent=1 // pred_fallthru
      _
    // Predicated region
    $region46: #{gcn_forward.2} parent=1 // pred_check
      _
    $region47: #{gcn_forward.2} parent=1 // pred_check_branch
      %100 = sbr.rel (0) target = $region49
    $region48: #{gcn_forward.2} parent=1 // pred_region
      %s102 = ssub.s32 16, 16
      %103 = vsyncadd [#allocation11], %s102
      %s105 = sshll.u32 [#allocation12], 4
      %s106 = int_to_ptr.vmem [resolvable:$true] %s105
      %108 = dma.hbm_to_vmem [thread:$0]  %s11, 16, %s106, [#allocation11]
    $region49: #{gcn_forward.2} parent=1 // pred_fallthru
      _
    // Predicated region
    $region50: #{gcn_forward.2} parent=1 // pred_check
      _
    $region51: #{gcn_forward.2} parent=1 // pred_check_branch
      %110 = sbr.rel (0) target = $region53
    $region52: #{gcn_forward.2} parent=1 // pred_region
      %s112 = ssub.s32 16, 16
      %113 = vsyncadd [#allocation14], %s112
      %s115 = sshll.u32 [#allocation13], 4
      %s116 = int_to_ptr.vmem [resolvable:$true] %s115
      %118 = dma.hbm_to_vmem [thread:$0]  %s12, 16, %s116, [#allocation14]
    $region53: #{gcn_forward.2} parent=1 // pred_fallthru
      _
    // Predicated region
    $region54: #{gcn_forward.2} parent=1 // pred_check
      _
    $region55: #{gcn_forward.2} parent=1 // pred_check_branch
      %120 = sbr.rel (0) target = $region57
    $region56: #{gcn_forward.2} parent=1 // pred_region
      %121 = dma.done [#allocation3], 2048
    $region57: #{gcn_forward.2} parent=1 // pred_fallthru
      _
    // Predicated region
    $region58: #{gcn_forward.2} parent=1 // pred_check
      _
    $region59: #{gcn_forward.2} parent=1 // pred_check_branch
      %123 = sbr.rel (0) target = $region61
    $region60: #{gcn_forward.2} parent=1 // pred_region
      %124 = dma.done [#allocation5], 16
    $region61: #{gcn_forward.2} parent=1 // pred_fallthru
      _
    // Predicated region
    $region62: #{gcn_forward.2} parent=1 // pred_check
      _
    $region63: #{gcn_forward.2} parent=1 // pred_check_branch
      %126 = sbr.rel (0) target = $region65
    $region64: #{gcn_forward.2} parent=1 // pred_region
      %127 = dma.done [#allocation5], 2048
    $region65: #{gcn_forward.2} parent=1 // pred_fallthru
      _
    // Predicated region
    $region66: #{gcn_forward.2} parent=1 // pred_check
      _
    $region67: #{gcn_forward.2} parent=1 // pred_check_branch
      %129 = sbr.rel (0) target = $region69
    $region68: #{gcn_forward.2} parent=1 // pred_region
      %130 = dma.done [#allocation8], 16
    $region69: #{gcn_forward.2} parent=1 // pred_fallthru
      _
    // Predicated region
    $region70: #{gcn_forward.2} parent=1 // pred_check
      _
    $region71: #{gcn_forward.2} parent=1 // pred_check_branch
      %132 = sbr.rel (0) target = $region73
    $region72: #{gcn_forward.2} parent=1 // pred_region
      %133 = dma.done [#allocation8], 2048
    $region73: #{gcn_forward.2} parent=1 // pred_fallthru
      _
    // Predicated region
    $region74: #{gcn_forward.2} parent=1 // pred_check
      _
    $region75: #{gcn_forward.2} parent=1 // pred_check_branch
      %135 = sbr.rel (0) target = $region77
    $region76: #{gcn_forward.2} parent=1 // pred_region
      %136 = dma.done [#allocation11], 16
    $region77: #{gcn_forward.2} parent=1 // pred_fallthru
      _
    // Predicated region
    $region78: #{gcn_forward.2} parent=1 // pred_check
      _
    $region79: #{gcn_forward.2} parent=1 // pred_check_branch
      %138 = sbr.rel (0) target = $region81
    $region80: #{gcn_forward.2} parent=1 // pred_region
      %139 = dma.done [#allocation11], 16
    $region81: #{gcn_forward.2} parent=1 // pred_fallthru
      _
    // Predicated region
    $region82: #{gcn_forward.2} parent=1 // pred_check
      _
    $region83: #{gcn_forward.2} parent=1 // pred_check_branch
      %141 = sbr.rel (0) target = $region85
    $region84: #{gcn_forward.2} parent=1 // pred_region
      %142 = dma.done [#allocation14], 16
    $region85: #{gcn_forward.2} parent=1 // pred_fallthru
      _
    %v143 = vld [vmem:[%s0] sm:$0xff]
    %v144 = vld [vmem:[%s0 + $0x8] sm:$0xff]
    %v145 = vld [vmem:[#allocation2] sm:$0xff]
    %v146 = vld [vmem:[#allocation2 + $0x8] sm:$0xff]
    %v147 = vld [vmem:[#allocation2 + $0x10] sm:$0xff]
    %v148 = vld [vmem:[#allocation2 + $0x18] sm:$0xff]
    %v149 = vld [vmem:[#allocation2 + $0x20] sm:$0xff]
    %v150 = vld [vmem:[#allocation2 + $0x28] sm:$0xff]
    %v151 = vld [vmem:[#allocation2 + $0x30] sm:$0xff]
    %v152 = vld [vmem:[#allocation2 + $0x38] sm:$0xff]
    %v153 = vld [vmem:[#allocation2 + $0x40] sm:$0xff]
    %v154 = vld [vmem:[#allocation2 + $0x48] sm:$0xff]
    %v155 = vld [vmem:[#allocation2 + $0x50] sm:$0xff]
    %v156 = vld [vmem:[#allocation2 + $0x58] sm:$0xff]
    %v157 = vld [vmem:[#allocation2 + $0x60] sm:$0xff]
    %v158 = vld [vmem:[#allocation2 + $0x68] sm:$0xff]
    %v159 = vld [vmem:[#allocation2 + $0x70] sm:$0xff]
    %v160 = vld [vmem:[#allocation2 + $0x78] sm:$0xff]
    %v161 = vld [vmem:[%s2] sm:$0x1]
    %v163 = vlaneseq
    %v164 = vshrl.u32 %v163, 7
    %v165 = vsub.s32 0, %v164
    %v166 = vrot.slane %v161, %v165
    %168 = vmatprep.subr.mxu0 0.0
    %169 = vmatpush1.msra.mxu0 %v145
    %170 = vmatprep.subr.mxu0 0.0
    %171 = vmatpush1.msra.mxu0 %v146
    %172 = vmatprep.subr.mxu0 0.0
    %173 = vmatpush1.msra.mxu0 %v147
    %174 = vmatprep.subr.mxu0 0.0
    %175 = vmatpush1.msra.mxu0 %v148
    %176 = vmatprep.subr.mxu0 0.0
    %177 = vmatpush1.msra.mxu0 %v149
    %178 = vmatprep.subr.mxu0 0.0
    %179 = vmatpush1.msra.mxu0 %v150
    %180 = vmatprep.subr.mxu0 0.0
    %181 = vmatpush1.msra.mxu0 %v151
    %182 = vmatprep.subr.mxu0 0.0
    %183 = vmatpush1.msra.mxu0 %v152
    %184 = vmatprep.subr.mxu0 0.0
    %185 = vmatpush1.msra.mxu0 %v153
    %186 = vmatprep.subr.mxu0 0.0
    %187 = vmatpush1.msra.mxu0 %v154
    %188 = vmatprep.subr.mxu0 0.0
    %189 = vmatpush1.msra.mxu0 %v155
    %190 = vmatprep.subr.mxu0 0.0
    %191 = vmatpush1.msra.mxu0 %v156
    %192 = vmatprep.subr.mxu0 0.0
    %193 = vmatpush1.msra.mxu0 %v157
    %194 = vmatprep.subr.mxu0 0.0
    %195 = vmatpush1.msra.mxu0 %v158
    %196 = vmatprep.subr.mxu0 0.0
    %197 = vmatpush1.msra.mxu0 %v159
    %198 = vmatprep.subr.mxu0 0.0
    %199 = vmatpush1.msra.mxu0 %v160
    %200 = vmatprep.subr.mxu0 0.0
    %201 = vmatpush1.msra.mxu0 0.0
    %202 = vmatprep.subr.mxu0 0.0
    %203 = vmatpush1.msra.mxu0 0.0
    %204 = vmatprep.subr.mxu0 0.0
    %205 = vmatpush1.msra.mxu0 0.0
    %206 = vmatprep.subr.mxu0 0.0
    %207 = vmatpush1.msra.mxu0 0.0
    %208 = vmatprep.subr.mxu0 0.0
    %209 = vmatpush1.msra.mxu0 0.0
    %210 = vmatprep.subr.mxu0 0.0
    %211 = vmatpush1.msra.mxu0 0.0
    %212 = vmatprep.subr.mxu0 0.0
    %213 = vmatpush1.msra.mxu0 0.0
    %214 = vmatprep.subr.mxu0 0.0
    %215 = vmatpush1.msra.mxu0 0.0
    %216 = vmatprep.subr.mxu0 0.0
    %217 = vmatpush1.msra.mxu0 0.0
    %218 = vmatprep.subr.mxu0 0.0
    %219 = vmatpush1.msra.mxu0 0.0
    %220 = vmatprep.subr.mxu0 0.0
    %221 = vmatpush1.msra.mxu0 0.0
    %222 = vmatprep.subr.mxu0 0.0
    %223 = vmatpush1.msra.mxu0 0.0
    %224 = vmatprep.subr.mxu0 0.0
    %225 = vmatpush1.msra.mxu0 0.0
    %226 = vmatprep.subr.mxu0 0.0
    %227 = vmatpush1.msra.mxu0 0.0
    %228 = vmatprep.subr.mxu0 0.0
    %229 = vmatpush1.msra.mxu0 0.0
    %230 = vmatprep.subr.mxu0 0.0
    %231 = vmatpush1.msra.mxu0 0.0
    %232 = vmatprep.mubr.f32.mxu0 0.0
    %233 = vmatmul.mubr.f32.gmra.mrb[0].mxu0 %v143
    %v234 = vpop.f32.mrb[0].mxu0
    %v235 = vadd.f32 %v166, %v234
    %v236 = vpop.f32.mrb[0].mxu0
    %237 = vmatprep.mubr.f32.mxu0 0.0
    %238 = vmatmul.mubr.f32.gmra.mrb[0].mxu0 %v144
    %v239 = vpop.f32.mrb[0].mxu0
    %v240 = vadd.f32 %v166, %v239
    %v241 = vpop.f32.mrb[0].mxu0
    %242 = vdwg.mxu0
    %v243 = vadd.f32 %v235, %v240
    %v244 = vrot.slane %v243, 4
    %v245 = vadd.f32 %v243, %v244
    %v246 = vrot.slane %v245, 2
    %v247 = vadd.f32 %v245, %v246
    %v248 = vrot.slane %v247, 1
    %v249 = vadd.f32 %v247, %v248
    %v250 = vrcp.pop 16.0
    %v251 = vmul.f32 %v249, %v250
    %v252 = vsub.f32 %v235, %v251
    %v253 = vsub.f32 %v240, %v251
    %v254 = vmul.f32 %v252, %v252
    %v255 = vmul.f32 %v253, %v253
    %v256 = vadd.f32 %v254, %v255
    %v257 = vrot.slane %v256, 4
    %v258 = vadd.f32 %v256, %v257
    %v259 = vrot.slane %v258, 2
    %v260 = vadd.f32 %v258, %v259
    %v261 = vrot.slane %v260, 1
    %v262 = vadd.f32 %v260, %v261
    %v263 = vmul.f32 %v262, %v250
    %v264 = vadd.f32 %v263, 1e-05
    %v265 = vrsqrt.pop %v264
    %v266 = vmul.f32 %v252, %v265
    %v267 = vmul.f32 %v253, %v265
    %v268 = vld [vmem:[%s3] sm:$0x1]
    %v270 = vlaneseq
    %v271 = vshrl.u32 %v270, 7
    %v272 = vsub.s32 0, %v271
    %v273 = vrot.slane %v268, %v272
    %v275 = vmul.f32 %v266, %v273
    %v276 = vmul.f32 %v267, %v273
    %v277 = vld [vmem:[#allocation4] sm:$0x1]
    %v279 = vlaneseq
    %v280 = vshrl.u32 %v279, 7
    %v281 = vsub.s32 0, %v280
    %v282 = vrot.slane %v277, %v281
    %v284 = vadd.f32 %v275, %v282
    %v285 = vadd.f32 %v276, %v282
    %v286 = vmax.f32 %v284, 0.0
    %v287 = vmax.f32 %v285, 0.0
    %v288 = vld [vmem:[#allocation6] sm:$0xff]
    %v289 = vld [vmem:[#allocation6 + $0x8] sm:$0xff]
    %v290 = vld [vmem:[#allocation6 + $0x10] sm:$0xff]
    %v291 = vld [vmem:[#allocation6 + $0x18] sm:$0xff]
    %v292 = vld [vmem:[#allocation6 + $0x20] sm:$0xff]
    %v293 = vld [vmem:[#allocation6 + $0x28] sm:$0xff]
    %v294 = vld [vmem:[#allocation6 + $0x30] sm:$0xff]
    %v295 = vld [vmem:[#allocation6 + $0x38] sm:$0xff]
    %v296 = vld [vmem:[#allocation6 + $0x40] sm:$0xff]
    %v297 = vld [vmem:[#allocation6 + $0x48] sm:$0xff]
    %v298 = vld [vmem:[#allocation6 + $0x50] sm:$0xff]
    %v299 = vld [vmem:[#allocation6 + $0x58] sm:$0xff]
    %v300 = vld [vmem:[#allocation6 + $0x60] sm:$0xff]
    %v301 = vld [vmem:[#allocation6 + $0x68] sm:$0xff]
    %v302 = vld [vmem:[#allocation6 + $0x70] sm:$0xff]
    %v303 = vld [vmem:[#allocation6 + $0x78] sm:$0xff]
    %v304 = vld [vmem:[#allocation7] sm:$0x1]
    %v306 = vlaneseq
    %v307 = vshrl.u32 %v306, 7
    %v308 = vsub.s32 0, %v307
    %v309 = vrot.slane %v304, %v308
    %311 = vmatprep.subr.mxu0 0.0
    %312 = vmatpush1.msra.mxu0 %v288
    %313 = vmatprep.subr.mxu0 0.0
    %314 = vmatpush1.msra.mxu0 %v289
    %315 = vmatprep.subr.mxu0 0.0
    %316 = vmatpush1.msra.mxu0 %v290
    %317 = vmatprep.subr.mxu0 0.0
    %318 = vmatpush1.msra.mxu0 %v291
    %319 = vmatprep.subr.mxu0 0.0
    %320 = vmatpush1.msra.mxu0 %v292
    %321 = vmatprep.subr.mxu0 0.0
    %322 = vmatpush1.msra.mxu0 %v293
    %323 = vmatprep.subr.mxu0 0.0
    %324 = vmatpush1.msra.mxu0 %v294
    %325 = vmatprep.subr.mxu0 0.0
    %326 = vmatpush1.msra.mxu0 %v295
    %327 = vmatprep.subr.mxu0 0.0
    %328 = vmatpush1.msra.mxu0 %v296
    %329 = vmatprep.subr.mxu0 0.0
    %330 = vmatpush1.msra.mxu0 %v297
    %331 = vmatprep.subr.mxu0 0.0
    %332 = vmatpush1.msra.mxu0 %v298
    %333 = vmatprep.subr.mxu0 0.0
    %334 = vmatpush1.msra.mxu0 %v299
    %335 = vmatprep.subr.mxu0 0.0
    %336 = vmatpush1.msra.mxu0 %v300
    %337 = vmatprep.subr.mxu0 0.0
    %338 = vmatpush1.msra.mxu0 %v301
    %339 = vmatprep.subr.mxu0 0.0
    %340 = vmatpush1.msra.mxu0 %v302
    %341 = vmatprep.subr.mxu0 0.0
    %342 = vmatpush1.msra.mxu0 %v303
    %343 = vmatprep.subr.mxu0 0.0
    %344 = vmatpush1.msra.mxu0 0.0
    %345 = vmatprep.subr.mxu0 0.0
    %346 = vmatpush1.msra.mxu0 0.0
    %347 = vmatprep.subr.mxu0 0.0
    %348 = vmatpush1.msra.mxu0 0.0
    %349 = vmatprep.subr.mxu0 0.0
    %350 = vmatpush1.msra.mxu0 0.0
    %351 = vmatprep.subr.mxu0 0.0
    %352 = vmatpush1.msra.mxu0 0.0
    %353 = vmatprep.subr.mxu0 0.0
    %354 = vmatpush1.msra.mxu0 0.0
    %355 = vmatprep.subr.mxu0 0.0
    %356 = vmatpush1.msra.mxu0 0.0
    %357 = vmatprep.subr.mxu0 0.0
    %358 = vmatpush1.msra.mxu0 0.0
    %359 = vmatprep.subr.mxu0 0.0
    %360 = vmatpush1.msra.mxu0 0.0
    %361 = vmatprep.subr.mxu0 0.0
    %362 = vmatpush1.msra.mxu0 0.0
    %363 = vmatprep.subr.mxu0 0.0
    %364 = vmatpush1.msra.mxu0 0.0
    %365 = vmatprep.subr.mxu0 0.0
    %366 = vmatpush1.msra.mxu0 0.0
    %367 = vmatprep.subr.mxu0 0.0
    %368 = vmatpush1.msra.mxu0 0.0
    %369 = vmatprep.subr.mxu0 0.0
    %370 = vmatpush1.msra.mxu0 0.0
    %371 = vmatprep.subr.mxu0 0.0
    %372 = vmatpush1.msra.mxu0 0.0
    %373 = vmatprep.subr.mxu0 0.0
    %374 = vmatpush1.msra.mxu0 0.0
    %375 = vmatprep.mubr.f32.mxu0 0.0
    %376 = vmatmul.mubr.f32.gmra.mrb[0].mxu0 %v286
    %v377 = vpop.f32.mrb[0].mxu0
    %v378 = vadd.f32 %v309, %v377
    %v379 = vpop.f32.mrb[0].mxu0
    %380 = vmatprep.mubr.f32.mxu0 0.0
    %381 = vmatmul.mubr.f32.gmra.mrb[0].mxu0 %v287
    %v382 = vpop.f32.mrb[0].mxu0
    %v383 = vadd.f32 %v309, %v382
    %v384 = vpop.f32.mrb[0].mxu0
    %385 = vdwg.mxu0
    %v386 = vadd.f32 %v378, %v383
    %v387 = vrot.slane %v386, 4
    %v388 = vadd.f32 %v386, %v387
    %v389 = vrot.slane %v388, 2
    %v390 = vadd.f32 %v388, %v389
    %v391 = vrot.slane %v390, 1
    %v392 = vadd.f32 %v390, %v391
    %v393 = vmul.f32 %v392, %v250
    %v394 = vsub.f32 %v378, %v393
    %v395 = vsub.f32 %v383, %v393
    %v396 = vmul.f32 %v394, %v394
    %v397 = vmul.f32 %v395, %v395
    %v398 = vadd.f32 %v396, %v397
    %v399 = vrot.slane %v398, 4
    %v400 = vadd.f32 %v398, %v399
    %v401 = vrot.slane %v400, 2
    %v402 = vadd.f32 %v400, %v401
    %v403 = vrot.slane %v402, 1
    %v404 = vadd.f32 %v402, %v403
    %v405 = vmul.f32 %v404, %v250
    %v406 = vadd.f32 %v405, 1e-05
    %v407 = vrsqrt.pop %v406
    %v408 = vmul.f32 %v394, %v407
    %v409 = vmul.f32 %v395, %v407
    %v410 = vld [vmem:[%s7] sm:$0x1]
    %v412 = vlaneseq
    %v413 = vshrl.u32 %v412, 7
    %v414 = vsub.s32 0, %v413
    %v415 = vrot.slane %v410, %v414
    %v417 = vmul.f32 %v408, %v415
    %v418 = vmul.f32 %v409, %v415
    %v419 = vld [vmem:[%s8] sm:$0x1]
    %v421 = vlaneseq
    %v422 = vshrl.u32 %v421, 7
    %v423 = vsub.s32 0, %v422
    %v424 = vrot.slane %v419, %v423
    %v426 = vadd.f32 %v417, %v424
    %v427 = vadd.f32 %v418, %v424
    %v428 = vmax.f32 %v426, 0.0
    %v429 = vmax.f32 %v427, 0.0
    %v430 = vld [vmem:[#allocation9] sm:$0xff]
    %v431 = vld [vmem:[#allocation9 + $0x8] sm:$0xff]
    %v432 = vld [vmem:[#allocation9 + $0x10] sm:$0xff]
    %v433 = vld [vmem:[#allocation9 + $0x18] sm:$0xff]
    %v434 = vld [vmem:[#allocation9 + $0x20] sm:$0xff]
    %v435 = vld [vmem:[#allocation9 + $0x28] sm:$0xff]
    %v436 = vld [vmem:[#allocation9 + $0x30] sm:$0xff]
    %v437 = vld [vmem:[#allocation9 + $0x38] sm:$0xff]
    %v438 = vld [vmem:[#allocation9 + $0x40] sm:$0xff]
    %v439 = vld [vmem:[#allocation9 + $0x48] sm:$0xff]
    %v440 = vld [vmem:[#allocation9 + $0x50] sm:$0xff]
    %v441 = vld [vmem:[#allocation9 + $0x58] sm:$0xff]
    %v442 = vld [vmem:[#allocation9 + $0x60] sm:$0xff]
    %v443 = vld [vmem:[#allocation9 + $0x68] sm:$0xff]
    %v444 = vld [vmem:[#allocation9 + $0x70] sm:$0xff]
    %v445 = vld [vmem:[#allocation9 + $0x78] sm:$0xff]
    %v446 = vld [vmem:[#allocation10] sm:$0x1]
    %v448 = vlaneseq
    %v449 = vshrl.u32 %v448, 7
    %v450 = vsub.s32 0, %v449
    %v451 = vrot.slane %v446, %v450
    %453 = vmatprep.subr.mxu0 0.0
    %454 = vmatpush1.msra.mxu0 %v430
    %455 = vmatprep.subr.mxu0 0.0
    %456 = vmatpush1.msra.mxu0 %v431
    %457 = vmatprep.subr.mxu0 0.0
    %458 = vmatpush1.msra.mxu0 %v432
    %459 = vmatprep.subr.mxu0 0.0
    %460 = vmatpush1.msra.mxu0 %v433
    %461 = vmatprep.subr.mxu0 0.0
    %462 = vmatpush1.msra.mxu0 %v434
    %463 = vmatprep.subr.mxu0 0.0
    %464 = vmatpush1.msra.mxu0 %v435
    %465 = vmatprep.subr.mxu0 0.0
    %466 = vmatpush1.msra.mxu0 %v436
    %467 = vmatprep.subr.mxu0 0.0
    %468 = vmatpush1.msra.mxu0 %v437
    %469 = vmatprep.subr.mxu0 0.0
    %470 = vmatpush1.msra.mxu0 %v438
    %471 = vmatprep.subr.mxu0 0.0
    %472 = vmatpush1.msra.mxu0 %v439
    %473 = vmatprep.subr.mxu0 0.0
    %474 = vmatpush1.msra.mxu0 %v440
    %475 = vmatprep.subr.mxu0 0.0
    %476 = vmatpush1.msra.mxu0 %v441
    %477 = vmatprep.subr.mxu0 0.0
    %478 = vmatpush1.msra.mxu0 %v442
    %479 = vmatprep.subr.mxu0 0.0
    %480 = vmatpush1.msra.mxu0 %v443
    %481 = vmatprep.subr.mxu0 0.0
    %482 = vmatpush1.msra.mxu0 %v444
    %483 = vmatprep.subr.mxu0 0.0
    %484 = vmatpush1.msra.mxu0 %v445
    %485 = vmatprep.subr.mxu0 0.0
    %486 = vmatpush1.msra.mxu0 0.0
    %487 = vmatprep.subr.mxu0 0.0
    %488 = vmatpush1.msra.mxu0 0.0
    %489 = vmatprep.subr.mxu0 0.0
    %490 = vmatpush1.msra.mxu0 0.0
    %491 = vmatprep.subr.mxu0 0.0
    %492 = vmatpush1.msra.mxu0 0.0
    %493 = vmatprep.subr.mxu0 0.0
    %494 = vmatpush1.msra.mxu0 0.0
    %495 = vmatprep.subr.mxu0 0.0
    %496 = vmatpush1.msra.mxu0 0.0
    %497 = vmatprep.subr.mxu0 0.0
    %498 = vmatpush1.msra.mxu0 0.0
    %499 = vmatprep.subr.mxu0 0.0
    %500 = vmatpush1.msra.mxu0 0.0
    %501 = vmatprep.subr.mxu0 0.0
    %502 = vmatpush1.msra.mxu0 0.0
    %503 = vmatprep.subr.mxu0 0.0
    %504 = vmatpush1.msra.mxu0 0.0
    %505 = vmatprep.subr.mxu0 0.0
    %506 = vmatpush1.msra.mxu0 0.0
    %507 = vmatprep.subr.mxu0 0.0
    %508 = vmatpush1.msra.mxu0 0.0
    %509 = vmatprep.subr.mxu0 0.0
    %510 = vmatpush1.msra.mxu0 0.0
    %511 = vmatprep.subr.mxu0 0.0
    %512 = vmatpush1.msra.mxu0 0.0
    %513 = vmatprep.subr.mxu0 0.0
    %514 = vmatpush1.msra.mxu0 0.0
    %515 = vmatprep.subr.mxu0 0.0
    %516 = vmatpush1.msra.mxu0 0.0
    %517 = vmatprep.mubr.f32.mxu0 0.0
    %518 = vmatmul.mubr.f32.gmra.mrb[0].mxu0 %v428
    %v519 = vpop.f32.mrb[0].mxu0
    %v520 = vadd.f32 %v451, %v519
    %v521 = vpop.f32.mrb[0].mxu0
    %522 = vmatprep.mubr.f32.mxu0 0.0
    %523 = vmatmul.mubr.f32.gmra.mrb[0].mxu0 %v429
    %v524 = vpop.f32.mrb[0].mxu0
    %v525 = vadd.f32 %v451, %v524
    %v526 = vpop.f32.mrb[0].mxu0
    %527 = vdwg.mxu0
    %v528 = vadd.f32 %v520, %v525
    %v529 = vrot.slane %v528, 4
    %v530 = vadd.f32 %v528, %v529
    %v531 = vrot.slane %v530, 2
    %v532 = vadd.f32 %v530, %v531
    %v533 = vrot.slane %v532, 1
    %v534 = vadd.f32 %v532, %v533
    %v535 = vmul.f32 %v534, %v250
    %v536 = vsub.f32 %v520, %v535
    %v537 = vsub.f32 %v525, %v535
    %v538 = vmul.f32 %v536, %v536
    %v539 = vmul.f32 %v537, %v537
    %v540 = vadd.f32 %v538, %v539
    %v541 = vrot.slane %v540, 4
    %v542 = vadd.f32 %v540, %v541
    %v543 = vrot.slane %v542, 2
    %v544 = vadd.f32 %v542, %v543
    %v545 = vrot.slane %v544, 1
    %v546 = vadd.f32 %v544, %v545
    %v547 = vmul.f32 %v546, %v250
    %v548 = vadd.f32 %v547, 1e-05
    %v549 = vrsqrt.pop %v548
    %v550 = vmul.f32 %v536, %v549
    %v551 = vmul.f32 %v537, %v549
    %v552 = vld [vmem:[#allocation12] sm:$0x1]
    %v554 = vlaneseq
    %v555 = vshrl.u32 %v554, 7
    %v556 = vsub.s32 0, %v555
    %v557 = vrot.slane %v552, %v556
    %v559 = vmul.f32 %v550, %v557
    %v560 = vmul.f32 %v551, %v557
    %v561 = vld [vmem:[#allocation13] sm:$0x1]
    %v563 = vlaneseq
    %v564 = vshrl.u32 %v563, 7
    %v565 = vsub.s32 0, %v564
    %v566 = vrot.slane %v561, %v565
    %v568 = vadd.f32 %v559, %v566
    %v569 = vadd.f32 %v560, %v566
    %v570 = vpack.c.bf16 %v569, %v568
    %v572 = vunpack.c.l.b16 %v570
    %v573 = vunpack.c.h.b16 %v570
    %v574 = vpack.c.b16 %v572, %v572
    %v575 = vpack.c.b16 %v573, %v573
    %578 = vst [vmem:[%s13] sm:$0xf] %v574
    %579 = vst [vmem:[%s13 + $0x4] sm:$0xf] %v575
    // Predicated region
    $region86: #{gcn_forward.2} parent=1 // pred_check
      _
    $region87: #{gcn_forward.2} parent=1 // pred_check_branch
      %581 = sbr.rel (0) target = $region89
    $region88: #{gcn_forward.2} parent=1 // pred_region
      _
    $region89: #{gcn_forward.2} parent=1 // pred_fallthru
      _
    // Predicated region
    $region90: #{gcn_forward.2} parent=1 // pred_check
      _
    $region91: #{gcn_forward.2} parent=1 // pred_check_branch
      %583 = sbr.rel (0) target = $region93
    $region92: #{gcn_forward.2} parent=1 // pred_region
      _
    $region93: #{gcn_forward.2} parent=1 // pred_fallthru
      _
    %584 = vsyncpa [#allocation3], 1
    %585 = vsyncpa [#allocation5], 1
    %586 = vsyncpa [#allocation8], 1
    %587 = vsyncpa [#allocation11], 1
    %588 = vsyncpa [#allocation14], 1

// kernel: gcn_forward.3
$region0: #{gcn_forward.3}
  #allocation0 [shape = 'u32[]', space=smem, size = 0x4, offset = 0x4, fixed_abs, tag = 'smem constant byte address 0x4 - core index']
  #allocation1 [shape = 'u32[144,128]{1,0:T(1,128)}', space=vmem, size = 0x12000, scoped, tag = 'internal scratch']
  %s0 = inlined_call_operand.vmem [shape: bf16[2,8,128], index: 0, kind: input, shape index: {}]
  %s1 = inlined_call_operand.vmem [shape: bf16[2,8,8], index: 1, kind: input, shape index: {}]
  %s2 = inlined_call_operand.hbm [shape: bf16[256,128], index: 2, kind: input, shape index: {}]
  %s3 = inlined_call_operand.hbm [shape: f32[1,128], index: 3, kind: input, shape index: {}]
  %s4 = inlined_call_operand.hbm [shape: bf16[256,128], index: 4, kind: input, shape index: {}]
  %s5 = inlined_call_operand.hbm [shape: f32[1,128], index: 5, kind: input, shape index: {}]
  %s6 = inlined_call_operand.hbm [shape: bf16[256,256], index: 6, kind: input, shape index: {}]
  %s7 = inlined_call_operand.hbm [shape: f32[1,256], index: 7, kind: input, shape index: {}]
  %s8 = inlined_call_operand.vmem [shape: bf16[512,256], index: 8, kind: input, shape index: {}]
  %s9 = inlined_call_operand.hbm [shape: f32[1,256], index: 9, kind: input, shape index: {}]
  %s10 = inlined_call_operand.hbm [shape: bf16[256,256], index: 10, kind: input, shape index: {}]
  %s11 = inlined_call_operand.hbm [shape: f32[1,256], index: 11, kind: input, shape index: {}]
  %s12 = inlined_call_operand.hbm [shape: bf16[256,128], index: 12, kind: input, shape index: {}]
  %s13 = inlined_call_operand.hbm [shape: f32[1,128], index: 13, kind: input, shape index: {}]
  %s14 = inlined_call_operand.hbm [shape: f32[2,8,256], index: 14, kind: output, shape index: {0}]
  %s15 = inlined_call_operand.vmem [shape: f32[2,8,128], index: 15, kind: output, shape index: {1}]
  %16 = xla_tuple %s14, %s15
  %s17 = sld [smem:[#allocation0]]
  $region118: #{gcn_forward.3} parent=0
    _
  %s19 = ssub.s32 1, %s17
  %s20 = scalar_select 0, %s19, %s17
  $region1: #{gcn_forward.3} parent=0
    #allocation2 [shape = 'u8[65536]{0}', space=vmem, size = 0x10000, scoped, tag = 'input window, operand 2, single buffered']
    #allocation3 [shape = 's32[1]{0}', space=sflag, size = 0x4, scoped, tag = 'scoped memory for gcn_forward.3']
    #allocation4 [shape = 's32[1]{0}', space=sflag, size = 0x4, scoped, tag = 'scoped memory for gcn_forward.3']
    #allocation5 [shape = 'u8[512]{0}', space=vmem, size = 0x400, scoped, tag = 'input window, operand 3, single buffered']
    #allocation6 [shape = 's32[1]{0}', space=sflag, size = 0x4, scoped, tag = 'scoped memory for gcn_forward.3']
    #allocation7 [shape = 'u8[65536]{0}', space=vmem, size = 0x10000, scoped, tag = 'input window, operand 4, single buffered']
    #allocation8 [shape = 'u8[512]{0}', space=vmem, size = 0x400, scoped, tag = 'input window, operand 5, single buffered']
    #allocation9 [shape = 's32[1]{0}', space=sflag, size = 0x4, scoped, tag = 'scoped memory for gcn_forward.3']
    #allocation10 [shape = 'u8[131072]{0}', space=vmem, size = 0x20000, scoped, tag = 'input window, operand 6, single buffered']
    #allocation11 [shape = 'u8[1024]{0}', space=vmem, size = 0x400, scoped, tag = 'input window, operand 7, single buffered']
    #allocation12 [shape = 's32[1]{0}', space=sflag, size = 0x4, scoped, tag = 'scoped memory for gcn_forward.3']
    #allocation13 [shape = 'u8[1024]{0}', space=vmem, size = 0x400, scoped, tag = 'input window, operand 9, single buffered']
    #allocation14 [shape = 'u8[131072]{0}', space=vmem, size = 0x20000, scoped, tag = 'input window, operand 10, single buffered']
    #allocation15 [shape = 's32[1]{0}', space=sflag, size = 0x4, scoped, tag = 'scoped memory for gcn_forward.3']
    #allocation16 [shape = 'u8[1024]{0}', space=vmem, size = 0x400, scoped, tag = 'input window, operand 11, single buffered']
    #allocation17 [shape = 'u8[65536]{0}', space=vmem, size = 0x10000, scoped, tag = 'input window, operand 12, single buffered']
    #allocation18 [shape = 's32[1]{0}', space=sflag, size = 0x4, scoped, tag = 'scoped memory for gcn_forward.3']
    #allocation19 [shape = 'u8[512]{0}', space=vmem, size = 0x400, scoped, tag = 'input window, operand 13, single buffered']
    #allocation20 [shape = 'u8[16384]{0}', space=vmem, size = 0x4000, scoped, tag = 'output window, operand 0, single buffered']
    %21 = vsyncpa [#allocation3], 0
    %22 = vsyncpa [#allocation6], 0
    %23 = vsyncpa [#allocation9], 0
    %24 = vsyncpa [#allocation12], 0
    %25 = vsyncpa [#allocation15], 0
    %26 = vsyncpa [#allocation18], 0
    %27 = vsyncpa [#allocation4], 0
    // Predicated region
    $region2: #{gcn_forward.3} parent=1 // pred_check
      _
    $region3: #{gcn_forward.3} parent=1 // pred_check_branch
      %29 = sbr.rel (0) target = $region5
    $region4: #{gcn_forward.3} parent=1 // pred_region
      _
    $region5: #{gcn_forward.3} parent=1 // pred_fallthru
      _
    // Predicated region
    $region6: #{gcn_forward.3} parent=1 // pred_check
      _
    $region7: #{gcn_forward.3} parent=1 // pred_check_branch
      %31 = sbr.rel (0) target = $region9
    $region8: #{gcn_forward.3} parent=1 // pred_region
      _
    $region9: #{gcn_forward.3} parent=1 // pred_fallthru
      _
    // Predicated region
    $region10: #{gcn_forward.3} parent=1 // pred_check
      _
    $region11: #{gcn_forward.3} parent=1 // pred_check_branch
      %33 = sbr.rel (0) target = $region13
    $region12: #{gcn_forward.3} parent=1 // pred_region
      %s35 = ssub.s32 2048, 2048
      %36 = vsyncadd [#allocation3], %s35
      %s37 = sshll.u32 [#allocation2], 4
      %s38 = int_to_ptr.vmem [resolvable:$true] %s37
      %43 = dma.hbm_to_vmem [thread:$0]  %s2, 2048, %s38, [#allocation3], 64, 64, 4
    $region13: #{gcn_forward.3} parent=1 // pred_fallthru
      _
    // Predicated region
    $region14: #{gcn_forward.3} parent=1 // pred_check
      _
    $region15: #{gcn_forward.3} parent=1 // pred_check_branch
      %45 = sbr.rel (0) target = $region17
    $region16: #{gcn_forward.3} parent=1 // pred_region
      %s47 = ssub.s32 16, 16
      %48 = vsyncadd [#allocation6], %s47
      %s50 = sshll.u32 [#allocation5], 4
      %s51 = int_to_ptr.vmem [resolvable:$true] %s50
      %53 = dma.hbm_to_vmem [thread:$0]  %s3, 16, %s51, [#allocation6]
    $region17: #{gcn_forward.3} parent=1 // pred_fallthru
      _
    // Predicated region
    $region18: #{gcn_forward.3} parent=1 // pred_check
      _
    $region19: #{gcn_forward.3} parent=1 // pred_check_branch
      %55 = sbr.rel (0) target = $region21
    $region20: #{gcn_forward.3} parent=1 // pred_region
      %s57 = ssub.s32 2048, 2048
      %58 = vsyncadd [#allocation6], %s57
      %s59 = sshll.u32 [#allocation7], 4
      %s60 = int_to_ptr.vmem [resolvable:$true] %s59
      %65 = dma.hbm_to_vmem [thread:$0]  %s4, 2048, %s60, [#allocation6], 64, 64, 4
    $region21: #{gcn_forward.3} parent=1 // pred_fallthru
      _
    // Predicated region
    $region22: #{gcn_forward.3} parent=1 // pred_check
      _
    $region23: #{gcn_forward.3} parent=1 // pred_check_branch
      %67 = sbr.rel (0) target = $region25
    $region24: #{gcn_forward.3} parent=1 // pred_region
      %s69 = ssub.s32 16, 16
      %70 = vsyncadd [#allocation9], %s69
      %s72 = sshll.u32 [#allocation8], 4
      %s73 = int_to_ptr.vmem [resolvable:$true] %s72
      %75 = dma.hbm_to_vmem [thread:$0]  %s5, 16, %s73, [#allocation9]
    $region25: #{gcn_forward.3} parent=1 // pred_fallthru
      _
    // Predicated region
    $region26: #{gcn_forward.3} parent=1 // pred_check
      _
    $region27: #{gcn_forward.3} parent=1 // pred_check_branch
      %77 = sbr.rel (0) target = $region29
    $region28: #{gcn_forward.3} parent=1 // pred_region
      %s79 = ssub.s32 4096, 4096
      %80 = vsyncadd [#allocation9], %s79
      %s81 = sshll.u32 [#allocation10], 4
      %s82 = int_to_ptr.vmem [resolvable:$true] %s81
      %87 = dma.hbm_to_vmem [thread:$0]  %s6, 4096, %s82, [#allocation9], 128, 128, 8
    $region29: #{gcn_forward.3} parent=1 // pred_fallthru
      _
    // Predicated region
    $region30: #{gcn_forward.3} parent=1 // pred_check
      _
    $region31: #{gcn_forward.3} parent=1 // pred_check_branch
      %89 = sbr.rel (0) target = $region33
    $region32: #{gcn_forward.3} parent=1 // pred_region
      %s91 = ssub.s32 32, 32
      %92 = vsyncadd [#allocation12], %s91
      %s94 = sshll.u32 [#allocation11], 4
      %s95 = int_to_ptr.vmem [resolvable:$true] %s94
      %97 = dma.hbm_to_vmem [thread:$0]  %s7, 32, %s95, [#allocation12]
    $region33: #{gcn_forward.3} parent=1 // pred_fallthru
      _
    // Predicated region
    $region34: #{gcn_forward.3} parent=1 // pred_check
      _
    $region35: #{gcn_forward.3} parent=1 // pred_check_branch
      %99 = sbr.rel (0) target = $region37
    $region36: #{gcn_forward.3} parent=1 // pred_region
      _
    $region37: #{gcn_forward.3} parent=1 // pred_fallthru
      _
    // Predicated region
    $region38: #{gcn_forward.3} parent=1 // pred_check
      _
    $region39: #{gcn_forward.3} parent=1 // pred_check_branch
      %101 = sbr.rel (0) target = $region41
    $region40: #{gcn_forward.3} parent=1 // pred_region
      %s103 = ssub.s32 32, 32
      %104 = vsyncadd [#allocation12], %s103
      %s106 = sshll.u32 [#allocation13], 4
      %s107 = int_to_ptr.vmem [resolvable:$true] %s106
      %109 = dma.hbm_to_vmem [thread:$0]  %s9, 32, %s107, [#allocation12]
    $region41: #{gcn_forward.3} parent=1 // pred_fallthru
      _
    // Predicated region
    $region42: #{gcn_forward.3} parent=1 // pred_check
      _
    $region43: #{gcn_forward.3} parent=1 // pred_check_branch
      %111 = sbr.rel (0) target = $region45
    $region44: #{gcn_forward.3} parent=1 // pred_region
      %s113 = ssub.s32 4096, 4096
      %114 = vsyncadd [#allocation15], %s113
      %s115 = sshll.u32 [#allocation14], 4
      %s116 = int_to_ptr.vmem [resolvable:$true] %s115
      %121 = dma.hbm_to_vmem [thread:$0]  %s10, 4096, %s116, [#allocation15], 128, 128, 8
    $region45: #{gcn_forward.3} parent=1 // pred_fallthru
      _
    // Predicated region
    $region46: #{gcn_forward.3} parent=1 // pred_check
      _
    $region47: #{gcn_forward.3} parent=1 // pred_check_branch
      %123 = sbr.rel (0) target = $region49
    $region48: #{gcn_forward.3} parent=1 // pred_region
      %s125 = ssub.s32 32, 32
      %126 = vsyncadd [#allocation15], %s125
      %s128 = sshll.u32 [#allocation16], 4
      %s129 = int_to_ptr.vmem [resolvable:$true] %s128
      %131 = dma.hbm_to_vmem [thread:$0]  %s11, 32, %s129, [#allocation15]
    $region49: #{gcn_forward.3} parent=1 // pred_fallthru
      _
    // Predicated region
    $region50: #{gcn_forward.3} parent=1 // pred_check
      _
    $region51: #{gcn_forward.3} parent=1 // pred_check_branch
      %133 = sbr.rel (0) target = $region53
    $region52: #{gcn_forward.3} parent=1 // pred_region
      %s135 = ssub.s32 2048, 2048
      %136 = vsyncadd [#allocation18], %s135
      %s137 = sshll.u32 [#allocation17], 4
      %s138 = int_to_ptr.vmem [resolvable:$true] %s137
      %143 = dma.hbm_to_vmem [thread:$0]  %s12, 2048, %s138, [#allocation18], 64, 64, 4
    $region53: #{gcn_forward.3} parent=1 // pred_fallthru
      _
    // Predicated region
    $region54: #{gcn_forward.3} parent=1 // pred_check
      _
    $region55: #{gcn_forward.3} parent=1 // pred_check_branch
      %145 = sbr.rel (0) target = $region57
    $region56: #{gcn_forward.3} parent=1 // pred_region
      %s147 = ssub.s32 16, 16
      %148 = vsyncadd [#allocation18], %s147
      %s150 = sshll.u32 [#allocation19], 4
      %s151 = int_to_ptr.vmem [resolvable:$true] %s150
      %153 = dma.hbm_to_vmem [thread:$0]  %s13, 16, %s151, [#allocation18]
    $region57: #{gcn_forward.3} parent=1 // pred_fallthru
      _
    // Predicated region
    $region58: #{gcn_forward.3} parent=1 // pred_check
      _
    $region59: #{gcn_forward.3} parent=1 // pred_check_branch
      %155 = sbr.rel (0) target = $region61
    $region60: #{gcn_forward.3} parent=1 // pred_region
      %156 = dma.done [#allocation3], 2048
    $region61: #{gcn_forward.3} parent=1 // pred_fallthru
      _
    // Predicated region
    $region62: #{gcn_forward.3} parent=1 // pred_check
      _
    $region63: #{gcn_forward.3} parent=1 // pred_check_branch
      %158 = sbr.rel (0) target = $region65
    $region64: #{gcn_forward.3} parent=1 // pred_region
      %159 = dma.done [#allocation6], 16
    $region65: #{gcn_forward.3} parent=1 // pred_fallthru
      _
    // Predicated region
    $region66: #{gcn_forward.3} parent=1 // pred_check
      _
    $region67: #{gcn_forward.3} parent=1 // pred_check_branch
      %161 = sbr.rel (0) target = $region69
    $region68: #{gcn_forward.3} parent=1 // pred_region
      %162 = dma.done [#allocation6], 2048
    $region69: #{gcn_forward.3} parent=1 // pred_fallthru
      _
    // Predicated region
    $region70: #{gcn_forward.3} parent=1 // pred_check
      _
    $region71: #{gcn_forward.3} parent=1 // pred_check_branch
      %164 = sbr.rel (0) target = $region73
    $region72: #{gcn_forward.3} parent=1 // pred_region
      %165 = dma.done [#allocation9], 16
    $region73: #{gcn_forward.3} parent=1 // pred_fallthru
      _
    // Predicated region
    $region74: #{gcn_forward.3} parent=1 // pred_check
      _
    $region75: #{gcn_forward.3} parent=1 // pred_check_branch
      %167 = sbr.rel (0) target = $region77
    $region76: #{gcn_forward.3} parent=1 // pred_region
      %168 = dma.done [#allocation9], 4096
    $region77: #{gcn_forward.3} parent=1 // pred_fallthru
      _
    // Predicated region
    $region78: #{gcn_forward.3} parent=1 // pred_check
      _
    $region79: #{gcn_forward.3} parent=1 // pred_check_branch
      %170 = sbr.rel (0) target = $region81
    $region80: #{gcn_forward.3} parent=1 // pred_region
      %171 = dma.done [#allocation12], 32
    $region81: #{gcn_forward.3} parent=1 // pred_fallthru
      _
    // Predicated region
    $region82: #{gcn_forward.3} parent=1 // pred_check
      _
    $region83: #{gcn_forward.3} parent=1 // pred_check_branch
      %173 = sbr.rel (0) target = $region85
    $region84: #{gcn_forward.3} parent=1 // pred_region
      %174 = dma.done [#allocation12], 32
    $region85: #{gcn_forward.3} parent=1 // pred_fallthru
      _
    // Predicated region
    $region86: #{gcn_forward.3} parent=1 // pred_check
      _
    $region87: #{gcn_forward.3} parent=1 // pred_check_branch
      %176 = sbr.rel (0) target = $region89
    $region88: #{gcn_forward.3} parent=1 // pred_region
      %177 = dma.done [#allocation15], 4096
    $region89: #{gcn_forward.3} parent=1 // pred_fallthru
      _
    // Predicated region
    $region90: #{gcn_forward.3} parent=1 // pred_check
      _
    $region91: #{gcn_forward.3} parent=1 // pred_check_branch
      %179 = sbr.rel (0) target = $region93
    $region92: #{gcn_forward.3} parent=1 // pred_region
      %180 = dma.done [#allocation15], 32
    $region93: #{gcn_forward.3} parent=1 // pred_fallthru
      _
    // Predicated region
    $region94: #{gcn_forward.3} parent=1 // pred_check
      _
    $region95: #{gcn_forward.3} parent=1 // pred_check_branch
      %182 = sbr.rel (0) target = $region97
    $region96: #{gcn_forward.3} parent=1 // pred_region
      %183 = dma.done [#allocation18], 2048
    $region97: #{gcn_forward.3} parent=1 // pred_fallthru
      _
    // Predicated region
    $region98: #{gcn_forward.3} parent=1 // pred_check
      _
    $region99: #{gcn_forward.3} parent=1 // pred_check_branch
      %185 = sbr.rel (0) target = $region101
    $region100: #{gcn_forward.3} parent=1 // pred_region
      %186 = dma.done [#allocation18], 16
    $region101: #{gcn_forward.3} parent=1 // pred_fallthru
      _
    %v188 = vld [vmem:[%s0] sm:$0xf]
    %v189 = vld [vmem:[%s0 + $0x4] sm:$0xf]
    %v190 = vunpack.c.l.bf16 %v188
    %v191 = vunpack.c.l.bf16 %v189
    %v192 = vld [vmem:[%s1] sm:$0xf]
    %v193 = vld [vmem:[%s1 + $0x4] sm:$0xf]
    %v194 = vunpack.c.l.bf16 %v192
    %v195 = vunpack.c.l.bf16 %v193
    %197 = vset.pattern.permute.xlu0 0
    %198 = vperm.xlu0 %197, %v194
    %v199 = vpop.permute.xlu0 %198
    %202 = vset.pattern.permute.xlu0 0
    %203 = vperm.xlu0 %202, %v195
    %v204 = vpop.permute.xlu0 %203
    %v206 = vlaneseq
    %v207 = vshrl.u32 %v206, 7
    %v208 = vsub.s32 0, %v207
    %v209 = vrot.slane %v190, %v208
    %v210 = vlaneseq
    %v211 = vshrl.u32 %v210, 7
    %v212 = vsub.s32 0, %v211
    %v213 = vrot.slane %v191, %v212
    %v214 = vmul.f32 %v199, %v209
    %v215 = vmul.f32 %v204, %v213
    %216 = vset.pattern.permute.xlu0 1
    %217 = vperm.xlu0 %216, %v194
    %v218 = vpop.permute.xlu0 %217
    %220 = vset.pattern.permute.xlu0 1
    %221 = vperm.xlu0 %220, %v195
    %v222 = vpop.permute.xlu0 %221
    %v224 = vlaneseq
    %v225 = vshrl.u32 %v224, 7
    %v226 = vsub.s32 1, %v225
    %v227 = vrot.slane %v190, %v226
    %v228 = vlaneseq
    %v229 = vshrl.u32 %v228, 7
    %v230 = vsub.s32 1, %v229
    %v231 = vrot.slane %v191, %v230
    %v232 = vmul.f32 %v218, %v227
    %v233 = vmul.f32 %v222, %v231
    %v234 = vadd.f32 %v214, %v232
    %v235 = vadd.f32 %v215, %v233
    %236 = vset.pattern.permute.xlu0 2
    %237 = vperm.xlu0 %236, %v194
    %v238 = vpop.permute.xlu0 %237
    %240 = vset.pattern.permute.xlu0 2
    %241 = vperm.xlu0 %240, %v195
    %v242 = vpop.permute.xlu0 %241
    %v244 = vlaneseq
    %v245 = vshrl.u32 %v244, 7
    %v246 = vsub.s32 2, %v245
    %v247 = vrot.slane %v190, %v246
    %v248 = vlaneseq
    %v249 = vshrl.u32 %v248, 7
    %v250 = vsub.s32 2, %v249
    %v251 = vrot.slane %v191, %v250
    %v252 = vmul.f32 %v238, %v247
    %v253 = vmul.f32 %v242, %v251
    %v254 = vadd.f32 %v234, %v252
    %v255 = vadd.f32 %v235, %v253
    %256 = vset.pattern.permute.xlu0 3
    %257 = vperm.xlu0 %256, %v194
    %v258 = vpop.permute.xlu0 %257
    %260 = vset.pattern.permute.xlu0 3
    %261 = vperm.xlu0 %260, %v195
    %v262 = vpop.permute.xlu0 %261
    %v264 = vlaneseq
    %v265 = vshrl.u32 %v264, 7
    %v266 = vsub.s32 3, %v265
    %v267 = vrot.slane %v190, %v266
    %v268 = vlaneseq
    %v269 = vshrl.u32 %v268, 7
    %v270 = vsub.s32 3, %v269
    %v271 = vrot.slane %v191, %v270
    %v272 = vmul.f32 %v258, %v267
    %v273 = vmul.f32 %v262, %v271
    %v274 = vadd.f32 %v254, %v272
    %v275 = vadd.f32 %v255, %v273
    %276 = vset.pattern.permute.xlu0 4
    %277 = vperm.xlu0 %276, %v194
    %v278 = vpop.permute.xlu0 %277
    %280 = vset.pattern.permute.xlu0 4
    %281 = vperm.xlu0 %280, %v195
    %v282 = vpop.permute.xlu0 %281
    %v284 = vlaneseq
    %v285 = vshrl.u32 %v284, 7
    %v286 = vsub.s32 4, %v285
    %v287 = vrot.slane %v190, %v286
    %v288 = vlaneseq
    %v289 = vshrl.u32 %v288, 7
    %v290 = vsub.s32 4, %v289
    %v291 = vrot.slane %v191, %v290
    %v292 = vmul.f32 %v278, %v287
    %v293 = vmul.f32 %v282, %v291
    %v294 = vadd.f32 %v274, %v292
    %v295 = vadd.f32 %v275, %v293
    %296 = vset.pattern.permute.xlu0 5
    %297 = vperm.xlu0 %296, %v194
    %v298 = vpop.permute.xlu0 %297
    %300 = vset.pattern.permute.xlu0 5
    %301 = vperm.xlu0 %300, %v195
    %v302 = vpop.permute.xlu0 %301
    %v304 = vlaneseq
    %v305 = vshrl.u32 %v304, 7
    %v306 = vsub.s32 5, %v305
    %v307 = vrot.slane %v190, %v306
    %v308 = vlaneseq
    %v309 = vshrl.u32 %v308, 7
    %v310 = vsub.s32 5, %v309
    %v311 = vrot.slane %v191, %v310
    %v312 = vmul.f32 %v298, %v307
    %v313 = vmul.f32 %v302, %v311
    %v314 = vadd.f32 %v294, %v312
    %v315 = vadd.f32 %v295, %v313
    %316 = vset.pattern.permute.xlu0 6
    %317 = vperm.xlu0 %316, %v194
    %v318 = vpop.permute.xlu0 %317
    %320 = vset.pattern.permute.xlu0 6
    %321 = vperm.xlu0 %320, %v195
    %v322 = vpop.permute.xlu0 %321
    %v324 = vlaneseq
    %v325 = vshrl.u32 %v324, 7
    %v326 = vsub.s32 6, %v325
    %v327 = vrot.slane %v190, %v326
    %v328 = vlaneseq
    %v329 = vshrl.u32 %v328, 7
    %v330 = vsub.s32 6, %v329
    %v331 = vrot.slane %v191, %v330
    %v332 = vmul.f32 %v318, %v327
    %v333 = vmul.f32 %v322, %v331
    %v334 = vadd.f32 %v314, %v332
    %v335 = vadd.f32 %v315, %v333
    %336 = vset.pattern.permute.xlu0 7
    %337 = vperm.xlu0 %336, %v194
    %v338 = vpop.permute.xlu0 %337
    %340 = vset.pattern.permute.xlu0 7
    %341 = vperm.xlu0 %340, %v195
    %v342 = vpop.permute.xlu0 %341
    %v344 = vlaneseq
    %v345 = vshrl.u32 %v344, 7
    %v346 = vsub.s32 7, %v345
    %v347 = vrot.slane %v190, %v346
    %v348 = vlaneseq
    %v349 = vshrl.u32 %v348, 7
    %v350 = vsub.s32 7, %v349
    %v351 = vrot.slane %v191, %v350
    %v352 = vmul.f32 %v338, %v347
    %v353 = vmul.f32 %v342, %v351
    %v354 = vadd.f32 %v334, %v352
    %v355 = vadd.f32 %v335, %v353
    %v356 = vpack.c.bf16 %v191, %v190
    %v357 = vpack.c.bf16 %v355, %v354
    %v358 = vld [vmem:[#allocation2] sm:$0xf]
    %v359 = vld [vmem:[#allocation2 + $0x4] sm:$0xf]
    %v360 = vld [vmem:[#allocation2 + $0x8] sm:$0xf]
    %v361 = vld [vmem:[#allocation2 + $0xc] sm:$0xf]
    %v362 = vld [vmem:[#allocation2 + $0x10] sm:$0xf]
    %v363 = vld [vmem:[#allocation2 + $0x14] sm:$0xf]
    %v364 = vld [vmem:[#allocation2 + $0x18] sm:$0xf]
    %v365 = vld [vmem:[#allocation2 + $0x1c] sm:$0xf]
    %v366 = vld [vmem:[#allocation2 + $0x20] sm:$0xf]
    %v367 = vld [vmem:[#allocation2 + $0x24] sm:$0xf]
    %v368 = vld [vmem:[#allocation2 + $0x28] sm:$0xf]
    %v369 = vld [vmem:[#allocation2 + $0x2c] sm:$0xf]
    %v370 = vld [vmem:[#allocation2 + $0x30] sm:$0xf]
    %v371 = vld [vmem:[#allocation2 + $0x34] sm:$0xf]
    %v372 = vld [vmem:[#allocation2 + $0x38] sm:$0xf]
    %v373 = vld [vmem:[#allocation2 + $0x3c] sm:$0xf]
    %v374 = vld [vmem:[#allocation2 + $0x40] sm:$0xf]
    %v375 = vld [vmem:[#allocation2 + $0x44] sm:$0xf]
    %v376 = vld [vmem:[#allocation2 + $0x48] sm:$0xf]
    %v377 = vld [vmem:[#allocation2 + $0x4c] sm:$0xf]
    %v378 = vld [vmem:[#allocation2 + $0x50] sm:$0xf]
    %v379 = vld [vmem:[#allocation2 + $0x54] sm:$0xf]
    %v380 = vld [vmem:[#allocation2 + $0x58] sm:$0xf]
    %v381 = vld [vmem:[#allocation2 + $0x5c] sm:$0xf]
    %v382 = vld [vmem:[#allocation2 + $0x60] sm:$0xf]
    %v383 = vld [vmem:[#allocation2 + $0x64] sm:$0xf]
    %v384 = vld [vmem:[#allocation2 + $0x68] sm:$0xf]
    %v385 = vld [vmem:[#allocation2 + $0x6c] sm:$0xf]
    %v386 = vld [vmem:[#allocation2 + $0x70] sm:$0xf]
    %v387 = vld [vmem:[#allocation2 + $0x74] sm:$0xf]
    %v388 = vld [vmem:[#allocation2 + $0x78] sm:$0xf]
    %v389 = vld [vmem:[#allocation2 + $0x7c] sm:$0xf]
    %v390 = vld [vmem:[#allocation5] sm:$0x1]
    %v392 = vlaneseq
    %v393 = vshrl.u32 %v392, 7
    %v394 = vsub.s32 0, %v393
    %v395 = vrot.slane %v390, %v394
    %v429 = vunpack.c.l.b16 %v358
    %v430 = vunpack.c.l.b16 %v359
    %v431 = vunpack.c.l.b16 %v360
    %v432 = vunpack.c.l.b16 %v361
    %v433 = vunpack.c.l.b16 %v362
    %v434 = vunpack.c.l.b16 %v363
    %v435 = vunpack.c.l.b16 %v364
    %v436 = vunpack.c.l.b16 %v365
    %v437 = vunpack.c.l.b16 %v366
    %v438 = vunpack.c.l.b16 %v367
    %v439 = vunpack.c.l.b16 %v368
    %v440 = vunpack.c.l.b16 %v369
    %v441 = vunpack.c.l.b16 %v370
    %v442 = vunpack.c.l.b16 %v371
    %v443 = vunpack.c.l.b16 %v372
    %v444 = vunpack.c.l.b16 %v373
    %v445 = vunpack.c.l.b16 %v374
    %v446 = vunpack.c.l.b16 %v375
    %v447 = vunpack.c.l.b16 %v376
    %v448 = vunpack.c.l.b16 %v377
    %v449 = vunpack.c.l.b16 %v378
    %v450 = vunpack.c.l.b16 %v379
    %v451 = vunpack.c.l.b16 %v380
    %v452 = vunpack.c.l.b16 %v381
    %v453 = vunpack.c.l.b16 %v382
    %v454 = vunpack.c.l.b16 %v383
    %v455 = vunpack.c.l.b16 %v384
    %v456 = vunpack.c.l.b16 %v385
    %v457 = vunpack.c.l.b16 %v386
    %v458 = vunpack.c.l.b16 %v387
    %v459 = vunpack.c.l.b16 %v388
    %v460 = vunpack.c.l.b16 %v389
    %v461 = vpack.c.b16 %v430, %v429
    %v462 = vpack.c.b16 %v432, %v431
    %v463 = vpack.c.b16 %v434, %v433
    %v464 = vpack.c.b16 %v436, %v435
    %v465 = vpack.c.b16 %v438, %v437
    %v466 = vpack.c.b16 %v440, %v439
    %v467 = vpack.c.b16 %v442, %v441
    %v468 = vpack.c.b16 %v444, %v443
    %v469 = vpack.c.b16 %v446, %v445
    %v470 = vpack.c.b16 %v448, %v447
    %v471 = vpack.c.b16 %v450, %v449
    %v472 = vpack.c.b16 %v452, %v451
    %v473 = vpack.c.b16 %v454, %v453
    %v474 = vpack.c.b16 %v456, %v455
    %v475 = vpack.c.b16 %v458, %v457
    %v476 = vpack.c.b16 %v460, %v459
    %493 = vmatprep.subr.bf16.mxu0 0
    %494 = vmatpush1.bf16.msra.mxu0 %v461
    %495 = vmatprep.subr.bf16.mxu0 0
    %496 = vmatpush1.bf16.msra.mxu0 %v462
    %497 = vmatprep.subr.bf16.mxu0 0
    %498 = vmatpush1.bf16.msra.mxu0 %v463
    %499 = vmatprep.subr.bf16.mxu0 0
    %500 = vmatpush1.bf16.msra.mxu0 %v464
    %501 = vmatprep.subr.bf16.mxu0 0
    %502 = vmatpush1.bf16.msra.mxu0 %v465
    %503 = vmatprep.subr.bf16.mxu0 0
    %504 = vmatpush1.bf16.msra.mxu0 %v466
    %505 = vmatprep.subr.bf16.mxu0 0
    %506 = vmatpush1.bf16.msra.mxu0 %v467
    %507 = vmatprep.subr.bf16.mxu0 0
    %508 = vmatpush1.bf16.msra.mxu0 %v468
    %509 = vmatprep.subr.bf16.mxu0 0
    %510 = vmatpush1.bf16.msra.mxu0 %v469
    %511 = vmatprep.subr.bf16.mxu0 0
    %512 = vmatpush1.bf16.msra.mxu0 %v470
    %513 = vmatprep.subr.bf16.mxu0 0
    %514 = vmatpush1.bf16.msra.mxu0 %v471
    %515 = vmatprep.subr.bf16.mxu0 0
    %516 = vmatpush1.bf16.msra.mxu0 %v472
    %517 = vmatprep.subr.bf16.mxu0 0
    %518 = vmatpush1.bf16.msra.mxu0 %v473
    %519 = vmatprep.subr.bf16.mxu0 0
    %520 = vmatpush1.bf16.msra.mxu0 %v474
    %521 = vmatprep.subr.bf16.mxu0 0
    %522 = vmatpush1.bf16.msra.mxu0 %v475
    %523 = vmatprep.subr.bf16.mxu0 0
    %524 = vmatpush1.bf16.msra.mxu0 %v476
    %525 = vmatprep.mubr.bf16.mxu0 %v357
    %526 = vmatmul.mubr.bf16.gmra.mrb[0].mxu0 %v356
    %v527 = vpop.f32.mrb[0].mxu0
    %v528 = vadd.f32 %v395, %v527
    %v529 = vpop.f32.mrb[0].mxu0
    %v530 = vpop.f32.mrb[0].mxu0
    %v531 = vadd.f32 %v395, %v530
    %v532 = vpop.f32.mrb[0].mxu0
    %533 = vdwg.mxu0
    %v534 = vmax.f32 %v528, 0.0
    %v535 = vmax.f32 %v531, 0.0
    %v536 = vlaneseq
    %v537 = vshrl.u32 %v536, 7
    %v538 = vsub.s32 0, %v537
    %v539 = vrot.slane %v534, %v538
    %v540 = vlaneseq
    %v541 = vshrl.u32 %v540, 7
    %v542 = vsub.s32 0, %v541
    %v543 = vrot.slane %v535, %v542
    %v544 = vmul.f32 %v199, %v539
    %v545 = vmul.f32 %v204, %v543
    %v546 = vlaneseq
    %v547 = vshrl.u32 %v546, 7
    %v548 = vsub.s32 1, %v547
    %v549 = vrot.slane %v534, %v548
    %v550 = vlaneseq
    %v551 = vshrl.u32 %v550, 7
    %v552 = vsub.s32 1, %v551
    %v553 = vrot.slane %v535, %v552
    %v554 = vmul.f32 %v218, %v549
    %v555 = vmul.f32 %v222, %v553
    %v556 = vadd.f32 %v544, %v554
    %v557 = vadd.f32 %v545, %v555
    %v558 = vlaneseq
    %v559 = vshrl.u32 %v558, 7
    %v560 = vsub.s32 2, %v559
    %v561 = vrot.slane %v534, %v560
    %v562 = vlaneseq
    %v563 = vshrl.u32 %v562, 7
    %v564 = vsub.s32 2, %v563
    %v565 = vrot.slane %v535, %v564
    %v566 = vmul.f32 %v238, %v561
    %v567 = vmul.f32 %v242, %v565
    %v568 = vadd.f32 %v556, %v566
    %v569 = vadd.f32 %v557, %v567
    %v570 = vlaneseq
    %v571 = vshrl.u32 %v570, 7
    %v572 = vsub.s32 3, %v571
    %v573 = vrot.slane %v534, %v572
    %v574 = vlaneseq
    %v575 = vshrl.u32 %v574, 7
    %v576 = vsub.s32 3, %v575
    %v577 = vrot.slane %v535, %v576
    %v578 = vmul.f32 %v258, %v573
    %v579 = vmul.f32 %v262, %v577
    %v580 = vadd.f32 %v568, %v578
    %v581 = vadd.f32 %v569, %v579
    %v582 = vlaneseq
    %v583 = vshrl.u32 %v582, 7
    %v584 = vsub.s32 4, %v583
    %v585 = vrot.slane %v534, %v584
    %v586 = vlaneseq
    %v587 = vshrl.u32 %v586, 7
    %v588 = vsub.s32 4, %v587
    %v589 = vrot.slane %v535, %v588
    %v590 = vmul.f32 %v278, %v585
    %v591 = vmul.f32 %v282, %v589
    %v592 = vadd.f32 %v580, %v590
    %v593 = vadd.f32 %v581, %v591
    %v594 = vlaneseq
    %v595 = vshrl.u32 %v594, 7
    %v596 = vsub.s32 5, %v595
    %v597 = vrot.slane %v534, %v596
    %v598 = vlaneseq
    %v599 = vshrl.u32 %v598, 7
    %v600 = vsub.s32 5, %v599
    %v601 = vrot.slane %v535, %v600
    %v602 = vmul.f32 %v298, %v597
    %v603 = vmul.f32 %v302, %v601
    %v604 = vadd.f32 %v592, %v602
    %v605 = vadd.f32 %v593, %v603
    %v606 = vlaneseq
    %v607 = vshrl.u32 %v606, 7
    %v608 = vsub.s32 6, %v607
    %v609 = vrot.slane %v534, %v608
    %v610 = vlaneseq
    %v611 = vshrl.u32 %v610, 7
    %v612 = vsub.s32 6, %v611
    %v613 = vrot.slane %v535, %v612
    %v614 = vmul.f32 %v318, %v609
    %v615 = vmul.f32 %v322, %v613
    %v616 = vadd.f32 %v604, %v614
    %v617 = vadd.f32 %v605, %v615
    %v618 = vlaneseq
    %v619 = vshrl.u32 %v618, 7
    %v620 = vsub.s32 7, %v619
    %v621 = vrot.slane %v534, %v620
    %v622 = vlaneseq
    %v623 = vshrl.u32 %v622, 7
    %v624 = vsub.s32 7, %v623
    %v625 = vrot.slane %v535, %v624
    %v626 = vmul.f32 %v338, %v621
    %v627 = vmul.f32 %v342, %v625
    %v628 = vadd.f32 %v616, %v626
    %v629 = vadd.f32 %v617, %v627
    %v630 = vpack.c.bf16 %v535, %v534
    %v631 = vpack.c.bf16 %v629, %v628
    %v632 = vld [vmem:[#allocation7] sm:$0xf]
    %v633 = vld [vmem:[#allocation7 + $0x4] sm:$0xf]
    %v634 = vld [vmem:[#allocation7 + $0x8] sm:$0xf]
    %v635 = vld [vmem:[#allocation7 + $0xc] sm:$0xf]
    %v636 = vld [vmem:[#allocation7 + $0x10] sm:$0xf]
    %v637 = vld [vmem:[#allocation7 + $0x14] sm:$0xf]
    %v638 = vld [vmem:[#allocation7 + $0x18] sm:$0xf]
    %v639 = vld [vmem:[#allocation7 + $0x1c] sm:$0xf]
    %v640 = vld [vmem:[#allocation7 + $0x20] sm:$0xf]
    %v641 = vld [vmem:[#allocation7 + $0x24] sm:$0xf]
    %v642 = vld [vmem:[#allocation7 + $0x28] sm:$0xf]
    %v643 = vld [vmem:[#allocation7 + $0x2c] sm:$0xf]
    %v644 = vld [vmem:[#allocation7 + $0x30] sm:$0xf]
    %v645 = vld [vmem:[#allocation7 + $0x34] sm:$0xf]
    %v646 = vld [vmem:[#allocation7 + $0x38] sm:$0xf]
    %v647 = vld [vmem:[#allocation7 + $0x3c] sm:$0xf]
    %v648 = vld [vmem:[#allocation7 + $0x40] sm:$0xf]
    %v649 = vld [vmem:[#allocation7 + $0x44] sm:$0xf]
    %v650 = vld [vmem:[#allocation7 + $0x48] sm:$0xf]
    %v651 = vld [vmem:[#allocation7 + $0x4c] sm:$0xf]
    %v652 = vld [vmem:[#allocation7 + $0x50] sm:$0xf]
    %v653 = vld [vmem:[#allocation7 + $0x54] sm:$0xf]
    %v654 = vld [vmem:[#allocation7 + $0x58] sm:$0xf]
    %v655 = vld [vmem:[#allocation7 + $0x5c] sm:$0xf]
    %v656 = vld [vmem:[#allocation7 + $0x60] sm:$0xf]
    %v657 = vld [vmem:[#allocation7 + $0x64] sm:$0xf]
    %v658 = vld [vmem:[#allocation7 + $0x68] sm:$0xf]
    %v659 = vld [vmem:[#allocation7 + $0x6c] sm:$0xf]
    %v660 = vld [vmem:[#allocation7 + $0x70] sm:$0xf]
    %v661 = vld [vmem:[#allocation7 + $0x74] sm:$0xf]
    %v662 = vld [vmem:[#allocation7 + $0x78] sm:$0xf]
    %v663 = vld [vmem:[#allocation7 + $0x7c] sm:$0xf]
    %v664 = vld [vmem:[#allocation8] sm:$0x1]
    %v666 = vlaneseq
    %v667 = vshrl.u32 %v666, 7
    %v668 = vsub.s32 0, %v667
    %v669 = vrot.slane %v664, %v668
    %v703 = vunpack.c.l.b16 %v632
    %v704 = vunpack.c.l.b16 %v633
    %v705 = vunpack.c.l.b16 %v634
    %v706 = vunpack.c.l.b16 %v635
    %v707 = vunpack.c.l.b16 %v636
    %v708 = vunpack.c.l.b16 %v637
    %v709 = vunpack.c.l.b16 %v638
    %v710 = vunpack.c.l.b16 %v639
    %v711 = vunpack.c.l.b16 %v640
    %v712 = vunpack.c.l.b16 %v641
    %v713 = vunpack.c.l.b16 %v642
    %v714 = vunpack.c.l.b16 %v643
    %v715 = vunpack.c.l.b16 %v644
    %v716 = vunpack.c.l.b16 %v645
    %v717 = vunpack.c.l.b16 %v646
    %v718 = vunpack.c.l.b16 %v647
    %v719 = vunpack.c.l.b16 %v648
    %v720 = vunpack.c.l.b16 %v649
    %v721 = vunpack.c.l.b16 %v650
    %v722 = vunpack.c.l.b16 %v651
    %v723 = vunpack.c.l.b16 %v652
    %v724 = vunpack.c.l.b16 %v653
    %v725 = vunpack.c.l.b16 %v654
    %v726 = vunpack.c.l.b16 %v655
    %v727 = vunpack.c.l.b16 %v656
    %v728 = vunpack.c.l.b16 %v657
    %v729 = vunpack.c.l.b16 %v658
    %v730 = vunpack.c.l.b16 %v659
    %v731 = vunpack.c.l.b16 %v660
    %v732 = vunpack.c.l.b16 %v661
    %v733 = vunpack.c.l.b16 %v662
    %v734 = vunpack.c.l.b16 %v663
    %v735 = vpack.c.b16 %v704, %v703
    %v736 = vpack.c.b16 %v706, %v705
    %v737 = vpack.c.b16 %v708, %v707
    %v738 = vpack.c.b16 %v710, %v709
    %v739 = vpack.c.b16 %v712, %v711
    %v740 = vpack.c.b16 %v714, %v713
    %v741 = vpack.c.b16 %v716, %v715
    %v742 = vpack.c.b16 %v718, %v717
    %v743 = vpack.c.b16 %v720, %v719
    %v744 = vpack.c.b16 %v722, %v721
    %v745 = vpack.c.b16 %v724, %v723
    %v746 = vpack.c.b16 %v726, %v725
    %v747 = vpack.c.b16 %v728, %v727
    %v748 = vpack.c.b16 %v730, %v729
    %v749 = vpack.c.b16 %v732, %v731
    %v750 = vpack.c.b16 %v734, %v733
    %767 = vmatprep.subr.bf16.mxu0 0
    %768 = vmatpush1.bf16.msra.mxu0 %v735
    %769 = vmatprep.subr.bf16.mxu0 0
    %770 = vmatpush1.bf16.msra.mxu0 %v736
    %771 = vmatprep.subr.bf16.mxu0 0
    %772 = vmatpush1.bf16.msra.mxu0 %v737
    %773 = vmatprep.subr.bf16.mxu0 0
    %774 = vmatpush1.bf16.msra.mxu0 %v738
    %775 = vmatprep.subr.bf16.mxu0 0
    %776 = vmatpush1.bf16.msra.mxu0 %v739
    %777 = vmatprep.subr.bf16.mxu0 0
    %778 = vmatpush1.bf16.msra.mxu0 %v740
    %779 = vmatprep.subr.bf16.mxu0 0
    %780 = vmatpush1.bf16.msra.mxu0 %v741
    %781 = vmatprep.subr.bf16.mxu0 0
    %782 = vmatpush1.bf16.msra.mxu0 %v742
    %783 = vmatprep.subr.bf16.mxu0 0
    %784 = vmatpush1.bf16.msra.mxu0 %v743
    %785 = vmatprep.subr.bf16.mxu0 0
    %786 = vmatpush1.bf16.msra.mxu0 %v744
    %787 = vmatprep.subr.bf16.mxu0 0
    %788 = vmatpush1.bf16.msra.mxu0 %v745
    %789 = vmatprep.subr.bf16.mxu0 0
    %790 = vmatpush1.bf16.msra.mxu0 %v746
    %791 = vmatprep.subr.bf16.mxu0 0
    %792 = vmatpush1.bf16.msra.mxu0 %v747
    %793 = vmatprep.subr.bf16.mxu0 0
    %794 = vmatpush1.bf16.msra.mxu0 %v748
    %795 = vmatprep.subr.bf16.mxu0 0
    %796 = vmatpush1.bf16.msra.mxu0 %v749
    %797 = vmatprep.subr.bf16.mxu0 0
    %798 = vmatpush1.bf16.msra.mxu0 %v750
    %799 = vmatprep.mubr.bf16.mxu0 %v631
    %800 = vmatmul.mubr.bf16.gmra.mrb[0].mxu0 %v630
    %v801 = vpop.f32.mrb[0].mxu0
    %v802 = vadd.f32 %v669, %v801
    %v803 = vpop.f32.mrb[0].mxu0
    %v804 = vpop.f32.mrb[0].mxu0
    %v805 = vadd.f32 %v669, %v804
    %v806 = vpop.f32.mrb[0].mxu0
    %807 = vdwg.mxu0
    %v808 = vmax.f32 %v802, 0.0
    %v809 = vmax.f32 %v805, 0.0
    %v810 = vlaneseq
    %v811 = vshrl.u32 %v810, 7
    %v812 = vsub.s32 0, %v811
    %v813 = vrot.slane %v808, %v812
    %v814 = vlaneseq
    %v815 = vshrl.u32 %v814, 7
    %v816 = vsub.s32 0, %v815
    %v817 = vrot.slane %v809, %v816
    %v818 = vmul.f32 %v199, %v813
    %v819 = vmul.f32 %v204, %v817
    %v820 = vlaneseq
    %v821 = vshrl.u32 %v820, 7
    %v822 = vsub.s32 1, %v821
    %v823 = vrot.slane %v808, %v822
    %v824 = vlaneseq
    %v825 = vshrl.u32 %v824, 7
    %v826 = vsub.s32 1, %v825
    %v827 = vrot.slane %v809, %v826
    %v828 = vmul.f32 %v218, %v823
    %v829 = vmul.f32 %v222, %v827
    %v830 = vadd.f32 %v818, %v828
    %v831 = vadd.f32 %v819, %v829
    %v832 = vlaneseq
    %v833 = vshrl.u32 %v832, 7
    %v834 = vsub.s32 2, %v833
    %v835 = vrot.slane %v808, %v834
    %v836 = vlaneseq
    %v837 = vshrl.u32 %v836, 7
    %v838 = vsub.s32 2, %v837
    %v839 = vrot.slane %v809, %v838
    %v840 = vmul.f32 %v238, %v835
    %v841 = vmul.f32 %v242, %v839
    %v842 = vadd.f32 %v830, %v840
    %v843 = vadd.f32 %v831, %v841
    %v844 = vlaneseq
    %v845 = vshrl.u32 %v844, 7
    %v846 = vsub.s32 3, %v845
    %v847 = vrot.slane %v808, %v846
    %v848 = vlaneseq
    %v849 = vshrl.u32 %v848, 7
    %v850 = vsub.s32 3, %v849
    %v851 = vrot.slane %v809, %v850
    %v852 = vmul.f32 %v258, %v847
    %v853 = vmul.f32 %v262, %v851
    %v854 = vadd.f32 %v842, %v852
    %v855 = vadd.f32 %v843, %v853
    %v856 = vlaneseq
    %v857 = vshrl.u32 %v856, 7
    %v858 = vsub.s32 4, %v857
    %v859 = vrot.slane %v808, %v858
    %v860 = vlaneseq
    %v861 = vshrl.u32 %v860, 7
    %v862 = vsub.s32 4, %v861
    %v863 = vrot.slane %v809, %v862
    %v864 = vmul.f32 %v278, %v859
    %v865 = vmul.f32 %v282, %v863
    %v866 = vadd.f32 %v854, %v864
    %v867 = vadd.f32 %v855, %v865
    %v868 = vlaneseq
    %v869 = vshrl.u32 %v868, 7
    %v870 = vsub.s32 5, %v869
    %v871 = vrot.slane %v808, %v870
    %v872 = vlaneseq
    %v873 = vshrl.u32 %v872, 7
    %v874 = vsub.s32 5, %v873
    %v875 = vrot.slane %v809, %v874
    %v876 = vmul.f32 %v298, %v871
    %v877 = vmul.f32 %v302, %v875
    %v878 = vadd.f32 %v866, %v876
    %v879 = vadd.f32 %v867, %v877
    %v880 = vlaneseq
    %v881 = vshrl.u32 %v880, 7
    %v882 = vsub.s32 6, %v881
    %v883 = vrot.slane %v808, %v882
    %v884 = vlaneseq
    %v885 = vshrl.u32 %v884, 7
    %v886 = vsub.s32 6, %v885
    %v887 = vrot.slane %v809, %v886
    %v888 = vmul.f32 %v318, %v883
    %v889 = vmul.f32 %v322, %v887
    %v890 = vadd.f32 %v878, %v888
    %v891 = vadd.f32 %v879, %v889
    %v892 = vlaneseq
    %v893 = vshrl.u32 %v892, 7
    %v894 = vsub.s32 7, %v893
    %v895 = vrot.slane %v808, %v894
    %v896 = vlaneseq
    %v897 = vshrl.u32 %v896, 7
    %v898 = vsub.s32 7, %v897
    %v899 = vrot.slane %v809, %v898
    %v900 = vmul.f32 %v338, %v895
    %v901 = vmul.f32 %v342, %v899
    %v902 = vadd.f32 %v890, %v900
    %v903 = vadd.f32 %v891, %v901
    %v904 = vpack.c.bf16 %v809, %v808
    %v905 = vpack.c.bf16 %v903, %v902
    %v906 = vld [vmem:[#allocation10] sm:$0xff]
    %v907 = vld [vmem:[#allocation10 + $0x8] sm:$0xff]
    %v908 = vld [vmem:[#allocation10 + $0x10] sm:$0xff]
    %v909 = vld [vmem:[#allocation10 + $0x18] sm:$0xff]
    %v910 = vld [vmem:[#allocation10 + $0x20] sm:$0xff]
    %v911 = vld [vmem:[#allocation10 + $0x28] sm:$0xff]
    %v912 = vld [vmem:[#allocation10 + $0x30] sm:$0xff]
    %v913 = vld [vmem:[#allocation10 + $0x38] sm:$0xff]
    %v914 = vld [vmem:[#allocation10 + $0x40] sm:$0xff]
    %v915 = vld [vmem:[#allocation10 + $0x48] sm:$0xff]
    %v916 = vld [vmem:[#allocation10 + $0x50] sm:$0xff]
    %v917 = vld [vmem:[#allocation10 + $0x58] sm:$0xff]
    %v918 = vld [vmem:[#allocation10 + $0x60] sm:$0xff]
    %v919 = vld [vmem:[#allocation10 + $0x68] sm:$0xff]
    %v920 = vld [vmem:[#allocation10 + $0x70] sm:$0xff]
    %v921 = vld [vmem:[#allocation10 + $0x78] sm:$0xff]
    %v922 = vld [vmem:[#allocation10 + $0x80] sm:$0xff]
    %v923 = vld [vmem:[#allocation10 + $0x88] sm:$0xff]
    %v924 = vld [vmem:[#allocation10 + $0x90] sm:$0xff]
    %v925 = vld [vmem:[#allocation10 + $0x98] sm:$0xff]
    %v926 = vld [vmem:[#allocation10 + $0xa0] sm:$0xff]
    %v927 = vld [vmem:[#allocation10 + $0xa8] sm:$0xff]
    %v928 = vld [vmem:[#allocation10 + $0xb0] sm:$0xff]
    %v929 = vld [vmem:[#allocation10 + $0xb8] sm:$0xff]
    %v930 = vld [vmem:[#allocation10 + $0xc0] sm:$0xff]
    %v931 = vld [vmem:[#allocation10 + $0xc8] sm:$0xff]
    %v932 = vld [vmem:[#allocation10 + $0xd0] sm:$0xff]
    %v933 = vld [vmem:[#allocation10 + $0xd8] sm:$0xff]
    %v934 = vld [vmem:[#allocation10 + $0xe0] sm:$0xff]
    %v935 = vld [vmem:[#allocation10 + $0xe8] sm:$0xff]
    %v936 = vld [vmem:[#allocation10 + $0xf0] sm:$0xff]
    %v937 = vld [vmem:[#allocation10 + $0xf8] sm:$0xff]
    %v938 = vld [vmem:[#allocation11] sm:$0x3]
    %v940 = vlaneseq
    %v941 = vshrl.u32 %v940, 7
    %v942 = vsub.s32 0, %v941
    %v943 = vrot.slane %v938, %v942
    %v944 = vlaneseq
    %v945 = vshrl.u32 %v944, 7
    %v946 = vsub.s32 1, %v945
    %v947 = vrot.slane %v938, %v946
    %v982 = vunpack.c.l.b16 %v906
    %v983 = vunpack.c.h.b16 %v906
    %v984 = vunpack.c.l.b16 %v907
    %v985 = vunpack.c.h.b16 %v907
    %v986 = vunpack.c.l.b16 %v908
    %v987 = vunpack.c.h.b16 %v908
    %v988 = vunpack.c.l.b16 %v909
    %v989 = vunpack.c.h.b16 %v909
    %v990 = vunpack.c.l.b16 %v910
    %v991 = vunpack.c.h.b16 %v910
    %v992 = vunpack.c.l.b16 %v911
    %v993 = vunpack.c.h.b16 %v911
    %v994 = vunpack.c.l.b16 %v912
    %v995 = vunpack.c.h.b16 %v912
    %v996 = vunpack.c.l.b16 %v913
    %v997 = vunpack.c.h.b16 %v913
    %v998 = vunpack.c.l.b16 %v914
    %v999 = vunpack.c.h.b16 %v914
    %v1000 = vunpack.c.l.b16 %v915
    %v1001 = vunpack.c.h.b16 %v915
    %v1002 = vunpack.c.l.b16 %v916
    %v1003 = vunpack.c.h.b16 %v916
    %v1004 = vunpack.c.l.b16 %v917
    %v1005 = vunpack.c.h.b16 %v917
    %v1006 = vunpack.c.l.b16 %v918
    %v1007 = vunpack.c.h.b16 %v918
    %v1008 = vunpack.c.l.b16 %v919
    %v1009 = vunpack.c.h.b16 %v919
    %v1010 = vunpack.c.l.b16 %v920
    %v1011 = vunpack.c.h.b16 %v920
    %v1012 = vunpack.c.l.b16 %v921
    %v1013 = vunpack.c.h.b16 %v921
    %v1014 = vunpack.c.l.b16 %v922
    %v1015 = vunpack.c.h.b16 %v922
    %v1016 = vunpack.c.l.b16 %v923
    %v1017 = vunpack.c.h.b16 %v923
    %v1018 = vunpack.c.l.b16 %v924
    %v1019 = vunpack.c.h.b16 %v924
    %v1020 = vunpack.c.l.b16 %v925
    %v1021 = vunpack.c.h.b16 %v925
    %v1022 = vunpack.c.l.b16 %v926
    %v1023 = vunpack.c.h.b16 %v926
    %v1024 = vunpack.c.l.b16 %v927
    %v1025 = vunpack.c.h.b16 %v927
    %v1026 = vunpack.c.l.b16 %v928
    %v1027 = vunpack.c.h.b16 %v928
    %v1028 = vunpack.c.l.b16 %v929
    %v1029 = vunpack.c.h.b16 %v929
    %v1030 = vunpack.c.l.b16 %v930
    %v1031 = vunpack.c.h.b16 %v930
    %v1032 = vunpack.c.l.b16 %v931
    %v1033 = vunpack.c.h.b16 %v931
    %v1034 = vunpack.c.l.b16 %v932
    %v1035 = vunpack.c.h.b16 %v932
    %v1036 = vunpack.c.l.b16 %v933
    %v1037 = vunpack.c.h.b16 %v933
    %v1038 = vunpack.c.l.b16 %v934
    %v1039 = vunpack.c.h.b16 %v934
    %v1040 = vunpack.c.l.b16 %v935
    %v1041 = vunpack.c.h.b16 %v935
    %v1042 = vunpack.c.l.b16 %v936
    %v1043 = vunpack.c.h.b16 %v936
    %v1044 = vunpack.c.l.b16 %v937
    %v1045 = vunpack.c.h.b16 %v937
    %v1046 = vpack.c.b16 %v984, %v982
    %v1047 = vpack.c.b16 %v985, %v983
    %v1048 = vpack.c.b16 %v988, %v986
    %v1049 = vpack.c.b16 %v989, %v987
    %v1050 = vpack.c.b16 %v992, %v990
    %v1051 = vpack.c.b16 %v993, %v991
    %v1052 = vpack.c.b16 %v996, %v994
    %v1053 = vpack.c.b16 %v997, %v995
    %v1054 = vpack.c.b16 %v1000, %v998
    %v1055 = vpack.c.b16 %v1001, %v999
    %v1056 = vpack.c.b16 %v1004, %v1002
    %v1057 = vpack.c.b16 %v1005, %v1003
    %v1058 = vpack.c.b16 %v1008, %v1006
    %v1059 = vpack.c.b16 %v1009, %v1007
    %v1060 = vpack.c.b16 %v1012, %v1010
    %v1061 = vpack.c.b16 %v1013, %v1011
    %v1062 = vpack.c.b16 %v1016, %v1014
    %v1063 = vpack.c.b16 %v1017, %v1015
    %v1064 = vpack.c.b16 %v1020, %v1018
    %v1065 = vpack.c.b16 %v1021, %v1019
    %v1066 = vpack.c.b16 %v1024, %v1022
    %v1067 = vpack.c.b16 %v1025, %v1023
    %v1068 = vpack.c.b16 %v1028, %v1026
    %v1069 = vpack.c.b16 %v1029, %v1027
    %v1070 = vpack.c.b16 %v1032, %v1030
    %v1071 = vpack.c.b16 %v1033, %v1031
    %v1072 = vpack.c.b16 %v1036, %v1034
    %v1073 = vpack.c.b16 %v1037, %v1035
    %v1074 = vpack.c.b16 %v1040, %v1038
    %v1075 = vpack.c.b16 %v1041, %v1039
    %v1076 = vpack.c.b16 %v1044, %v1042
    %v1077 = vpack.c.b16 %v1045, %v1043
    %1110 = vmatprep.subr.bf16.mxu0 %v1047
    %1111 = vmatpush1.bf16.msra.mxu0 %v1046
    %1112 = vmatprep.subr.bf16.mxu0 %v1049
    %1113 = vmatpush1.bf16.msra.mxu0 %v1048
    %1114 = vmatprep.subr.bf16.mxu0 %v1051
    %1115 = vmatpush1.bf16.msra.mxu0 %v1050
    %1116 = vmatprep.subr.bf16.mxu0 %v1053
    %1117 = vmatpush1.bf16.msra.mxu0 %v1052
    %1118 = vmatprep.subr.bf16.mxu0 %v1055
    %1119 = vmatpush1.bf16.msra.mxu0 %v1054
    %1120 = vmatprep.subr.bf16.mxu0 %v1057
    %1121 = vmatpush1.bf16.msra.mxu0 %v1056
    %1122 = vmatprep.subr.bf16.mxu0 %v1059
    %1123 = vmatpush1.bf16.msra.mxu0 %v1058
    %1124 = vmatprep.subr.bf16.mxu0 %v1061
    %1125 = vmatpush1.bf16.msra.mxu0 %v1060
    %1126 = vmatprep.subr.bf16.mxu0 %v1063
    %1127 = vmatpush1.bf16.msra.mxu0 %v1062
    %1128 = vmatprep.subr.bf16.mxu0 %v1065
    %1129 = vmatpush1.bf16.msra.mxu0 %v1064
    %1130 = vmatprep.subr.bf16.mxu0 %v1067
    %1131 = vmatpush1.bf16.msra.mxu0 %v1066
    %1132 = vmatprep.subr.bf16.mxu0 %v1069
    %1133 = vmatpush1.bf16.msra.mxu0 %v1068
    %1134 = vmatprep.subr.bf16.mxu0 %v1071
    %1135 = vmatpush1.bf16.msra.mxu0 %v1070
    %1136 = vmatprep.subr.bf16.mxu0 %v1073
    %1137 = vmatpush1.bf16.msra.mxu0 %v1072
    %1138 = vmatprep.subr.bf16.mxu0 %v1075
    %1139 = vmatpush1.bf16.msra.mxu0 %v1074
    %1140 = vmatprep.subr.bf16.mxu0 %v1077
    %1141 = vmatpush1.bf16.msra.mxu0 %v1076
    %1142 = vmatprep.mubr.bf16.mxu0 %v905
    %1143 = vmatmul.mubr.bf16.gmra.mrb[0].mxu0 %v904
    %v1144 = vpop.f32.mrb[0].mxu0
    %v1145 = vadd.f32 %v943, %v1144
    %v1146 = vpop.f32.mrb[0].mxu0
    %v1147 = vadd.f32 %v947, %v1146
    %v1148 = vpop.f32.mrb[0].mxu0
    %v1149 = vadd.f32 %v943, %v1148
    %v1150 = vpop.f32.mrb[0].mxu0
    %v1151 = vadd.f32 %v947, %v1150
    %1152 = vdwg.mxu0
    %v1153 = vmax.f32 %v1145, 0.0
    %v1154 = vmax.f32 %v1147, 0.0
    %v1155 = vmax.f32 %v1149, 0.0
    %v1156 = vmax.f32 %v1151, 0.0
    %v1157 = vlaneseq
    %v1158 = vshrl.u32 %v1157, 7
    %v1159 = vsub.s32 0, %v1158
    %v1160 = vrot.slane %v1153, %v1159
    %v1161 = vlaneseq
    %v1162 = vshrl.u32 %v1161, 7
    %v1163 = vsub.s32 0, %v1162
    %v1164 = vrot.slane %v1154, %v1163
    %v1165 = vlaneseq
    %v1166 = vshrl.u32 %v1165, 7
    %v1167 = vsub.s32 0, %v1166
    %v1168 = vrot.slane %v1155, %v1167
    %v1169 = vlaneseq
    %v1170 = vshrl.u32 %v1169, 7
    %v1171 = vsub.s32 0, %v1170
    %v1172 = vrot.slane %v1156, %v1171
    %v1173 = vmul.f32 %v199, %v1160
    %v1174 = vmul.f32 %v199, %v1164
    %v1175 = vmul.f32 %v204, %v1168
    %v1176 = vmul.f32 %v204, %v1172
    %v1177 = vlaneseq
    %v1178 = vshrl.u32 %v1177, 7
    %v1179 = vsub.s32 1, %v1178
    %v1180 = vrot.slane %v1153, %v1179
    %v1181 = vlaneseq
    %v1182 = vshrl.u32 %v1181, 7
    %v1183 = vsub.s32 1, %v1182
    %v1184 = vrot.slane %v1154, %v1183
    %v1185 = vlaneseq
    %v1186 = vshrl.u32 %v1185, 7
    %v1187 = vsub.s32 1, %v1186
    %v1188 = vrot.slane %v1155, %v1187
    %v1189 = vlaneseq
    %v1190 = vshrl.u32 %v1189, 7
    %v1191 = vsub.s32 1, %v1190
    %v1192 = vrot.slane %v1156, %v1191
    %v1193 = vmul.f32 %v218, %v1180
    %v1194 = vmul.f32 %v218, %v1184
    %v1195 = vmul.f32 %v222, %v1188
    %v1196 = vmul.f32 %v222, %v1192
    %v1197 = vadd.f32 %v1173, %v1193
    %v1198 = vadd.f32 %v1174, %v1194
    %v1199 = vadd.f32 %v1175, %v1195
    %v1200 = vadd.f32 %v1176, %v1196
    %v1201 = vlaneseq
    %v1202 = vshrl.u32 %v1201, 7
    %v1203 = vsub.s32 2, %v1202
    %v1204 = vrot.slane %v1153, %v1203
    %v1205 = vlaneseq
    %v1206 = vshrl.u32 %v1205, 7
    %v1207 = vsub.s32 2, %v1206
    %v1208 = vrot.slane %v1154, %v1207
    %v1209 = vlaneseq
    %v1210 = vshrl.u32 %v1209, 7
    %v1211 = vsub.s32 2, %v1210
    %v1212 = vrot.slane %v1155, %v1211
    %v1213 = vlaneseq
    %v1214 = vshrl.u32 %v1213, 7
    %v1215 = vsub.s32 2, %v1214
    %v1216 = vrot.slane %v1156, %v1215
    %v1217 = vmul.f32 %v238, %v1204
    %v1218 = vmul.f32 %v238, %v1208
    %v1219 = vmul.f32 %v242, %v1212
    %v1220 = vmul.f32 %v242, %v1216
    %v1221 = vadd.f32 %v1197, %v1217
    %v1222 = vadd.f32 %v1198, %v1218
    %v1223 = vadd.f32 %v1199, %v1219
    %v1224 = vadd.f32 %v1200, %v1220
    %v1225 = vlaneseq
    %v1226 = vshrl.u32 %v1225, 7
    %v1227 = vsub.s32 3, %v1226
    %v1228 = vrot.slane %v1153, %v1227
    %v1229 = vlaneseq
    %v1230 = vshrl.u32 %v1229, 7
    %v1231 = vsub.s32 3, %v1230
    %v1232 = vrot.slane %v1154, %v1231
    %v1233 = vlaneseq
    %v1234 = vshrl.u32 %v1233, 7
    %v1235 = vsub.s32 3, %v1234
    %v1236 = vrot.slane %v1155, %v1235
    %v1237 = vlaneseq
    %v1238 = vshrl.u32 %v1237, 7
    %v1239 = vsub.s32 3, %v1238
    %v1240 = vrot.slane %v1156, %v1239
    %v1241 = vmul.f32 %v258, %v1228
    %v1242 = vmul.f32 %v258, %v1232
    %v1243 = vmul.f32 %v262, %v1236
    %v1244 = vmul.f32 %v262, %v1240
    %v1245 = vadd.f32 %v1221, %v1241
    %v1246 = vadd.f32 %v1222, %v1242
    %v1247 = vadd.f32 %v1223, %v1243
    %v1248 = vadd.f32 %v1224, %v1244
    %v1249 = vlaneseq
    %v1250 = vshrl.u32 %v1249, 7
    %v1251 = vsub.s32 4, %v1250
    %v1252 = vrot.slane %v1153, %v1251
    %v1253 = vlaneseq
    %v1254 = vshrl.u32 %v1253, 7
    %v1255 = vsub.s32 4, %v1254
    %v1256 = vrot.slane %v1154, %v1255
    %v1257 = vlaneseq
    %v1258 = vshrl.u32 %v1257, 7
    %v1259 = vsub.s32 4, %v1258
    %v1260 = vrot.slane %v1155, %v1259
    %v1261 = vlaneseq
    %v1262 = vshrl.u32 %v1261, 7
    %v1263 = vsub.s32 4, %v1262
    %v1264 = vrot.slane %v1156, %v1263
    %v1265 = vmul.f32 %v278, %v1252
    %v1266 = vmul.f32 %v278, %v1256
    %v1267 = vmul.f32 %v282, %v1260
    %v1268 = vmul.f32 %v282, %v1264
    %v1269 = vadd.f32 %v1245, %v1265
    %v1270 = vadd.f32 %v1246, %v1266
    %v1271 = vadd.f32 %v1247, %v1267
    %v1272 = vadd.f32 %v1248, %v1268
    %v1273 = vlaneseq
    %v1274 = vshrl.u32 %v1273, 7
    %v1275 = vsub.s32 5, %v1274
    %v1276 = vrot.slane %v1153, %v1275
    %v1277 = vlaneseq
    %v1278 = vshrl.u32 %v1277, 7
    %v1279 = vsub.s32 5, %v1278
    %v1280 = vrot.slane %v1154, %v1279
    %v1281 = vlaneseq
    %v1282 = vshrl.u32 %v1281, 7
    %v1283 = vsub.s32 5, %v1282
    %v1284 = vrot.slane %v1155, %v1283
    %v1285 = vlaneseq
    %v1286 = vshrl.u32 %v1285, 7
    %v1287 = vsub.s32 5, %v1286
    %v1288 = vrot.slane %v1156, %v1287
    %v1289 = vmul.f32 %v298, %v1276
    %v1290 = vmul.f32 %v298, %v1280
    %v1291 = vmul.f32 %v302, %v1284
    %v1292 = vmul.f32 %v302, %v1288
    %v1293 = vadd.f32 %v1269, %v1289
    %v1294 = vadd.f32 %v1270, %v1290
    %v1295 = vadd.f32 %v1271, %v1291
    %v1296 = vadd.f32 %v1272, %v1292
    %v1297 = vlaneseq
    %v1298 = vshrl.u32 %v1297, 7
    %v1299 = vsub.s32 6, %v1298
    %v1300 = vrot.slane %v1153, %v1299
    %v1301 = vlaneseq
    %v1302 = vshrl.u32 %v1301, 7
    %v1303 = vsub.s32 6, %v1302
    %v1304 = vrot.slane %v1154, %v1303
    %v1305 = vlaneseq
    %v1306 = vshrl.u32 %v1305, 7
    %v1307 = vsub.s32 6, %v1306
    %v1308 = vrot.slane %v1155, %v1307
    %v1309 = vlaneseq
    %v1310 = vshrl.u32 %v1309, 7
    %v1311 = vsub.s32 6, %v1310
    %v1312 = vrot.slane %v1156, %v1311
    %v1313 = vmul.f32 %v318, %v1300
    %v1314 = vmul.f32 %v318, %v1304
    %v1315 = vmul.f32 %v322, %v1308
    %v1316 = vmul.f32 %v322, %v1312
    %v1317 = vadd.f32 %v1293, %v1313
    %v1318 = vadd.f32 %v1294, %v1314
    %v1319 = vadd.f32 %v1295, %v1315
    %v1320 = vadd.f32 %v1296, %v1316
    %v1321 = vlaneseq
    %v1322 = vshrl.u32 %v1321, 7
    %v1323 = vsub.s32 7, %v1322
    %v1324 = vrot.slane %v1153, %v1323
    %v1325 = vlaneseq
    %v1326 = vshrl.u32 %v1325, 7
    %v1327 = vsub.s32 7, %v1326
    %v1328 = vrot.slane %v1154, %v1327
    %v1329 = vlaneseq
    %v1330 = vshrl.u32 %v1329, 7
    %v1331 = vsub.s32 7, %v1330
    %v1332 = vrot.slane %v1155, %v1331
    %v1333 = vlaneseq
    %v1334 = vshrl.u32 %v1333, 7
    %v1335 = vsub.s32 7, %v1334
    %v1336 = vrot.slane %v1156, %v1335
    %v1337 = vmul.f32 %v338, %v1324
    %v1338 = vmul.f32 %v338, %v1328
    %v1339 = vmul.f32 %v342, %v1332
    %v1340 = vmul.f32 %v342, %v1336
    %v1341 = vadd.f32 %v1317, %v1337
    %v1342 = vadd.f32 %v1318, %v1338
    %v1343 = vadd.f32 %v1319, %v1339
    %v1344 = vadd.f32 %v1320, %v1340
    %v1345 = vpack.c.bf16 %v1155, %v1153
    %v1346 = vpack.c.bf16 %v1156, %v1154
    %v1347 = vpack.c.bf16 %v1343, %v1341
    %v1348 = vpack.c.bf16 %v1344, %v1342
    %v1349 = vld [vmem:[%s8] sm:$0xff]
    %v1350 = vld [vmem:[%s8 + $0x8] sm:$0xff]
    %v1351 = vld [vmem:[%s8 + $0x10] sm:$0xff]
    %v1352 = vld [vmem:[%s8 + $0x18] sm:$0xff]
    %v1353 = vld [vmem:[%s8 + $0x20] sm:$0xff]
    %v1354 = vld [vmem:[%s8 + $0x28] sm:$0xff]
    %v1355 = vld [vmem:[%s8 + $0x30] sm:$0xff]
    %v1356 = vld [vmem:[%s8 + $0x38] sm:$0xff]
    %v1357 = vld [vmem:[%s8 + $0x40] sm:$0xff]
    %v1358 = vld [vmem:[%s8 + $0x48] sm:$0xff]
    %v1359 = vld [vmem:[%s8 + $0x50] sm:$0xff]
    %v1360 = vld [vmem:[%s8 + $0x58] sm:$0xff]
    %v1361 = vld [vmem:[%s8 + $0x60] sm:$0xff]
    %v1362 = vld [vmem:[%s8 + $0x68] sm:$0xff]
    %v1363 = vld [vmem:[%s8 + $0x70] sm:$0xff]
    %v1364 = vld [vmem:[%s8 + $0x78] sm:$0xff]
    %v1365 = vld [vmem:[%s8 + $0x80] sm:$0xff]
    %v1366 = vld [vmem:[%s8 + $0x88] sm:$0xff]
    %v1367 = vld [vmem:[%s8 + $0x90] sm:$0xff]
    %v1368 = vld [vmem:[%s8 + $0x98] sm:$0xff]
    %v1369 = vld [vmem:[%s8 + $0xa0] sm:$0xff]
    %v1370 = vld [vmem:[%s8 + $0xa8] sm:$0xff]
    %v1371 = vld [vmem:[%s8 + $0xb0] sm:$0xff]
    %v1372 = vld [vmem:[%s8 + $0xb8] sm:$0xff]
    %v1373 = vld [vmem:[%s8 + $0xc0] sm:$0xff]
    %v1374 = vld [vmem:[%s8 + $0xc8] sm:$0xff]
    %v1375 = vld [vmem:[%s8 + $0xd0] sm:$0xff]
    %v1376 = vld [vmem:[%s8 + $0xd8] sm:$0xff]
    %v1377 = vld [vmem:[%s8 + $0xe0] sm:$0xff]
    %v1378 = vld [vmem:[%s8 + $0xe8] sm:$0xff]
    %v1379 = vld [vmem:[%s8 + $0xf0] sm:$0xff]
    %v1380 = vld [vmem:[%s8 + $0xf8] sm:$0xff]
    %v1381 = vld [vmem:[%s8 + $0x100] sm:$0xff]
    %v1382 = vld [vmem:[%s8 + $0x108] sm:$0xff]
    %v1383 = vld [vmem:[%s8 + $0x110] sm:$0xff]
    %v1384 = vld [vmem:[%s8 + $0x118] sm:$0xff]
    %v1385 = vld [vmem:[%s8 + $0x120] sm:$0xff]
    %v1386 = vld [vmem:[%s8 + $0x128] sm:$0xff]
    %v1387 = vld [vmem:[%s8 + $0x130] sm:$0xff]
    %v1388 = vld [vmem:[%s8 + $0x138] sm:$0xff]
    %v1389 = vld [vmem:[%s8 + $0x140] sm:$0xff]
    %v1390 = vld [vmem:[%s8 + $0x148] sm:$0xff]
    %v1391 = vld [vmem:[%s8 + $0x150] sm:$0xff]
    %v1392 = vld [vmem:[%s8 + $0x158] sm:$0xff]
    %v1393 = vld [vmem:[%s8 + $0x160] sm:$0xff]
    %v1394 = vld [vmem:[%s8 + $0x168] sm:$0xff]
    %v1395 = vld [vmem:[%s8 + $0x170] sm:$0xff]
    %v1396 = vld [vmem:[%s8 + $0x178] sm:$0xff]
    %v1397 = vld [vmem:[%s8 + $0x180] sm:$0xff]
    %v1398 = vld [vmem:[%s8 + $0x188] sm:$0xff]
    %v1399 = vld [vmem:[%s8 + $0x190] sm:$0xff]
    %v1400 = vld [vmem:[%s8 + $0x198] sm:$0xff]
    %v1401 = vld [vmem:[%s8 + $0x1a0] sm:$0xff]
    %v1402 = vld [vmem:[%s8 + $0x1a8] sm:$0xff]
    %v1403 = vld [vmem:[%s8 + $0x1b0] sm:$0xff]
    %v1404 = vld [vmem:[%s8 + $0x1b8] sm:$0xff]
    %v1405 = vld [vmem:[%s8 + $0x1c0] sm:$0xff]
    %v1406 = vld [vmem:[%s8 + $0x1c8] sm:$0xff]
    %v1407 = vld [vmem:[%s8 + $0x1d0] sm:$0xff]
    %v1408 = vld [vmem:[%s8 + $0x1d8] sm:$0xff]
    %v1409 = vld [vmem:[%s8 + $0x1e0] sm:$0xff]
    %v1410 = vld [vmem:[%s8 + $0x1e8] sm:$0xff]
    %v1411 = vld [vmem:[%s8 + $0x1f0] sm:$0xff]
    %v1412 = vld [vmem:[%s8 + $0x1f8] sm:$0xff]
    %v1413 = vld [vmem:[#allocation13] sm:$0x3]
    %v1415 = vlaneseq
    %v1416 = vshrl.u32 %v1415, 7
    %v1417 = vsub.s32 0, %v1416
    %v1418 = vrot.slane %v1413, %v1417
    %v1419 = vlaneseq
    %v1420 = vshrl.u32 %v1419, 7
    %v1421 = vsub.s32 1, %v1420
    %v1422 = vrot.slane %v1413, %v1421
    %v1489 = vunpack.c.l.b16 %v1349
    %v1490 = vunpack.c.h.b16 %v1349
    %v1491 = vunpack.c.l.b16 %v1350
    %v1492 = vunpack.c.h.b16 %v1350
    %v1493 = vunpack.c.l.b16 %v1351
    %v1494 = vunpack.c.h.b16 %v1351
    %v1495 = vunpack.c.l.b16 %v1352
    %v1496 = vunpack.c.h.b16 %v1352
    %v1497 = vunpack.c.l.b16 %v1353
    %v1498 = vunpack.c.h.b16 %v1353
    %v1499 = vunpack.c.l.b16 %v1354
    %v1500 = vunpack.c.h.b16 %v1354
    %v1501 = vunpack.c.l.b16 %v1355
    %v1502 = vunpack.c.h.b16 %v1355
    %v1503 = vunpack.c.l.b16 %v1356
    %v1504 = vunpack.c.h.b16 %v1356
    %v1505 = vunpack.c.l.b16 %v1357
    %v1506 = vunpack.c.h.b16 %v1357
    %v1507 = vunpack.c.l.b16 %v1358
    %v1508 = vunpack.c.h.b16 %v1358
    %v1509 = vunpack.c.l.b16 %v1359
    %v1510 = vunpack.c.h.b16 %v1359
    %v1511 = vunpack.c.l.b16 %v1360
    %v1512 = vunpack.c.h.b16 %v1360
    %v1513 = vunpack.c.l.b16 %v1361
    %v1514 = vunpack.c.h.b16 %v1361
    %v1515 = vunpack.c.l.b16 %v1362
    %v1516 = vunpack.c.h.b16 %v1362
    %v1517 = vunpack.c.l.b16 %v1363
    %v1518 = vunpack.c.h.b16 %v1363
    %v1519 = vunpack.c.l.b16 %v1364
    %v1520 = vunpack.c.h.b16 %v1364
    %v1521 = vunpack.c.l.b16 %v1365
    %v1522 = vunpack.c.h.b16 %v1365
    %v1523 = vunpack.c.l.b16 %v1366
    %v1524 = vunpack.c.h.b16 %v1366
    %v1525 = vunpack.c.l.b16 %v1367
    %v1526 = vunpack.c.h.b16 %v1367
    %v1527 = vunpack.c.l.b16 %v1368
    %v1528 = vunpack.c.h.b16 %v1368
    %v1529 = vunpack.c.l.b16 %v1369
    %v1530 = vunpack.c.h.b16 %v1369
    %v1531 = vunpack.c.l.b16 %v1370
    %v1532 = vunpack.c.h.b16 %v1370
    %v1533 = vunpack.c.l.b16 %v1371
    %v1534 = vunpack.c.h.b16 %v1371
    %v1535 = vunpack.c.l.b16 %v1372
    %v1536 = vunpack.c.h.b16 %v1372
    %v1537 = vunpack.c.l.b16 %v1373
    %v1538 = vunpack.c.h.b16 %v1373
    %v1539 = vunpack.c.l.b16 %v1374
    %v1540 = vunpack.c.h.b16 %v1374
    %v1541 = vunpack.c.l.b16 %v1375
    %v1542 = vunpack.c.h.b16 %v1375
    %v1543 = vunpack.c.l.b16 %v1376
    %v1544 = vunpack.c.h.b16 %v1376
    %v1545 = vunpack.c.l.b16 %v1377
    %v1546 = vunpack.c.h.b16 %v1377
    %v1547 = vunpack.c.l.b16 %v1378
    %v1548 = vunpack.c.h.b16 %v1378
    %v1549 = vunpack.c.l.b16 %v1379
    %v1550 = vunpack.c.h.b16 %v1379
    %v1551 = vunpack.c.l.b16 %v1380
    %v1552 = vunpack.c.h.b16 %v1380
    %v1553 = vunpack.c.l.b16 %v1381
    %v1554 = vunpack.c.h.b16 %v1381
    %v1555 = vunpack.c.l.b16 %v1382
    %v1556 = vunpack.c.h.b16 %v1382
    %v1557 = vunpack.c.l.b16 %v1383
    %v1558 = vunpack.c.h.b16 %v1383
    %v1559 = vunpack.c.l.b16 %v1384
    %v1560 = vunpack.c.h.b16 %v1384
    %v1561 = vunpack.c.l.b16 %v1385
    %v1562 = vunpack.c.h.b16 %v1385
    %v1563 = vunpack.c.l.b16 %v1386
    %v1564 = vunpack.c.h.b16 %v1386
    %v1565 = vunpack.c.l.b16 %v1387
    %v1566 = vunpack.c.h.b16 %v1387
    %v1567 = vunpack.c.l.b16 %v1388
    %v1568 = vunpack.c.h.b16 %v1388
    %v1569 = vunpack.c.l.b16 %v1389
    %v1570 = vunpack.c.h.b16 %v1389
    %v1571 = vunpack.c.l.b16 %v1390
    %v1572 = vunpack.c.h.b16 %v1390
    %v1573 = vunpack.c.l.b16 %v1391
    %v1574 = vunpack.c.h.b16 %v1391
    %v1575 = vunpack.c.l.b16 %v1392
    %v1576 = vunpack.c.h.b16 %v1392
    %v1577 = vunpack.c.l.b16 %v1393
    %v1578 = vunpack.c.h.b16 %v1393
    %v1579 = vunpack.c.l.b16 %v1394
    %v1580 = vunpack.c.h.b16 %v1394
    %v1581 = vunpack.c.l.b16 %v1395
    %v1582 = vunpack.c.h.b16 %v1395
    %v1583 = vunpack.c.l.b16 %v1396
    %v1584 = vunpack.c.h.b16 %v1396
    %v1585 = vunpack.c.l.b16 %v1397
    %v1586 = vunpack.c.h.b16 %v1397
    %v1587 = vunpack.c.l.b16 %v1398
    %v1588 = vunpack.c.h.b16 %v1398
    %v1589 = vunpack.c.l.b16 %v1399
    %v1590 = vunpack.c.h.b16 %v1399
    %v1591 = vunpack.c.l.b16 %v1400
    %v1592 = vunpack.c.h.b16 %v1400
    %v1593 = vunpack.c.l.b16 %v1401
    %v1594 = vunpack.c.h.b16 %v1401
    %v1595 = vunpack.c.l.b16 %v1402
    %v1596 = vunpack.c.h.b16 %v1402
    %v1597 = vunpack.c.l.b16 %v1403
    %v1598 = vunpack.c.h.b16 %v1403
    %v1599 = vunpack.c.l.b16 %v1404
    %v1600 = vunpack.c.h.b16 %v1404
    %v1601 = vunpack.c.l.b16 %v1405
    %v1602 = vunpack.c.h.b16 %v1405
    %v1603 = vunpack.c.l.b16 %v1406
    %v1604 = vunpack.c.h.b16 %v1406
    %v1605 = vunpack.c.l.b16 %v1407
    %v1606 = vunpack.c.h.b16 %v1407
    %v1607 = vunpack.c.l.b16 %v1408
    %v1608 = vunpack.c.h.b16 %v1408
    %v1609 = vunpack.c.l.b16 %v1409
    %v1610 = vunpack.c.h.b16 %v1409
    %v1611 = vunpack.c.l.b16 %v1410
    %v1612 = vunpack.c.h.b16 %v1410
    %v1613 = vunpack.c.l.b16 %v1411
    %v1614 = vunpack.c.h.b16 %v1411
    %v1615 = vunpack.c.l.b16 %v1412
    %v1616 = vunpack.c.h.b16 %v1412
    %v1617 = vpack.c.b16 %v1491, %v1489
    %v1618 = vpack.c.b16 %v1492, %v1490
    %v1619 = vpack.c.b16 %v1495, %v1493
    %v1620 = vpack.c.b16 %v1496, %v1494
    %v1621 = vpack.c.b16 %v1499, %v1497
    %v1622 = vpack.c.b16 %v1500, %v1498
    %v1623 = vpack.c.b16 %v1503, %v1501
    %v1624 = vpack.c.b16 %v1504, %v1502
    %v1625 = vpack.c.b16 %v1507, %v1505
    %v1626 = vpack.c.b16 %v1508, %v1506
    %v1627 = vpack.c.b16 %v1511, %v1509
    %v1628 = vpack.c.b16 %v1512, %v1510
    %v1629 = vpack.c.b16 %v1515, %v1513
    %v1630 = vpack.c.b16 %v1516, %v1514
    %v1631 = vpack.c.b16 %v1519, %v1517
    %v1632 = vpack.c.b16 %v1520, %v1518
    %v1633 = vpack.c.b16 %v1523, %v1521
    %v1634 = vpack.c.b16 %v1524, %v1522
    %v1635 = vpack.c.b16 %v1527, %v1525
    %v1636 = vpack.c.b16 %v1528, %v1526
    %v1637 = vpack.c.b16 %v1531, %v1529
    %v1638 = vpack.c.b16 %v1532, %v1530
    %v1639 = vpack.c.b16 %v1535, %v1533
    %v1640 = vpack.c.b16 %v1536, %v1534
    %v1641 = vpack.c.b16 %v1539, %v1537
    %v1642 = vpack.c.b16 %v1540, %v1538
    %v1643 = vpack.c.b16 %v1543, %v1541
    %v1644 = vpack.c.b16 %v1544, %v1542
    %v1645 = vpack.c.b16 %v1547, %v1545
    %v1646 = vpack.c.b16 %v1548, %v1546
    %v1647 = vpack.c.b16 %v1551, %v1549
    %v1648 = vpack.c.b16 %v1552, %v1550
    %v1649 = vpack.c.b16 %v1555, %v1553
    %v1650 = vpack.c.b16 %v1556, %v1554
    %v1651 = vpack.c.b16 %v1559, %v1557
    %v1652 = vpack.c.b16 %v1560, %v1558
    %v1653 = vpack.c.b16 %v1563, %v1561
    %v1654 = vpack.c.b16 %v1564, %v1562
    %v1655 = vpack.c.b16 %v1567, %v1565
    %v1656 = vpack.c.b16 %v1568, %v1566
    %v1657 = vpack.c.b16 %v1571, %v1569
    %v1658 = vpack.c.b16 %v1572, %v1570
    %v1659 = vpack.c.b16 %v1575, %v1573
    %v1660 = vpack.c.b16 %v1576, %v1574
    %v1661 = vpack.c.b16 %v1579, %v1577
    %v1662 = vpack.c.b16 %v1580, %v1578
    %v1663 = vpack.c.b16 %v1583, %v1581
    %v1664 = vpack.c.b16 %v1584, %v1582
    %v1665 = vpack.c.b16 %v1587, %v1585
    %v1666 = vpack.c.b16 %v1588, %v1586
    %v1667 = vpack.c.b16 %v1591, %v1589
    %v1668 = vpack.c.b16 %v1592, %v1590
    %v1669 = vpack.c.b16 %v1595, %v1593
    %v1670 = vpack.c.b16 %v1596, %v1594
    %v1671 = vpack.c.b16 %v1599, %v1597
    %v1672 = vpack.c.b16 %v1600, %v1598
    %v1673 = vpack.c.b16 %v1603, %v1601
    %v1674 = vpack.c.b16 %v1604, %v1602
    %v1675 = vpack.c.b16 %v1607, %v1605
    %v1676 = vpack.c.b16 %v1608, %v1606
    %v1677 = vpack.c.b16 %v1611, %v1609
    %v1678 = vpack.c.b16 %v1612, %v1610
    %v1679 = vpack.c.b16 %v1615, %v1613
    %v1680 = vpack.c.b16 %v1616, %v1614
    %1745 = vmatprep.subr.bf16.mxu0 %v1618
    %1746 = vmatpush1.bf16.msra.mxu0 %v1617
    %1747 = vmatprep.subr.bf16.mxu0 %v1620
    %1748 = vmatpush1.bf16.msra.mxu0 %v1619
    %1749 = vmatprep.subr.bf16.mxu0 %v1622
    %1750 = vmatpush1.bf16.msra.mxu0 %v1621
    %1751 = vmatprep.subr.bf16.mxu0 %v1624
    %1752 = vmatpush1.bf16.msra.mxu0 %v1623
    %1753 = vmatprep.subr.bf16.mxu0 %v1626
    %1754 = vmatpush1.bf16.msra.mxu0 %v1625
    %1755 = vmatprep.subr.bf16.mxu0 %v1628
    %1756 = vmatpush1.bf16.msra.mxu0 %v1627
    %1757 = vmatprep.subr.bf16.mxu0 %v1630
    %1758 = vmatpush1.bf16.msra.mxu0 %v1629
    %1759 = vmatprep.subr.bf16.mxu0 %v1632
    %1760 = vmatpush1.bf16.msra.mxu0 %v1631
    %1761 = vmatprep.subr.bf16.mxu0 %v1634
    %1762 = vmatpush1.bf16.msra.mxu0 %v1633
    %1763 = vmatprep.subr.bf16.mxu0 %v1636
    %1764 = vmatpush1.bf16.msra.mxu0 %v1635
    %1765 = vmatprep.subr.bf16.mxu0 %v1638
    %1766 = vmatpush1.bf16.msra.mxu0 %v1637
    %1767 = vmatprep.subr.bf16.mxu0 %v1640
    %1768 = vmatpush1.bf16.msra.mxu0 %v1639
    %1769 = vmatprep.subr.bf16.mxu0 %v1642
    %1770 = vmatpush1.bf16.msra.mxu0 %v1641
    %1771 = vmatprep.subr.bf16.mxu0 %v1644
    %1772 = vmatpush1.bf16.msra.mxu0 %v1643
    %1773 = vmatprep.subr.bf16.mxu0 %v1646
    %1774 = vmatpush1.bf16.msra.mxu0 %v1645
    %1775 = vmatprep.subr.bf16.mxu0 %v1648
    %1776 = vmatpush1.bf16.msra.mxu0 %v1647
    %1777 = vmatprep.mubr.bf16.mxu0 %v1346
    %1778 = vmatmul.mubr.bf16.gmra.mrb[0].mxu0 %v1345
    %v1779 = vpop.f32.mrb[0].mxu0
    %v1780 = vadd.f32 %v1418, %v1779
    %v1781 = vpop.f32.mrb[0].mxu0
    %v1782 = vadd.f32 %v1422, %v1781
    %v1783 = vpop.f32.mrb[0].mxu0
    %v1784 = vadd.f32 %v1418, %v1783
    %v1785 = vpop.f32.mrb[0].mxu0
    %v1786 = vadd.f32 %v1422, %v1785
    %1787 = vdwg.mxu0
    %1788 = vmatprep.subr.bf16.mxu0 %v1650
    %1789 = vmatpush1.bf16.msra.mxu0 %v1649
    %1790 = vmatprep.subr.bf16.mxu0 %v1652
    %1791 = vmatpush1.bf16.msra.mxu0 %v1651
    %1792 = vmatprep.subr.bf16.mxu0 %v1654
    %1793 = vmatpush1.bf16.msra.mxu0 %v1653
    %1794 = vmatprep.subr.bf16.mxu0 %v1656
    %1795 = vmatpush1.bf16.msra.mxu0 %v1655
    %1796 = vmatprep.subr.bf16.mxu0 %v1658
    %1797 = vmatpush1.bf16.msra.mxu0 %v1657
    %1798 = vmatprep.subr.bf16.mxu0 %v1660
    %1799 = vmatpush1.bf16.msra.mxu0 %v1659
    %1800 = vmatprep.subr.bf16.mxu0 %v1662
    %1801 = vmatpush1.bf16.msra.mxu0 %v1661
    %1802 = vmatprep.subr.bf16.mxu0 %v1664
    %1803 = vmatpush1.bf16.msra.mxu0 %v1663
    %1804 = vmatprep.subr.bf16.mxu0 %v1666
    %1805 = vmatpush1.bf16.msra.mxu0 %v1665
    %1806 = vmatprep.subr.bf16.mxu0 %v1668
    %1807 = vmatpush1.bf16.msra.mxu0 %v1667
    %1808 = vmatprep.subr.bf16.mxu0 %v1670
    %1809 = vmatpush1.bf16.msra.mxu0 %v1669
    %1810 = vmatprep.subr.bf16.mxu0 %v1672
    %1811 = vmatpush1.bf16.msra.mxu0 %v1671
    %1812 = vmatprep.subr.bf16.mxu0 %v1674
    %1813 = vmatpush1.bf16.msra.mxu0 %v1673
    %1814 = vmatprep.subr.bf16.mxu0 %v1676
    %1815 = vmatpush1.bf16.msra.mxu0 %v1675
    %1816 = vmatprep.subr.bf16.mxu0 %v1678
    %1817 = vmatpush1.bf16.msra.mxu0 %v1677
    %1818 = vmatprep.subr.bf16.mxu0 %v1680
    %1819 = vmatpush1.bf16.msra.mxu0 %v1679
    %1820 = vmatprep.mubr.bf16.mxu0 %v1348
    %1821 = vmatmul.mubr.bf16.gmra.mrb[0].mxu0 %v1347
    %v1822 = vpop.f32.mrb[0].mxu0
    %v1823 = vadd.f32 %v1780, %v1822
    %v1824 = vpop.f32.mrb[0].mxu0
    %v1825 = vadd.f32 %v1782, %v1824
    %v1826 = vpop.f32.mrb[0].mxu0
    %v1827 = vadd.f32 %v1784, %v1826
    %v1828 = vpop.f32.mrb[0].mxu0
    %v1829 = vadd.f32 %v1786, %v1828
    %1830 = vdwg.mxu0
    %v1831 = vmax.f32 %v1823, 0.0
    %v1832 = vmax.f32 %v1825, 0.0
    %v1833 = vmax.f32 %v1827, 0.0
    %v1834 = vmax.f32 %v1829, 0.0
    %1835 = vst [vmem:[#allocation20] sm:$0xff] %v1831
    %1836 = vst [vmem:[#allocation20 + $0x8] sm:$0xff] %v1832
    %1837 = vst [vmem:[#allocation20 + $0x10] sm:$0xff] %v1833
    %1838 = vst [vmem:[#allocation20 + $0x18] sm:$0xff] %v1834
    %v1839 = vpack.c.bf16 %v1833, %v1831
    %v1840 = vpack.c.bf16 %v1834, %v1832
    %v1841 = vld [vmem:[#allocation14] sm:$0xff]
    %v1842 = vld [vmem:[#allocation14 + $0x8] sm:$0xff]
    %v1843 = vld [vmem:[#allocation14 + $0x10] sm:$0xff]
    %v1844 = vld [vmem:[#allocation14 + $0x18] sm:$0xff]
    %v1845 = vld [vmem:[#allocation14 + $0x20] sm:$0xff]
    %v1846 = vld [vmem:[#allocation14 + $0x28] sm:$0xff]
    %v1847 = vld [vmem:[#allocation14 + $0x30] sm:$0xff]
    %v1848 = vld [vmem:[#allocation14 + $0x38] sm:$0xff]
    %v1849 = vld [vmem:[#allocation14 + $0x40] sm:$0xff]
    %v1850 = vld [vmem:[#allocation14 + $0x48] sm:$0xff]
    %v1851 = vld [vmem:[#allocation14 + $0x50] sm:$0xff]
    %v1852 = vld [vmem:[#allocation14 + $0x58] sm:$0xff]
    %v1853 = vld [vmem:[#allocation14 + $0x60] sm:$0xff]
    %v1854 = vld [vmem:[#allocation14 + $0x68] sm:$0xff]
    %v1855 = vld [vmem:[#allocation14 + $0x70] sm:$0xff]
    %v1856 = vld [vmem:[#allocation14 + $0x78] sm:$0xff]
    %v1857 = vld [vmem:[#allocation14 + $0x80] sm:$0xff]
    %v1858 = vld [vmem:[#allocation14 + $0x88] sm:$0xff]
    %v1859 = vld [vmem:[#allocation14 + $0x90] sm:$0xff]
    %v1860 = vld [vmem:[#allocation14 + $0x98] sm:$0xff]
    %v1861 = vld [vmem:[#allocation14 + $0xa0] sm:$0xff]
    %v1862 = vld [vmem:[#allocation14 + $0xa8] sm:$0xff]
    %v1863 = vld [vmem:[#allocation14 + $0xb0] sm:$0xff]
    %v1864 = vld [vmem:[#allocation14 + $0xb8] sm:$0xff]
    %v1865 = vld [vmem:[#allocation14 + $0xc0] sm:$0xff]
    %v1866 = vld [vmem:[#allocation14 + $0xc8] sm:$0xff]
    %v1867 = vld [vmem:[#allocation14 + $0xd0] sm:$0xff]
    %v1868 = vld [vmem:[#allocation14 + $0xd8] sm:$0xff]
    %v1869 = vld [vmem:[#allocation14 + $0xe0] sm:$0xff]
    %v1870 = vld [vmem:[#allocation14 + $0xe8] sm:$0xff]
    %v1871 = vld [vmem:[#allocation14 + $0xf0] sm:$0xff]
    %v1872 = vld [vmem:[#allocation14 + $0xf8] sm:$0xff]
    %v1873 = vld [vmem:[#allocation16] sm:$0x3]
    %v1875 = vlaneseq
    %v1876 = vshrl.u32 %v1875, 7
    %v1877 = vsub.s32 0, %v1876
    %v1878 = vrot.slane %v1873, %v1877
    %v1879 = vlaneseq
    %v1880 = vshrl.u32 %v1879, 7
    %v1881 = vsub.s32 1, %v1880
    %v1882 = vrot.slane %v1873, %v1881
    %v1917 = vunpack.c.l.b16 %v1841
    %v1918 = vunpack.c.h.b16 %v1841
    %v1919 = vunpack.c.l.b16 %v1842
    %v1920 = vunpack.c.h.b16 %v1842
    %v1921 = vunpack.c.l.b16 %v1843
    %v1922 = vunpack.c.h.b16 %v1843
    %v1923 = vunpack.c.l.b16 %v1844
    %v1924 = vunpack.c.h.b16 %v1844
    %v1925 = vunpack.c.l.b16 %v1845
    %v1926 = vunpack.c.h.b16 %v1845
    %v1927 = vunpack.c.l.b16 %v1846
    %v1928 = vunpack.c.h.b16 %v1846
    %v1929 = vunpack.c.l.b16 %v1847
    %v1930 = vunpack.c.h.b16 %v1847
    %v1931 = vunpack.c.l.b16 %v1848
    %v1932 = vunpack.c.h.b16 %v1848
    %v1933 = vunpack.c.l.b16 %v1849
    %v1934 = vunpack.c.h.b16 %v1849
    %v1935 = vunpack.c.l.b16 %v1850
    %v1936 = vunpack.c.h.b16 %v1850
    %v1937 = vunpack.c.l.b16 %v1851
    %v1938 = vunpack.c.h.b16 %v1851
    %v1939 = vunpack.c.l.b16 %v1852
    %v1940 = vunpack.c.h.b16 %v1852
    %v1941 = vunpack.c.l.b16 %v1853
    %v1942 = vunpack.c.h.b16 %v1853
    %v1943 = vunpack.c.l.b16 %v1854
    %v1944 = vunpack.c.h.b16 %v1854
    %v1945 = vunpack.c.l.b16 %v1855
    %v1946 = vunpack.c.h.b16 %v1855
    %v1947 = vunpack.c.l.b16 %v1856
    %v1948 = vunpack.c.h.b16 %v1856
    %v1949 = vunpack.c.l.b16 %v1857
    %v1950 = vunpack.c.h.b16 %v1857
    %v1951 = vunpack.c.l.b16 %v1858
    %v1952 = vunpack.c.h.b16 %v1858
    %v1953 = vunpack.c.l.b16 %v1859
    %v1954 = vunpack.c.h.b16 %v1859
    %v1955 = vunpack.c.l.b16 %v1860
    %v1956 = vunpack.c.h.b16 %v1860
    %v1957 = vunpack.c.l.b16 %v1861
    %v1958 = vunpack.c.h.b16 %v1861
    %v1959 = vunpack.c.l.b16 %v1862
    %v1960 = vunpack.c.h.b16 %v1862
    %v1961 = vunpack.c.l.b16 %v1863
    %v1962 = vunpack.c.h.b16 %v1863
    %v1963 = vunpack.c.l.b16 %v1864
    %v1964 = vunpack.c.h.b16 %v1864
    %v1965 = vunpack.c.l.b16 %v1865
    %v1966 = vunpack.c.h.b16 %v1865
    %v1967 = vunpack.c.l.b16 %v1866
    %v1968 = vunpack.c.h.b16 %v1866
    %v1969 = vunpack.c.l.b16 %v1867
    %v1970 = vunpack.c.h.b16 %v1867
    %v1971 = vunpack.c.l.b16 %v1868
    %v1972 = vunpack.c.h.b16 %v1868
    %v1973 = vunpack.c.l.b16 %v1869
    %v1974 = vunpack.c.h.b16 %v1869
    %v1975 = vunpack.c.l.b16 %v1870
    %v1976 = vunpack.c.h.b16 %v1870
    %v1977 = vunpack.c.l.b16 %v1871
    %v1978 = vunpack.c.h.b16 %v1871
    %v1979 = vunpack.c.l.b16 %v1872
    %v1980 = vunpack.c.h.b16 %v1872
    %v1981 = vpack.c.b16 %v1919, %v1917
    %v1982 = vpack.c.b16 %v1920, %v1918
    %v1983 = vpack.c.b16 %v1923, %v1921
    %v1984 = vpack.c.b16 %v1924, %v1922
    %v1985 = vpack.c.b16 %v1927, %v1925
    %v1986 = vpack.c.b16 %v1928, %v1926
    %v1987 = vpack.c.b16 %v1931, %v1929
    %v1988 = vpack.c.b16 %v1932, %v1930
    %v1989 = vpack.c.b16 %v1935, %v1933
    %v1990 = vpack.c.b16 %v1936, %v1934
    %v1991 = vpack.c.b16 %v1939, %v1937
    %v1992 = vpack.c.b16 %v1940, %v1938
    %v1993 = vpack.c.b16 %v1943, %v1941
    %v1994 = vpack.c.b16 %v1944, %v1942
    %v1995 = vpack.c.b16 %v1947, %v1945
    %v1996 = vpack.c.b16 %v1948, %v1946
    %v1997 = vpack.c.b16 %v1951, %v1949
    %v1998 = vpack.c.b16 %v1952, %v1950
    %v1999 = vpack.c.b16 %v1955, %v1953
    %v2000 = vpack.c.b16 %v1956, %v1954
    %v2001 = vpack.c.b16 %v1959, %v1957
    %v2002 = vpack.c.b16 %v1960, %v1958
    %v2003 = vpack.c.b16 %v1963, %v1961
    %v2004 = vpack.c.b16 %v1964, %v1962
    %v2005 = vpack.c.b16 %v1967, %v1965
    %v2006 = vpack.c.b16 %v1968, %v1966
    %v2007 = vpack.c.b16 %v1971, %v1969
    %v2008 = vpack.c.b16 %v1972, %v1970
    %v2009 = vpack.c.b16 %v1975, %v1973
    %v2010 = vpack.c.b16 %v1976, %v1974
    %v2011 = vpack.c.b16 %v1979, %v1977
    %v2012 = vpack.c.b16 %v1980, %v1978
    %2045 = vmatprep.subr.bf16.mxu0 %v1982
    %2046 = vmatpush1.bf16.msra.mxu0 %v1981
    %2047 = vmatprep.subr.bf16.mxu0 %v1984
    %2048 = vmatpush1.bf16.msra.mxu0 %v1983
    %2049 = vmatprep.subr.bf16.mxu0 %v1986
    %2050 = vmatpush1.bf16.msra.mxu0 %v1985
    %2051 = vmatprep.subr.bf16.mxu0 %v1988
    %2052 = vmatpush1.bf16.msra.mxu0 %v1987
    %2053 = vmatprep.subr.bf16.mxu0 %v1990
    %2054 = vmatpush1.bf16.msra.mxu0 %v1989
    %2055 = vmatprep.subr.bf16.mxu0 %v1992
    %2056 = vmatpush1.bf16.msra.mxu0 %v1991
    %2057 = vmatprep.subr.bf16.mxu0 %v1994
    %2058 = vmatpush1.bf16.msra.mxu0 %v1993
    %2059 = vmatprep.subr.bf16.mxu0 %v1996
    %2060 = vmatpush1.bf16.msra.mxu0 %v1995
    %2061 = vmatprep.subr.bf16.mxu0 %v1998
    %2062 = vmatpush1.bf16.msra.mxu0 %v1997
    %2063 = vmatprep.subr.bf16.mxu0 %v2000
    %2064 = vmatpush1.bf16.msra.mxu0 %v1999
    %2065 = vmatprep.subr.bf16.mxu0 %v2002
    %2066 = vmatpush1.bf16.msra.mxu0 %v2001
    %2067 = vmatprep.subr.bf16.mxu0 %v2004
    %2068 = vmatpush1.bf16.msra.mxu0 %v2003
    %2069 = vmatprep.subr.bf16.mxu0 %v2006
    %2070 = vmatpush1.bf16.msra.mxu0 %v2005
    %2071 = vmatprep.subr.bf16.mxu0 %v2008
    %2072 = vmatpush1.bf16.msra.mxu0 %v2007
    %2073 = vmatprep.subr.bf16.mxu0 %v2010
    %2074 = vmatpush1.bf16.msra.mxu0 %v2009
    %2075 = vmatprep.subr.bf16.mxu0 %v2012
    %2076 = vmatpush1.bf16.msra.mxu0 %v2011
    %2077 = vmatprep.mubr.bf16.mxu0 %v1840
    %2078 = vmatmul.mubr.bf16.gmra.mrb[0].mxu0 %v1839
    %v2079 = vpop.f32.mrb[0].mxu0
    %v2080 = vadd.f32 %v1878, %v2079
    %v2081 = vpop.f32.mrb[0].mxu0
    %v2082 = vadd.f32 %v1882, %v2081
    %v2083 = vpop.f32.mrb[0].mxu0
    %v2084 = vadd.f32 %v1878, %v2083
    %v2085 = vpop.f32.mrb[0].mxu0
    %v2086 = vadd.f32 %v1882, %v2085
    %2087 = vdwg.mxu0
    %v2088 = vmax.f32 %v2080, 0.0
    %v2089 = vmax.f32 %v2082, 0.0
    %v2090 = vmax.f32 %v2084, 0.0
    %v2091 = vmax.f32 %v2086, 0.0
    %v2092 = vpack.c.bf16 %v2090, %v2088
    %v2093 = vpack.c.bf16 %v2091, %v2089
    %v2094 = vld [vmem:[#allocation17] sm:$0xf]
    %v2095 = vld [vmem:[#allocation17 + $0x4] sm:$0xf]
    %v2096 = vld [vmem:[#allocation17 + $0x8] sm:$0xf]
    %v2097 = vld [vmem:[#allocation17 + $0xc] sm:$0xf]
    %v2098 = vld [vmem:[#allocation17 + $0x10] sm:$0xf]
    %v2099 = vld [vmem:[#allocation17 + $0x14] sm:$0xf]
    %v2100 = vld [vmem:[#allocation17 + $0x18] sm:$0xf]
    %v2101 = vld [vmem:[#allocation17 + $0x1c] sm:$0xf]
    %v2102 = vld [vmem:[#allocation17 + $0x20] sm:$0xf]
    %v2103 = vld [vmem:[#allocation17 + $0x24] sm:$0xf]
    %v2104 = vld [vmem:[#allocation17 + $0x28] sm:$0xf]
    %v2105 = vld [vmem:[#allocation17 + $0x2c] sm:$0xf]
    %v2106 = vld [vmem:[#allocation17 + $0x30] sm:$0xf]
    %v2107 = vld [vmem:[#allocation17 + $0x34] sm:$0xf]
    %v2108 = vld [vmem:[#allocation17 + $0x38] sm:$0xf]
    %v2109 = vld [vmem:[#allocation17 + $0x3c] sm:$0xf]
    %v2110 = vld [vmem:[#allocation17 + $0x40] sm:$0xf]
    %v2111 = vld [vmem:[#allocation17 + $0x44] sm:$0xf]
    %v2112 = vld [vmem:[#allocation17 + $0x48] sm:$0xf]
    %v2113 = vld [vmem:[#allocation17 + $0x4c] sm:$0xf]
    %v2114 = vld [vmem:[#allocation17 + $0x50] sm:$0xf]
    %v2115 = vld [vmem:[#allocation17 + $0x54] sm:$0xf]
    %v2116 = vld [vmem:[#allocation17 + $0x58] sm:$0xf]
    %v2117 = vld [vmem:[#allocation17 + $0x5c] sm:$0xf]
    %v2118 = vld [vmem:[#allocation17 + $0x60] sm:$0xf]
    %v2119 = vld [vmem:[#allocation17 + $0x64] sm:$0xf]
    %v2120 = vld [vmem:[#allocation17 + $0x68] sm:$0xf]
    %v2121 = vld [vmem:[#allocation17 + $0x6c] sm:$0xf]
    %v2122 = vld [vmem:[#allocation17 + $0x70] sm:$0xf]
    %v2123 = vld [vmem:[#allocation17 + $0x74] sm:$0xf]
    %v2124 = vld [vmem:[#allocation17 + $0x78] sm:$0xf]
    %v2125 = vld [vmem:[#allocation17 + $0x7c] sm:$0xf]
    %v2126 = vld [vmem:[#allocation19] sm:$0x1]
    %v2128 = vlaneseq
    %v2129 = vshrl.u32 %v2128, 7
    %v2130 = vsub.s32 0, %v2129
    %v2131 = vrot.slane %v2126, %v2130
    %v2165 = vunpack.c.l.b16 %v2094
    %v2166 = vunpack.c.l.b16 %v2095
    %v2167 = vunpack.c.l.b16 %v2096
    %v2168 = vunpack.c.l.b16 %v2097
    %v2169 = vunpack.c.l.b16 %v2098
    %v2170 = vunpack.c.l.b16 %v2099
    %v2171 = vunpack.c.l.b16 %v2100
    %v2172 = vunpack.c.l.b16 %v2101
    %v2173 = vunpack.c.l.b16 %v2102
    %v2174 = vunpack.c.l.b16 %v2103
    %v2175 = vunpack.c.l.b16 %v2104
    %v2176 = vunpack.c.l.b16 %v2105
    %v2177 = vunpack.c.l.b16 %v2106
    %v2178 = vunpack.c.l.b16 %v2107
    %v2179 = vunpack.c.l.b16 %v2108
    %v2180 = vunpack.c.l.b16 %v2109
    %v2181 = vunpack.c.l.b16 %v2110
    %v2182 = vunpack.c.l.b16 %v2111
    %v2183 = vunpack.c.l.b16 %v2112
    %v2184 = vunpack.c.l.b16 %v2113
    %v2185 = vunpack.c.l.b16 %v2114
    %v2186 = vunpack.c.l.b16 %v2115
    %v2187 = vunpack.c.l.b16 %v2116
    %v2188 = vunpack.c.l.b16 %v2117
    %v2189 = vunpack.c.l.b16 %v2118
    %v2190 = vunpack.c.l.b16 %v2119
    %v2191 = vunpack.c.l.b16 %v2120
    %v2192 = vunpack.c.l.b16 %v2121
    %v2193 = vunpack.c.l.b16 %v2122
    %v2194 = vunpack.c.l.b16 %v2123
    %v2195 = vunpack.c.l.b16 %v2124
    %v2196 = vunpack.c.l.b16 %v2125
    %v2197 = vpack.c.b16 %v2166, %v2165
    %v2198 = vpack.c.b16 %v2168, %v2167
    %v2199 = vpack.c.b16 %v2170, %v2169
    %v2200 = vpack.c.b16 %v2172, %v2171
    %v2201 = vpack.c.b16 %v2174, %v2173
    %v2202 = vpack.c.b16 %v2176, %v2175
    %v2203 = vpack.c.b16 %v2178, %v2177
    %v2204 = vpack.c.b16 %v2180, %v2179
    %v2205 = vpack.c.b16 %v2182, %v2181
    %v2206 = vpack.c.b16 %v2184, %v2183
    %v2207 = vpack.c.b16 %v2186, %v2185
    %v2208 = vpack.c.b16 %v2188, %v2187
    %v2209 = vpack.c.b16 %v2190, %v2189
    %v2210 = vpack.c.b16 %v2192, %v2191
    %v2211 = vpack.c.b16 %v2194, %v2193
    %v2212 = vpack.c.b16 %v2196, %v2195
    %2229 = vmatprep.subr.bf16.mxu0 0
    %2230 = vmatpush1.bf16.msra.mxu0 %v2197
    %2231 = vmatprep.subr.bf16.mxu0 0
    %2232 = vmatpush1.bf16.msra.mxu0 %v2198
    %2233 = vmatprep.subr.bf16.mxu0 0
    %2234 = vmatpush1.bf16.msra.mxu0 %v2199
    %2235 = vmatprep.subr.bf16.mxu0 0
    %2236 = vmatpush1.bf16.msra.mxu0 %v2200
    %2237 = vmatprep.subr.bf16.mxu0 0
    %2238 = vmatpush1.bf16.msra.mxu0 %v2201
    %2239 = vmatprep.subr.bf16.mxu0 0
    %2240 = vmatpush1.bf16.msra.mxu0 %v2202
    %2241 = vmatprep.subr.bf16.mxu0 0
    %2242 = vmatpush1.bf16.msra.mxu0 %v2203
    %2243 = vmatprep.subr.bf16.mxu0 0
    %2244 = vmatpush1.bf16.msra.mxu0 %v2204
    %2245 = vmatprep.subr.bf16.mxu0 0
    %2246 = vmatpush1.bf16.msra.mxu0 %v2205
    %2247 = vmatprep.subr.bf16.mxu0 0
    %2248 = vmatpush1.bf16.msra.mxu0 %v2206
    %2249 = vmatprep.subr.bf16.mxu0 0
    %2250 = vmatpush1.bf16.msra.mxu0 %v2207
    %2251 = vmatprep.subr.bf16.mxu0 0
    %2252 = vmatpush1.bf16.msra.mxu0 %v2208
    %2253 = vmatprep.subr.bf16.mxu0 0
    %2254 = vmatpush1.bf16.msra.mxu0 %v2209
    %2255 = vmatprep.subr.bf16.mxu0 0
    %2256 = vmatpush1.bf16.msra.mxu0 %v2210
    %2257 = vmatprep.subr.bf16.mxu0 0
    %2258 = vmatpush1.bf16.msra.mxu0 %v2211
    %2259 = vmatprep.subr.bf16.mxu0 0
    %2260 = vmatpush1.bf16.msra.mxu0 %v2212
    %2261 = vmatprep.mubr.bf16.mxu0 %v2093
    %2262 = vmatmul.mubr.bf16.gmra.mrb[0].mxu0 %v2092
    %v2263 = vpop.f32.mrb[0].mxu0
    %v2264 = vadd.f32 %v2131, %v2263
    %v2265 = vpop.f32.mrb[0].mxu0
    %v2266 = vpop.f32.mrb[0].mxu0
    %v2267 = vadd.f32 %v2131, %v2266
    %v2268 = vpop.f32.mrb[0].mxu0
    %2269 = vdwg.mxu0
    %2270 = vst [vmem:[%s15] sm:$0xff] %v2264
    %2271 = vst [vmem:[%s15 + $0x8] sm:$0xff] %v2267
    // Predicated region
    $region102: #{gcn_forward.3} parent=1 // pred_check
      _
    $region103: #{gcn_forward.3} parent=1 // pred_check_branch
      %2273 = sbr.rel (0) target = $region105
    $region104: #{gcn_forward.3} parent=1 // pred_region
      %s2275 = ssub.s32 512, 512
      %2276 = vsyncadd [#allocation4], %s2275
      %s2277 = sshll.u32 [#allocation20], 4
      %s2278 = int_to_ptr.vmem [resolvable:$true] %s2277
      %2283 = dma.vmem_to_hbm [thread:$0]  %s2278, 512, %s14, [#allocation4], 256, 256, 16
    $region105: #{gcn_forward.3} parent=1 // pred_fallthru
      _
    // Predicated region
    $region106: #{gcn_forward.3} parent=1 // pred_check
      _
    $region107: #{gcn_forward.3} parent=1 // pred_check_branch
      %2285 = sbr.rel (0) target = $region109
    $region108: #{gcn_forward.3} parent=1 // pred_region
      _
    $region109: #{gcn_forward.3} parent=1 // pred_fallthru
      _
    // Predicated region
    $region110: #{gcn_forward.3} parent=1 // pred_check
      _
    $region111: #{gcn_forward.3} parent=1 // pred_check_branch
      %2287 = sbr.rel (0) target = $region113
    $region112: #{gcn_forward.3} parent=1 // pred_region
      %2288 = dma.done [#allocation4], 512
    $region113: #{gcn_forward.3} parent=1 // pred_fallthru
      _
    // Predicated region
    $region114: #{gcn_forward.3} parent=1 // pred_check
      _
    $region115: #{gcn_forward.3} parent=1 // pred_check_branch
      %2290 = sbr.rel (0) target = $region117
    $region116: #{gcn_forward.3} parent=1 // pred_region
      _
    $region117: #{gcn_forward.3} parent=1 // pred_fallthru
      _
    %2291 = vsyncpa [#allocation3], 1
    %2292 = vsyncpa [#allocation6], 1
    %2293 = vsyncpa [#allocation9], 1
    %2294 = vsyncpa [#allocation12], 1
    %2295 = vsyncpa [#allocation15], 1
    %2296 = vsyncpa [#allocation18], 1
    %2297 = vsyncpa [#allocation4], 1

</llo_original>
